<compile_context>
chip_gen: v5e
topology: v5e:2x2
jax: 0.10.0
libtpu: 0.0.40
codegen_flags: <defaults>
</compile_context>

<pallas_src>
import functools
import math

import jax
import jax.numpy as jnp
from jax.experimental import pallas as pl
from jax.experimental.pallas import tpu as pltpu


# ----------------------------------------------------------------------------
# Kernels
# ----------------------------------------------------------------------------
def _conv_bn_relu_pool_kernel(x_ref, w_ref, scale_ref, shift_ref, o_ref,
                              *, H, W, Cin, Cout, pool):
    """3x3 conv (pad=1, stride=1, no bias) + folded BN + ReLU (+ fused 2x2 pool).

    x_ref:     (1, H, W, Cin)    bf16 unpadded input (halo built in-kernel)
    w_ref:     (9*Cin, Cout)     bf16 taps flattened into the contraction dim
    scale_ref: (1, Cout)         f32 gamma / sqrt(var + eps)
    shift_ref: (1, Cout)         f32 beta - mean * scale
    o_ref:     (1, Ho, Wo, Cout) bf16 output (pooled if pool != 'none')
    """
    x = x_ref[0]                                           # (H, W, Cin) bf16

    # Zero-padded halo, built in VMEM (no HBM-side jnp.pad).
    zrow = jnp.zeros((1, W, Cin), x.dtype)
    xv = jnp.concatenate([zrow, x, zrow], axis=0)          # (H+2, W, Cin)
    zcol = jnp.zeros((H + 2, 1, Cin), x.dtype)
    xp = jnp.concatenate([zcol, xv, zcol], axis=1)         # (H+2, W+2, Cin)

    # im2col: pack all 9 taps into the contraction dimension -> one MXU matmul.
    cols = []
    for kh in range(3):
        for kw in range(3):
            cols.append(xp[kh:kh + H, kw:kw + W, :].reshape(H * W, Cin))
    mat = jnp.concatenate(cols, axis=-1)                   # (H*W, 9*Cin) bf16

    acc = jnp.dot(mat, w_ref[...],
                  preferred_element_type=jnp.float32)      # (H*W, Cout) f32

    # Folded BatchNorm + ReLU epilogue (f32).
    y = acc * scale_ref[...] + shift_ref[...]
    y = jnp.maximum(y, 0.0)

    if pool == 'none':
        o_ref[0] = y.reshape(H, W, Cout).astype(o_ref.dtype)
    else:
        # Fused 2x2 stride-2 pooling (exact match to nn.MaxPool2d(2)/nn.AvgPool2d(2)).
        yh = y.reshape(H // 2, 2, W, Cout)
        a, b = yh[:, 0], yh[:, 1]                          # (H//2, W, Cout)
        r = jnp.maximum(a, b) if pool == 'max' else a + b
        rw = r.reshape(H // 2, W // 2, 2, Cout)
        c, d = rw[:, :, 0, :], rw[:, :, 1, :]              # (H//2, W//2, Cout)
        out = jnp.maximum(c, d) if pool == 'max' else (c + d) * 0.25
        o_ref[0] = out.astype(o_ref.dtype)


def _pool2x2_kernel(x_ref, o_ref, *, H, W, C, pool):
    """Standalone 2x2 stride-2 pool (whole image per grid step). Fallback only —
    the hot path fuses pooling into the conv epilogue."""
    y = x_ref[0].astype(jnp.float32)                       # (H, W, C)
    yh = y.reshape(H // 2, 2, W, C)
    a, b = yh[:, 0], yh[:, 1]
    r = jnp.maximum(a, b) if pool == 'max' else a + b
    rw = r.reshape(H // 2, W // 2, 2, C)
    c, d = rw[:, :, 0, :], rw[:, :, 1, :]
    out = jnp.maximum(c, d) if pool == 'max' else (c + d) * 0.25
    o_ref[0] = out.astype(o_ref.dtype)


def _linear_logsoftmax_kernel(x_ref, w_ref, b_ref, o_ref):
    """y = x @ w + b, then log_softmax over the (lane-padded) class axis.

    Padded classes carry bias = -1e30 and zero weight columns, so they contribute
    ~0 to the softmax denominator and are sliced away in the wrapper.
    """
    y = jnp.dot(x_ref[...], w_ref[...],
                preferred_element_type=jnp.float32) + b_ref[...]
    m = jnp.max(y, axis=1, keepdims=True)
    z = y - m
    lse = jnp.log(jnp.sum(jnp.exp(z), axis=1, keepdims=True))
    o_ref[...] = z - lse


# ----------------------------------------------------------------------------
# Wrappers (pallas_call plumbing)
# ----------------------------------------------------------------------------
def conv_bn_relu_pool(x, w, scale, shift, pool='none'):
    N, H, W, Cin = x.shape
    Cout = w.shape[-1]

    # Pad tiny channel counts (first layer Cin=3) to 8 for MXU contraction fill.
    if Cin < 8:
        pad_c = 8 - Cin
        x = jnp.pad(x, ((0, 0), (0, 0), (0, 0), (0, pad_c)))
        w = jnp.pad(w, ((0, 0), (0, 0), (0, pad_c), (0, 0)))
        Cin = 8

    Ho, Wo = (H, W) if pool == 'none' else (H // 2, W // 2)
    w2 = w.reshape(9 * Cin, Cout).astype(jnp.bfloat16)

    kernel = functools.partial(_conv_bn_relu_pool_kernel,
                               H=H, W=W, Cin=Cin, Cout=Cout, pool=pool)
    return pl.pallas_call(
        kernel,
        out_shape=jax.ShapeDtypeStruct((N, Ho, Wo, Cout), jnp.bfloat16),
        grid=(N,),
        in_specs=[
            pl.BlockSpec((1, H, W, Cin), lambda n: (n, 0, 0, 0)),
            pl.BlockSpec((9 * Cin, Cout), lambda n: (0, 0)),   # weights stay resident
            pl.BlockSpec((1, Cout), lambda n: (0, 0)),
            pl.BlockSpec((1, Cout), lambda n: (0, 0)),
        ],
        out_specs=pl.BlockSpec((1, Ho, Wo, Cout), lambda n: (n, 0, 0, 0)),
        compiler_params=pltpu.CompilerParams(
            dimension_semantics=("parallel",)),
    )(x.astype(jnp.bfloat16), w2, scale, shift)


def pool2x2(x, pool):
    """Fallback standalone pool (only used if an 'M' / final avgpool can't be fused)."""
    N, H, W, C = x.shape
    Ho, Wo = H // 2, W // 2
    kernel = functools.partial(_pool2x2_kernel, H=H, W=W, C=C, pool=pool)
    return pl.pallas_call(
        kernel,
        out_shape=jax.ShapeDtypeStruct((N, Ho, Wo, C), x.dtype),
        grid=(N,),
        in_specs=[pl.BlockSpec((1, H, W, C), lambda n: (n, 0, 0, 0))],
        out_specs=pl.BlockSpec((1, Ho, Wo, C), lambda n: (n, 0, 0, 0)),
        compiler_params=pltpu.CompilerParams(
            dimension_semantics=("parallel",)),
    )(x)


def linear_logsoftmax(x, w, b, num_classes):
    N, F = x.shape
    Cp = max(128, ((num_classes + 127) // 128) * 128)      # lane-dense class axis
    w_p = jnp.zeros((F, Cp), jnp.bfloat16).at[:, :num_classes].set(
        w.astype(jnp.bfloat16))
    b_p = jnp.full((1, Cp), -1e30, jnp.float32).at[:, :num_classes].set(
        b.reshape(1, num_classes).astype(jnp.float32))

    out = pl.pallas_call(
        _linear_logsoftmax_kernel,
        out_shape=jax.ShapeDtypeStruct((N, Cp), jnp.float32),
        grid=(1,),
        in_specs=[
            pl.BlockSpec((N, F), lambda i: (0, 0)),
            pl.BlockSpec((F, Cp), lambda i: (0, 0)),
            pl.BlockSpec((1, Cp), lambda i: (0, 0)),
        ],
        out_specs=pl.BlockSpec((N, Cp), lambda i: (0, 0)),
        compiler_params=pltpu.CompilerParams(
            dimension_semantics=("arbitrary",)),
    )(x.astype(jnp.bfloat16), w_p, b_p)
    return out[:, :num_classes]


# ----------------------------------------------------------------------------
# Parameter init (deterministic, mirrors VGG._initialize_weights shapes)
# ----------------------------------------------------------------------------
def init_params(cfg, key, num_classes=10, bn_eps=1e-5):
    conv_params = []
    in_c = 3
    for v in cfg:
        if v == 'M':
            continue
        key, k1, k2, k3, k4, k5 = jax.random.split(key, 6)
        n = 3 * 3 * in_c
        w = jax.random.normal(k1, (3, 3, in_c, v), jnp.float32) * math.sqrt(2.0 / n)
        gamma = jax.random.uniform(k2, (v,), jnp.float32, 0.5, 1.5)
        beta = jax.random.normal(k3, (v,), jnp.float32) * 0.1
        rmean = jax.random.normal(k4, (v,), jnp.float32) * 0.1
        rvar = jax.random.uniform(k5, (v,), jnp.float32, 0.5, 1.5)
        scale = gamma / jnp.sqrt(rvar + bn_eps)
        shift = beta - rmean * scale
        conv_params.append((w, scale.reshape(1, v), shift.reshape(1, v)))
        in_c = v
    key, kw = jax.random.split(key)
    fc_w = jax.random.normal(kw, (cfg[-1], num_classes), jnp.float32) * 0.01
    fc_b = jnp.zeros((num_classes,), jnp.float32)
    return conv_params, (fc_w, fc_b)


# ----------------------------------------------------------------------------
# Forward pass (VGG.forward, last='logsoftmax', dataset='cifar10')
# ----------------------------------------------------------------------------
def vgg_forward(x_nchw, cfg, conv_params, fc, num_classes=10):
    x = jnp.transpose(x_nchw, (0, 2, 3, 1)).astype(jnp.bfloat16)   # NCHW -> NHWC
    ci = 0
    i = 0
    n_cfg = len(cfg)
    while i < n_cfg:
        v = cfg[i]
        if v == 'M':
            # 'M' not preceded by a conv (never happens for defaultcfg-style cfgs).
            x = pool2x2(x, 'max')
            i += 1
            continue
        w, scale, shift = conv_params[ci]
        ci += 1
        if i + 1 < n_cfg and cfg[i + 1] == 'M':
            x = conv_bn_relu_pool(x, w, scale, shift, pool='max')  # fused maxpool
            i += 2
        elif i + 1 == n_cfg:
            # last feature layer is a conv -> fuse forward()'s nn.AvgPool2d(2)
            x = conv_bn_relu_pool(x, w, scale, shift, pool='avg')
            i += 1
        else:
            x = conv_bn_relu_pool(x, w, scale, shift, pool='none')
            i += 1
    if cfg[-1] == 'M':
        x = pool2x2(x, 'avg')            # final nn.AvgPool2d(2) not yet applied
    N = x.shape[0]
    # spatial is 1x1 here, so NHWC flatten == NCHW flatten == channel vector
    x = x.reshape(N, -1)
    fc_w, fc_b = fc
    return linear_logsoftmax(x, fc_w, fc_b, num_classes)


if __name__ == "__main__":
    # Small cfg with the same structural grammar as defaultcfg (conv / 'M'),
    # sized so that after the 'M' pools + final AvgPool2d(2) the spatial dims
    # are 1x1 and the flatten width equals cfg[-1] (matching nn.Linear(cfg[-1], 10)).
    cfg = [8, 'M', 16, 'M', 32, 'M', 32]
    num_classes = 10

    key = jax.random.PRNGKey(0)
    key, kx = jax.random.split(key)
    x = jax.random.normal(kx, (2, 3, 16, 16), jnp.float32)   # NCHW like PyTorch

    conv_params, fc = init_params(cfg, key, num_classes=num_classes)

    fwd = jax.jit(lambda xin: vgg_forward(xin, cfg, conv_params, fc,
                                          num_classes=num_classes))
    out = fwd(x)
    out = jax.block_until_ready(out)

    assert out.shape == (2, num_classes), out.shape
    assert bool(jnp.all(jnp.isfinite(out)))
    print("KERNEL_OK")
</pallas_src>

<mosaic_0001>
module attributes {stable_mosaic.version = 11 : i64} {
  func.func @_conv_bn_relu_pool_kernel(%arg0: i32, %arg1: memref<1x16x16x8xbf16, #tpu.memory_space<vmem>>, %arg2: memref<72x8xbf16, #tpu.memory_space<vmem>>, %arg3: memref<1x8xf32, #tpu.memory_space<vmem>>, %arg4: memref<1x8xf32, #tpu.memory_space<vmem>>, %arg5: memref<1x8x8x8xbf16, #tpu.memory_space<vmem>>) attributes {dimension_semantics = [#tpu.dimension_semantics<parallel>], iteration_bounds = array<i64: 2>, scalar_prefetch = 0 : i64, scratch_operands = 0 : i64, tpu.core_type = #tpu.core_type<tc>, window_params = [{transform_indices = @transform_0, window_bounds = array<i64: 1, 16, 16, 8>}, {pipeline_mode = #tpu.pipeline_mode<synchronous>, transform_indices = @transform_1, window_bounds = array<i64: 72, 8>}, {pipeline_mode = #tpu.pipeline_mode<synchronous>, transform_indices = @transform_2, window_bounds = array<i64: 1, 8>}, {pipeline_mode = #tpu.pipeline_mode<synchronous>, transform_indices = @transform_3, window_bounds = array<i64: 1, 8>}, {transform_indices = @transform_4, window_bounds = array<i64: 1, 8, 8, 8>}]} {
    %c0 = arith.constant 0 : index
    %c0_0 = arith.constant 0 : index
    %c0_1 = arith.constant 0 : index
    %c0_2 = arith.constant 0 : index
    %0 = vector.load %arg1[%c0, %c0_0, %c0_1, %c0_2] : memref<1x16x16x8xbf16, #tpu.memory_space<vmem>>, vector<1x16x16x8xbf16>
    %1 = vector.shape_cast %0 : vector<1x16x16x8xbf16> to vector<16x16x8xbf16>
    %cst = arith.constant 0.000000e+00 : bf16
    %2 = vector.broadcast %cst : bf16 to vector<1x16x8xbf16>
    %3 = tpu.concatenate %2, %1, %2 in 0 : vector<1x16x8xbf16>, vector<16x16x8xbf16>, vector<1x16x8xbf16> -> vector<18x16x8xbf16>
    %cst_3 = arith.constant 0.000000e+00 : bf16
    %4 = vector.broadcast %cst_3 : bf16 to vector<18x1x8xbf16>
    %5 = tpu.concatenate %4, %3, %4 in 1 : vector<18x1x8xbf16>, vector<18x16x8xbf16>, vector<18x1x8xbf16> -> vector<18x18x8xbf16>
    %6 = vector.extract_strided_slice %5 {offsets = [0, 0, 0], sizes = [16, 16, 8], strides = [1, 1, 1]} : vector<18x18x8xbf16> to vector<16x16x8xbf16>
    %7 = vector.shape_cast %6 : vector<16x16x8xbf16> to vector<256x8xbf16>
    %8 = vector.extract_strided_slice %5 {offsets = [0, 1, 0], sizes = [16, 16, 8], strides = [1, 1, 1]} : vector<18x18x8xbf16> to vector<16x16x8xbf16>
    %9 = vector.shape_cast %8 : vector<16x16x8xbf16> to vector<256x8xbf16>
    %10 = vector.extract_strided_slice %5 {offsets = [0, 2, 0], sizes = [16, 16, 8], strides = [1, 1, 1]} : vector<18x18x8xbf16> to vector<16x16x8xbf16>
    %11 = vector.shape_cast %10 : vector<16x16x8xbf16> to vector<256x8xbf16>
    %12 = vector.extract_strided_slice %5 {offsets = [1, 0, 0], sizes = [16, 16, 8], strides = [1, 1, 1]} : vector<18x18x8xbf16> to vector<16x16x8xbf16>
    %13 = vector.shape_cast %12 : vector<16x16x8xbf16> to vector<256x8xbf16>
    %14 = vector.extract_strided_slice %5 {offsets = [1, 1, 0], sizes = [16, 16, 8], strides = [1, 1, 1]} : vector<18x18x8xbf16> to vector<16x16x8xbf16>
    %15 = vector.shape_cast %14 : vector<16x16x8xbf16> to vector<256x8xbf16>
    %16 = vector.extract_strided_slice %5 {offsets = [1, 2, 0], sizes = [16, 16, 8], strides = [1, 1, 1]} : vector<18x18x8xbf16> to vector<16x16x8xbf16>
    %17 = vector.shape_cast %16 : vector<16x16x8xbf16> to vector<256x8xbf16>
    %18 = vector.extract_strided_slice %5 {offsets = [2, 0, 0], sizes = [16, 16, 8], strides = [1, 1, 1]} : vector<18x18x8xbf16> to vector<16x16x8xbf16>
    %19 = vector.shape_cast %18 : vector<16x16x8xbf16> to vector<256x8xbf16>
    %20 = vector.extract_strided_slice %5 {offsets = [2, 1, 0], sizes = [16, 16, 8], strides = [1, 1, 1]} : vector<18x18x8xbf16> to vector<16x16x8xbf16>
    %21 = vector.shape_cast %20 : vector<16x16x8xbf16> to vector<256x8xbf16>
    %22 = vector.extract_strided_slice %5 {offsets = [2, 2, 0], sizes = [16, 16, 8], strides = [1, 1, 1]} : vector<18x18x8xbf16> to vector<16x16x8xbf16>
    %23 = vector.shape_cast %22 : vector<16x16x8xbf16> to vector<256x8xbf16>
    %24 = tpu.concatenate %7, %9, %11, %13, %15, %17, %19, %21, %23 in 1 : vector<256x8xbf16>, vector<256x8xbf16>, vector<256x8xbf16>, vector<256x8xbf16>, vector<256x8xbf16>, vector<256x8xbf16>, vector<256x8xbf16>, vector<256x8xbf16>, vector<256x8xbf16> -> vector<256x72xbf16>
    %c0_4 = arith.constant 0 : index
    %c0_5 = arith.constant 0 : index
    %25 = vector.load %arg2[%c0_4, %c0_5] : memref<72x8xbf16, #tpu.memory_space<vmem>>, vector<72x8xbf16>
    %cst_6 = arith.constant dense<0.000000e+00> : vector<256x8xf32>
    %26 = tpu.matmul %24, %25, %cst_6 {dimension_numbers = #tpu.dot_dimension_numbers<[1], [0], [0], [1], [0, 0, 1, 1], [], []>} : vector<256x72xbf16>, vector<72x8xbf16>, vector<256x8xf32> -> vector<256x8xf32>
    %c0_7 = arith.constant 0 : index
    %c0_8 = arith.constant 0 : index
    %27 = vector.load %arg3[%c0_7, %c0_8] : memref<1x8xf32, #tpu.memory_space<vmem>>, vector<1x8xf32>
    %28 = vector.broadcast %27 : vector<1x8xf32> to vector<256x8xf32>
    %29 = arith.mulf %26, %28 : vector<256x8xf32>
    %c0_9 = arith.constant 0 : index
    %c0_10 = arith.constant 0 : index
    %30 = vector.load %arg4[%c0_9, %c0_10] : memref<1x8xf32, #tpu.memory_space<vmem>>, vector<1x8xf32>
    %31 = vector.broadcast %30 : vector<1x8xf32> to vector<256x8xf32>
    %32 = arith.addf %29, %31 : vector<256x8xf32>
    %cst_11 = arith.constant 0.000000e+00 : f32
    %33 = vector.broadcast %cst_11 : f32 to vector<256x8xf32>
    %34 = arith.maximumf %32, %33 : vector<256x8xf32>
    %35 = vector.shape_cast %34 : vector<256x8xf32> to vector<8x2x16x8xf32>
    %36 = vector.extract_strided_slice %35 {offsets = [0, 0, 0, 0], sizes = [8, 1, 16, 8], strides = [1, 1, 1, 1]} : vector<8x2x16x8xf32> to vector<8x1x16x8xf32>
    %37 = vector.shape_cast %36 : vector<8x1x16x8xf32> to vector<8x16x8xf32>
    %38 = vector.extract_strided_slice %35 {offsets = [0, 1, 0, 0], sizes = [8, 1, 16, 8], strides = [1, 1, 1, 1]} : vector<8x2x16x8xf32> to vector<8x1x16x8xf32>
    %39 = vector.shape_cast %38 : vector<8x1x16x8xf32> to vector<8x16x8xf32>
    %40 = arith.maximumf %37, %39 : vector<8x16x8xf32>
    %41 = vector.shape_cast %40 : vector<8x16x8xf32> to vector<8x8x2x8xf32>
    %42 = vector.extract_strided_slice %41 {offsets = [0, 0, 0, 0], sizes = [8, 8, 1, 8], strides = [1, 1, 1, 1]} : vector<8x8x2x8xf32> to vector<8x8x1x8xf32>
    %43 = vector.shape_cast %42 : vector<8x8x1x8xf32> to vector<8x8x8xf32>
    %44 = vector.extract_strided_slice %41 {offsets = [0, 0, 1, 0], sizes = [8, 8, 1, 8], strides = [1, 1, 1, 1]} : vector<8x8x2x8xf32> to vector<8x8x1x8xf32>
    %45 = vector.shape_cast %44 : vector<8x8x1x8xf32> to vector<8x8x8xf32>
    %46 = arith.maximumf %43, %45 : vector<8x8x8xf32>
    %47 = arith.truncf %46 : vector<8x8x8xf32> to vector<8x8x8xbf16>
    %c0_12 = arith.constant 0 : index
    %c0_13 = arith.constant 0 : index
    %c0_14 = arith.constant 0 : index
    %c0_15 = arith.constant 0 : index
    %48 = vector.load %arg5[%c0_12, %c0_13, %c0_14, %c0_15] : memref<1x8x8x8xbf16, #tpu.memory_space<vmem>>, vector<1x8x8x8xbf16>
    %49 = vector.shape_cast %48 : vector<1x8x8x8xbf16> to vector<8x8x8xbf16>
    %50 = vector.shape_cast %47 : vector<8x8x8xbf16> to vector<1x8x8x8xbf16>
    tpu.vector_store %arg5[%c0_12, %c0_13, %c0_14, %c0_15], %50 {strides = array<i32>} : memref<1x8x8x8xbf16, #tpu.memory_space<vmem>>, vector<1x8x8x8xbf16>,
    return
  }
  func.func @transform_0(%arg0: i32) -> (i32, i32, i32, i32) {
    %c0_i32 = arith.constant 0 : i32
    %c0_i32_0 = arith.constant 0 : i32
    %c0_i32_1 = arith.constant 0 : i32
    %c0_i32_2 = arith.constant 0 : i32
    return %arg0, %c0_i32, %c0_i32_0, %c0_i32_1 : i32, i32, i32, i32
  }
  func.func @transform_1(%arg0: i32) -> (i32, i32) {
    %c0_i32 = arith.constant 0 : i32
    %c0_i32_0 = arith.constant 0 : i32
    %c0_i32_1 = arith.constant 0 : i32
    return %c0_i32, %c0_i32_0 : i32, i32
  }
  func.func @transform_2(%arg0: i32) -> (i32, i32) {
    %c0_i32 = arith.constant 0 : i32
    %c0_i32_0 = arith.constant 0 : i32
    %c0_i32_1 = arith.constant 0 : i32
    return %c0_i32, %c0_i32_0 : i32, i32
  }
  func.func @transform_3(%arg0: i32) -> (i32, i32) {
    %c0_i32 = arith.constant 0 : i32
    %c0_i32_0 = arith.constant 0 : i32
    %c0_i32_1 = arith.constant 0 : i32
    return %c0_i32, %c0_i32_0 : i32, i32
  }
  func.func @transform_4(%arg0: i32) -> (i32, i32, i32, i32) {
    %c0_i32 = arith.constant 0 : i32
    %c0_i32_0 = arith.constant 0 : i32
    %c0_i32_1 = arith.constant 0 : i32
    %c0_i32_2 = arith.constant 0 : i32
    return %arg0, %c0_i32, %c0_i32_0, %c0_i32_1 : i32, i32, i32, i32
  }
}

module attributes {stable_mosaic.version = 11 : i64} {
  func.func @_conv_bn_relu_pool_kernel(%arg0: i32, %arg1: memref<1x8x8x8xbf16, #tpu.memory_space<vmem>>, %arg2: memref<72x16xbf16, #tpu.memory_space<vmem>>, %arg3: memref<1x16xf32, #tpu.memory_space<vmem>>, %arg4: memref<1x16xf32, #tpu.memory_space<vmem>>, %arg5: memref<1x4x4x16xbf16, #tpu.memory_space<vmem>>) attributes {dimension_semantics = [#tpu.dimension_semantics<parallel>], iteration_bounds = array<i64: 2>, scalar_prefetch = 0 : i64, scratch_operands = 0 : i64, tpu.core_type = #tpu.core_type<tc>, window_params = [{transform_indices = @transform_0, window_bounds = array<i64: 1, 8, 8, 8>}, {pipeline_mode = #tpu.pipeline_mode<synchronous>, transform_indices = @transform_1, window_bounds = array<i64: 72, 16>}, {pipeline_mode = #tpu.pipeline_mode<synchronous>, transform_indices = @transform_2, window_bounds = array<i64: 1, 16>}, {pipeline_mode = #tpu.pipeline_mode<synchronous>, transform_indices = @transform_3, window_bounds = array<i64: 1, 16>}, {transform_indices = @transform_4, window_bounds = array<i64: 1, 4, 4, 16>}]} {
    %c0 = arith.constant 0 : index
    %c0_0 = arith.constant 0 : index
    %c0_1 = arith.constant 0 : index
    %c0_2 = arith.constant 0 : index
    %0 = vector.load %arg1[%c0, %c0_0, %c0_1, %c0_2] : memref<1x8x8x8xbf16, #tpu.memory_space<vmem>>, vector<1x8x8x8xbf16>
    %1 = vector.shape_cast %0 : vector<1x8x8x8xbf16> to vector<8x8x8xbf16>
    %cst = arith.constant 0.000000e+00 : bf16
    %2 = vector.broadcast %cst : bf16 to vector<1x8x8xbf16>
    %3 = tpu.concatenate %2, %1, %2 in 0 : vector<1x8x8xbf16>, vector<8x8x8xbf16>, vector<1x8x8xbf16> -> vector<10x8x8xbf16>
    %cst_3 = arith.constant 0.000000e+00 : bf16
    %4 = vector.broadcast %cst_3 : bf16 to vector<10x1x8xbf16>
    %5 = tpu.concatenate %4, %3, %4 in 1 : vector<10x1x8xbf16>, vector<10x8x8xbf16>, vector<10x1x8xbf16> -> vector<10x10x8xbf16>
    %6 = vector.extract_strided_slice %5 {offsets = [0, 0, 0], sizes = [8, 8, 8], strides = [1, 1, 1]} : vector<10x10x8xbf16> to vector<8x8x8xbf16>
    %7 = vector.shape_cast %6 : vector<8x8x8xbf16> to vector<64x8xbf16>
    %8 = vector.extract_strided_slice %5 {offsets = [0, 1, 0], sizes = [8, 8, 8], strides = [1, 1, 1]} : vector<10x10x8xbf16> to vector<8x8x8xbf16>
    %9 = vector.shape_cast %8 : vector<8x8x8xbf16> to vector<64x8xbf16>
    %10 = vector.extract_strided_slice %5 {offsets = [0, 2, 0], sizes = [8, 8, 8], strides = [1, 1, 1]} : vector<10x10x8xbf16> to vector<8x8x8xbf16>
    %11 = vector.shape_cast %10 : vector<8x8x8xbf16> to vector<64x8xbf16>
    %12 = vector.extract_strided_slice %5 {offsets = [1, 0, 0], sizes = [8, 8, 8], strides = [1, 1, 1]} : vector<10x10x8xbf16> to vector<8x8x8xbf16>
    %13 = vector.shape_cast %12 : vector<8x8x8xbf16> to vector<64x8xbf16>
    %14 = vector.extract_strided_slice %5 {offsets = [1, 1, 0], sizes = [8, 8, 8], strides = [1, 1, 1]} : vector<10x10x8xbf16> to vector<8x8x8xbf16>
    %15 = vector.shape_cast %14 : vector<8x8x8xbf16> to vector<64x8xbf16>
    %16 = vector.extract_strided_slice %5 {offsets = [1, 2, 0], sizes = [8, 8, 8], strides = [1, 1, 1]} : vector<10x10x8xbf16> to vector<8x8x8xbf16>
    %17 = vector.shape_cast %16 : vector<8x8x8xbf16> to vector<64x8xbf16>
    %18 = vector.extract_strided_slice %5 {offsets = [2, 0, 0], sizes = [8, 8, 8], strides = [1, 1, 1]} : vector<10x10x8xbf16> to vector<8x8x8xbf16>
    %19 = vector.shape_cast %18 : vector<8x8x8xbf16> to vector<64x8xbf16>
    %20 = vector.extract_strided_slice %5 {offsets = [2, 1, 0], sizes = [8, 8, 8], strides = [1, 1, 1]} : vector<10x10x8xbf16> to vector<8x8x8xbf16>
    %21 = vector.shape_cast %20 : vector<8x8x8xbf16> to vector<64x8xbf16>
    %22 = vector.extract_strided_slice %5 {offsets = [2, 2, 0], sizes = [8, 8, 8], strides = [1, 1, 1]} : vector<10x10x8xbf16> to vector<8x8x8xbf16>
    %23 = vector.shape_cast %22 : vector<8x8x8xbf16> to vector<64x8xbf16>
    %24 = tpu.concatenate %7, %9, %11, %13, %15, %17, %19, %21, %23 in 1 : vector<64x8xbf16>, vector<64x8xbf16>, vector<64x8xbf16>, vector<64x8xbf16>, vector<64x8xbf16>, vector<64x8xbf16>, vector<64x8xbf16>, vector<64x8xbf16>, vector<64x8xbf16> -> vector<64x72xbf16>
    %c0_4 = arith.constant 0 : index
    %c0_5 = arith.constant 0 : index
    %25 = vector.load %arg2[%c0_4, %c0_5] : memref<72x16xbf16, #tpu.memory_space<vmem>>, vector<72x16xbf16>
    %cst_6 = arith.constant dense<0.000000e+00> : vector<64x16xf32>
    %26 = tpu.matmul %24, %25, %cst_6 {dimension_numbers = #tpu.dot_dimension_numbers<[1], [0], [0], [1], [0, 0, 1, 1], [], []>} : vector<64x72xbf16>, vector<72x16xbf16>, vector<64x16xf32> -> vector<64x16xf32>
    %c0_7 = arith.constant 0 : index
    %c0_8 = arith.constant 0 : index
    %27 = vector.load %arg3[%c0_7, %c0_8] : memref<1x16xf32, #tpu.memory_space<vmem>>, vector<1x16xf32>
    %28 = vector.broadcast %27 : vector<1x16xf32> to vector<64x16xf32>
    %29 = arith.mulf %26, %28 : vector<64x16xf32>
    %c0_9 = arith.constant 0 : index
    %c0_10 = arith.constant 0 : index
    %30 = vector.load %arg4[%c0_9, %c0_10] : memref<1x16xf32, #tpu.memory_space<vmem>>, vector<1x16xf32>
    %31 = vector.broadcast %30 : vector<1x16xf32> to vector<64x16xf32>
    %32 = arith.addf %29, %31 : vector<64x16xf32>
    %cst_11 = arith.constant 0.000000e+00 : f32
    %33 = vector.broadcast %cst_11 : f32 to vector<64x16xf32>
    %34 = arith.maximumf %32, %33 : vector<64x16xf32>
    %35 = vector.shape_cast %34 : vector<64x16xf32> to vector<4x2x8x16xf32>
    %36 = vector.extract_strided_slice %35 {offsets = [0, 0, 0, 0], sizes = [4, 1, 8, 16], strides = [1, 1, 1, 1]} : vector<4x2x8x16xf32> to vector<4x1x8x16xf32>
    %37 = vector.shape_cast %36 : vector<4x1x8x16xf32> to vector<4x8x16xf32>
    %38 = vector.extract_strided_slice %35 {offsets = [0, 1, 0, 0], sizes = [4, 1, 8, 16], strides = [1, 1, 1, 1]} : vector<4x2x8x16xf32> to vector<4x1x8x16xf32>
    %39 = vector.shape_cast %38 : vector<4x1x8x16xf32> to vector<4x8x16xf32>
    %40 = arith.maximumf %37, %39 : vector<4x8x16xf32>
    %41 = vector.shape_cast %40 : vector<4x8x16xf32> to vector<4x4x2x16xf32>
    %42 = vector.extract_strided_slice %41 {offsets = [0, 0, 0, 0], sizes = [4, 4, 1, 16], strides = [1, 1, 1, 1]} : vector<4x4x2x16xf32> to vector<4x4x1x16xf32>
    %43 = vector.shape_cast %42 : vector<4x4x1x16xf32> to vector<4x4x16xf32>
    %44 = vector.extract_strided_slice %41 {offsets = [0, 0, 1, 0], sizes = [4, 4, 1, 16], strides = [1, 1, 1, 1]} : vector<4x4x2x16xf32> to vector<4x4x1x16xf32>
    %45 = vector.shape_cast %44 : vector<4x4x1x16xf32> to vector<4x4x16xf32>
    %46 = arith.maximumf %43, %45 : vector<4x4x16xf32>
    %47 = arith.truncf %46 : vector<4x4x16xf32> to vector<4x4x16xbf16>
    %c0_12 = arith.constant 0 : index
    %c0_13 = arith.constant 0 : index
    %c0_14 = arith.constant 0 : index
    %c0_15 = arith.constant 0 : index
    %48 = vector.load %arg5[%c0_12, %c0_13, %c0_14, %c0_15] : memref<1x4x4x16xbf16, #tpu.memory_space<vmem>>, vector<1x4x4x16xbf16>
    %49 = vector.shape_cast %48 : vector<1x4x4x16xbf16> to vector<4x4x16xbf16>
    %50 = vector.shape_cast %47 : vector<4x4x16xbf16> to vector<1x4x4x16xbf16>
    tpu.vector_store %arg5[%c0_12, %c0_13, %c0_14, %c0_15], %50 {strides = array<i32>} : memref<1x4x4x16xbf16, #tpu.memory_space<vmem>>, vector<1x4x4x16xbf16>,
    return
  }
  func.func @transform_0(%arg0: i32) -> (i32, i32, i32, i32) {
    %c0_i32 = arith.constant 0 : i32
    %c0_i32_0 = arith.constant 0 : i32
    %c0_i32_1 = arith.constant 0 : i32
    %c0_i32_2 = arith.constant 0 : i32
    return %arg0, %c0_i32, %c0_i32_0, %c0_i32_1 : i32, i32, i32, i32
  }
  func.func @transform_1(%arg0: i32) -> (i32, i32) {
    %c0_i32 = arith.constant 0 : i32
    %c0_i32_0 = arith.constant 0 : i32
    %c0_i32_1 = arith.constant 0 : i32
    return %c0_i32, %c0_i32_0 : i32, i32
  }
  func.func @transform_2(%arg0: i32) -> (i32, i32) {
    %c0_i32 = arith.constant 0 : i32
    %c0_i32_0 = arith.constant 0 : i32
    %c0_i32_1 = arith.constant 0 : i32
    return %c0_i32, %c0_i32_0 : i32, i32
  }
  func.func @transform_3(%arg0: i32) -> (i32, i32) {
    %c0_i32 = arith.constant 0 : i32
    %c0_i32_0 = arith.constant 0 : i32
    %c0_i32_1 = arith.constant 0 : i32
    return %c0_i32, %c0_i32_0 : i32, i32
  }
  func.func @transform_4(%arg0: i32) -> (i32, i32, i32, i32) {
    %c0_i32 = arith.constant 0 : i32
    %c0_i32_0 = arith.constant 0 : i32
    %c0_i32_1 = arith.constant 0 : i32
    %c0_i32_2 = arith.constant 0 : i32
    return %arg0, %c0_i32, %c0_i32_0, %c0_i32_1 : i32, i32, i32, i32
  }
}

module attributes {stable_mosaic.version = 11 : i64} {
  func.func @_conv_bn_relu_pool_kernel(%arg0: i32, %arg1: memref<1x2x2x32xbf16, #tpu.memory_space<vmem>>, %arg2: memref<288x32xbf16, #tpu.memory_space<vmem>>, %arg3: memref<1x32xf32, #tpu.memory_space<vmem>>, %arg4: memref<1x32xf32, #tpu.memory_space<vmem>>, %arg5: memref<1x1x1x32xbf16, #tpu.memory_space<vmem>>) attributes {dimension_semantics = [#tpu.dimension_semantics<parallel>], iteration_bounds = array<i64: 2>, scalar_prefetch = 0 : i64, scratch_operands = 0 : i64, tpu.core_type = #tpu.core_type<tc>, window_params = [{transform_indices = @transform_0, window_bounds = array<i64: 1, 2, 2, 32>}, {pipeline_mode = #tpu.pipeline_mode<synchronous>, transform_indices = @transform_1, window_bounds = array<i64: 288, 32>}, {pipeline_mode = #tpu.pipeline_mode<synchronous>, transform_indices = @transform_2, window_bounds = array<i64: 1, 32>}, {pipeline_mode = #tpu.pipeline_mode<synchronous>, transform_indices = @transform_3, window_bounds = array<i64: 1, 32>}, {transform_indices = @transform_4, window_bounds = array<i64: 1, 1, 1, 32>}]} {
    %c0 = arith.constant 0 : index
    %c0_0 = arith.constant 0 : index
    %c0_1 = arith.constant 0 : index
    %c0_2 = arith.constant 0 : index
    %0 = vector.load %arg1[%c0, %c0_0, %c0_1, %c0_2] : memref<1x2x2x32xbf16, #tpu.memory_space<vmem>>, vector<1x2x2x32xbf16>
    %1 = vector.shape_cast %0 : vector<1x2x2x32xbf16> to vector<2x2x32xbf16>
    %cst = arith.constant 0.000000e+00 : bf16
    %2 = vector.broadcast %cst : bf16 to vector<1x2x32xbf16>
    %3 = tpu.concatenate %2, %1, %2 in 0 : vector<1x2x32xbf16>, vector<2x2x32xbf16>, vector<1x2x32xbf16> -> vector<4x2x32xbf16>
    %cst_3 = arith.constant 0.000000e+00 : bf16
    %4 = vector.broadcast %cst_3 : bf16 to vector<4x1x32xbf16>
    %5 = tpu.concatenate %4, %3, %4 in 1 : vector<4x1x32xbf16>, vector<4x2x32xbf16>, vector<4x1x32xbf16> -> vector<4x4x32xbf16>
    %6 = vector.extract_strided_slice %5 {offsets = [0, 0, 0], sizes = [2, 2, 32], strides = [1, 1, 1]} : vector<4x4x32xbf16> to vector<2x2x32xbf16>
    %7 = vector.shape_cast %6 : vector<2x2x32xbf16> to vector<4x32xbf16>
    %8 = vector.extract_strided_slice %5 {offsets = [0, 1, 0], sizes = [2, 2, 32], strides = [1, 1, 1]} : vector<4x4x32xbf16> to vector<2x2x32xbf16>
    %9 = vector.shape_cast %8 : vector<2x2x32xbf16> to vector<4x32xbf16>
    %10 = vector.extract_strided_slice %5 {offsets = [0, 2, 0], sizes = [2, 2, 32], strides = [1, 1, 1]} : vector<4x4x32xbf16> to vector<2x2x32xbf16>
    %11 = vector.shape_cast %10 : vector<2x2x32xbf16> to vector<4x32xbf16>
    %12 = vector.extract_strided_slice %5 {offsets = [1, 0, 0], sizes = [2, 2, 32], strides = [1, 1, 1]} : vector<4x4x32xbf16> to vector<2x2x32xbf16>
    %13 = vector.shape_cast %12 : vector<2x2x32xbf16> to vector<4x32xbf16>
    %14 = vector.extract_strided_slice %5 {offsets = [1, 1, 0], sizes = [2, 2, 32], strides = [1, 1, 1]} : vector<4x4x32xbf16> to vector<2x2x32xbf16>
    %15 = vector.shape_cast %14 : vector<2x2x32xbf16> to vector<4x32xbf16>
    %16 = vector.extract_strided_slice %5 {offsets = [1, 2, 0], sizes = [2, 2, 32], strides = [1, 1, 1]} : vector<4x4x32xbf16> to vector<2x2x32xbf16>
    %17 = vector.shape_cast %16 : vector<2x2x32xbf16> to vector<4x32xbf16>
    %18 = vector.extract_strided_slice %5 {offsets = [2, 0, 0], sizes = [2, 2, 32], strides = [1, 1, 1]} : vector<4x4x32xbf16> to vector<2x2x32xbf16>
    %19 = vector.shape_cast %18 : vector<2x2x32xbf16> to vector<4x32xbf16>
    %20 = vector.extract_strided_slice %5 {offsets = [2, 1, 0], sizes = [2, 2, 32], strides = [1, 1, 1]} : vector<4x4x32xbf16> to vector<2x2x32xbf16>
    %21 = vector.shape_cast %20 : vector<2x2x32xbf16> to vector<4x32xbf16>
    %22 = vector.extract_strided_slice %5 {offsets = [2, 2, 0], sizes = [2, 2, 32], strides = [1, 1, 1]} : vector<4x4x32xbf16> to vector<2x2x32xbf16>
    %23 = vector.shape_cast %22 : vector<2x2x32xbf16> to vector<4x32xbf16>
    %24 = tpu.concatenate %7, %9, %11, %13, %15, %17, %19, %21, %23 in 1 : vector<4x32xbf16>, vector<4x32xbf16>, vector<4x32xbf16>, vector<4x32xbf16>, vector<4x32xbf16>, vector<4x32xbf16>, vector<4x32xbf16>, vector<4x32xbf16>, vector<4x32xbf16> -> vector<4x288xbf16>
    %c0_4 = arith.constant 0 : index
    %c0_5 = arith.constant 0 : index
    %25 = vector.load %arg2[%c0_4, %c0_5] : memref<288x32xbf16, #tpu.memory_space<vmem>>, vector<288x32xbf16>
    %cst_6 = arith.constant dense<0.000000e+00> : vector<4x32xf32>
    %26 = tpu.matmul %24, %25, %cst_6 {dimension_numbers = #tpu.dot_dimension_numbers<[1], [0], [0], [1], [0, 0, 1, 1], [], []>} : vector<4x288xbf16>, vector<288x32xbf16>, vector<4x32xf32> -> vector<4x32xf32>
    %c0_7 = arith.constant 0 : index
    %c0_8 = arith.constant 0 : index
    %27 = vector.load %arg3[%c0_7, %c0_8] : memref<1x32xf32, #tpu.memory_space<vmem>>, vector<1x32xf32>
    %28 = vector.broadcast %27 : vector<1x32xf32> to vector<4x32xf32>
    %29 = arith.mulf %26, %28 : vector<4x32xf32>
    %c0_9 = arith.constant 0 : index
    %c0_10 = arith.constant 0 : index
    %30 = vector.load %arg4[%c0_9, %c0_10] : memref<1x32xf32, #tpu.memory_space<vmem>>, vector<1x32xf32>
    %31 = vector.broadcast %30 : vector<1x32xf32> to vector<4x32xf32>
    %32 = arith.addf %29, %31 : vector<4x32xf32>
    %cst_11 = arith.constant 0.000000e+00 : f32
    %33 = vector.broadcast %cst_11 : f32 to vector<4x32xf32>
    %34 = arith.maximumf %32, %33 : vector<4x32xf32>
    %35 = vector.shape_cast %34 : vector<4x32xf32> to vector<1x2x2x32xf32>
    %36 = vector.extract_strided_slice %35 {offsets = [0, 0, 0, 0], sizes = [1, 1, 2, 32], strides = [1, 1, 1, 1]} : vector<1x2x2x32xf32> to vector<1x1x2x32xf32>
    %37 = vector.shape_cast %36 : vector<1x1x2x32xf32> to vector<1x2x32xf32>
    %38 = vector.extract_strided_slice %35 {offsets = [0, 1, 0, 0], sizes = [1, 1, 2, 32], strides = [1, 1, 1, 1]} : vector<1x2x2x32xf32> to vector<1x1x2x32xf32>
    %39 = vector.shape_cast %38 : vector<1x1x2x32xf32> to vector<1x2x32xf32>
    %40 = arith.addf %37, %39 : vector<1x2x32xf32>
    %41 = vector.shape_cast %40 : vector<1x2x32xf32> to vector<1x1x2x32xf32>
    %42 = vector.extract_strided_slice %41 {offsets = [0, 0, 0, 0], sizes = [1, 1, 1, 32], strides = [1, 1, 1, 1]} : vector<1x1x2x32xf32> to vector<1x1x1x32xf32>
    %43 = vector.shape_cast %42 : vector<1x1x1x32xf32> to vector<1x1x32xf32>
    %44 = vector.extract_strided_slice %41 {offsets = [0, 0, 1, 0], sizes = [1, 1, 1, 32], strides = [1, 1, 1, 1]} : vector<1x1x2x32xf32> to vector<1x1x1x32xf32>
    %45 = vector.shape_cast %44 : vector<1x1x1x32xf32> to vector<1x1x32xf32>
    %46 = arith.addf %43, %45 : vector<1x1x32xf32>
    %cst_12 = arith.constant 2.500000e-01 : f32
    %47 = vector.broadcast %cst_12 : f32 to vector<1x1x32xf32>
    %48 = arith.mulf %46, %47 : vector<1x1x32xf32>
    %49 = arith.truncf %48 : vector<1x1x32xf32> to vector<1x1x32xbf16>
    %c0_13 = arith.constant 0 : index
    %c0_14 = arith.constant 0 : index
    %c0_15 = arith.constant 0 : index
    %c0_16 = arith.constant 0 : index
    %50 = vector.load %arg5[%c0_13, %c0_14, %c0_15, %c0_16] : memref<1x1x1x32xbf16, #tpu.memory_space<vmem>>, vector<1x1x1x32xbf16>
    %51 = vector.shape_cast %50 : vector<1x1x1x32xbf16> to vector<1x1x32xbf16>
    %52 = vector.shape_cast %49 : vector<1x1x32xbf16> to vector<1x1x1x32xbf16>
    tpu.vector_store %arg5[%c0_13, %c0_14, %c0_15, %c0_16], %52 {strides = array<i32>} : memref<1x1x1x32xbf16, #tpu.memory_space<vmem>>, vector<1x1x1x32xbf16>,
    return
  }
  func.func @transform_0(%arg0: i32) -> (i32, i32, i32, i32) {
    %c0_i32 = arith.constant 0 : i32
    %c0_i32_0 = arith.constant 0 : i32
    %c0_i32_1 = arith.constant 0 : i32
    %c0_i32_2 = arith.constant 0 : i32
    return %arg0, %c0_i32, %c0_i32_0, %c0_i32_1 : i32, i32, i32, i32
  }
  func.func @transform_1(%arg0: i32) -> (i32, i32) {
    %c0_i32 = arith.constant 0 : i32
    %c0_i32_0 = arith.constant 0 : i32
    %c0_i32_1 = arith.constant 0 : i32
    return %c0_i32, %c0_i32_0 : i32, i32
  }
  func.func @transform_2(%arg0: i32) -> (i32, i32) {
    %c0_i32 = arith.constant 0 : i32
    %c0_i32_0 = arith.constant 0 : i32
    %c0_i32_1 = arith.constant 0 : i32
    return %c0_i32, %c0_i32_0 : i32, i32
  }
  func.func @transform_3(%arg0: i32) -> (i32, i32) {
    %c0_i32 = arith.constant 0 : i32
    %c0_i32_0 = arith.constant 0 : i32
    %c0_i32_1 = arith.constant 0 : i32
    return %c0_i32, %c0_i32_0 : i32, i32
  }
  func.func @transform_4(%arg0: i32) -> (i32, i32, i32, i32) {
    %c0_i32 = arith.constant 0 : i32
    %c0_i32_0 = arith.constant 0 : i32
    %c0_i32_1 = arith.constant 0 : i32
    %c0_i32_2 = arith.constant 0 : i32
    return %arg0, %c0_i32, %c0_i32_0, %c0_i32_1 : i32, i32, i32, i32
  }
}

module attributes {stable_mosaic.version = 11 : i64} {
  func.func @_conv_bn_relu_pool_kernel(%arg0: i32, %arg1: memref<1x4x4x16xbf16, #tpu.memory_space<vmem>>, %arg2: memref<144x32xbf16, #tpu.memory_space<vmem>>, %arg3: memref<1x32xf32, #tpu.memory_space<vmem>>, %arg4: memref<1x32xf32, #tpu.memory_space<vmem>>, %arg5: memref<1x2x2x32xbf16, #tpu.memory_space<vmem>>) attributes {dimension_semantics = [#tpu.dimension_semantics<parallel>], iteration_bounds = array<i64: 2>, scalar_prefetch = 0 : i64, scratch_operands = 0 : i64, tpu.core_type = #tpu.core_type<tc>, window_params = [{transform_indices = @transform_0, window_bounds = array<i64: 1, 4, 4, 16>}, {pipeline_mode = #tpu.pipeline_mode<synchronous>, transform_indices = @transform_1, window_bounds = array<i64: 144, 32>}, {pipeline_mode = #tpu.pipeline_mode<synchronous>, transform_indices = @transform_2, window_bounds = array<i64: 1, 32>}, {pipeline_mode = #tpu.pipeline_mode<synchronous>, transform_indices = @transform_3, window_bounds = array<i64: 1, 32>}, {transform_indices = @transform_4, window_bounds = array<i64: 1, 2, 2, 32>}]} {
    %c0 = arith.constant 0 : index
    %c0_0 = arith.constant 0 : index
    %c0_1 = arith.constant 0 : index
    %c0_2 = arith.constant 0 : index
    %0 = vector.load %arg1[%c0, %c0_0, %c0_1, %c0_2] : memref<1x4x4x16xbf16, #tpu.memory_space<vmem>>, vector<1x4x4x16xbf16>
    %1 = vector.shape_cast %0 : vector<1x4x4x16xbf16> to vector<4x4x16xbf16>
    %cst = arith.constant 0.000000e+00 : bf16
    %2 = vector.broadcast %cst : bf16 to vector<1x4x16xbf16>
    %3 = tpu.concatenate %2, %1, %2 in 0 : vector<1x4x16xbf16>, vector<4x4x16xbf16>, vector<1x4x16xbf16> -> vector<6x4x16xbf16>
    %cst_3 = arith.constant 0.000000e+00 : bf16
    %4 = vector.broadcast %cst_3 : bf16 to vector<6x1x16xbf16>
    %5 = tpu.concatenate %4, %3, %4 in 1 : vector<6x1x16xbf16>, vector<6x4x16xbf16>, vector<6x1x16xbf16> -> vector<6x6x16xbf16>
    %6 = vector.extract_strided_slice %5 {offsets = [0, 0, 0], sizes = [4, 4, 16], strides = [1, 1, 1]} : vector<6x6x16xbf16> to vector<4x4x16xbf16>
    %7 = vector.shape_cast %6 : vector<4x4x16xbf16> to vector<16x16xbf16>
    %8 = vector.extract_strided_slice %5 {offsets = [0, 1, 0], sizes = [4, 4, 16], strides = [1, 1, 1]} : vector<6x6x16xbf16> to vector<4x4x16xbf16>
    %9 = vector.shape_cast %8 : vector<4x4x16xbf16> to vector<16x16xbf16>
    %10 = vector.extract_strided_slice %5 {offsets = [0, 2, 0], sizes = [4, 4, 16], strides = [1, 1, 1]} : vector<6x6x16xbf16> to vector<4x4x16xbf16>
    %11 = vector.shape_cast %10 : vector<4x4x16xbf16> to vector<16x16xbf16>
    %12 = vector.extract_strided_slice %5 {offsets = [1, 0, 0], sizes = [4, 4, 16], strides = [1, 1, 1]} : vector<6x6x16xbf16> to vector<4x4x16xbf16>
    %13 = vector.shape_cast %12 : vector<4x4x16xbf16> to vector<16x16xbf16>
    %14 = vector.extract_strided_slice %5 {offsets = [1, 1, 0], sizes = [4, 4, 16], strides = [1, 1, 1]} : vector<6x6x16xbf16> to vector<4x4x16xbf16>
    %15 = vector.shape_cast %14 : vector<4x4x16xbf16> to vector<16x16xbf16>
    %16 = vector.extract_strided_slice %5 {offsets = [1, 2, 0], sizes = [4, 4, 16], strides = [1, 1, 1]} : vector<6x6x16xbf16> to vector<4x4x16xbf16>
    %17 = vector.shape_cast %16 : vector<4x4x16xbf16> to vector<16x16xbf16>
    %18 = vector.extract_strided_slice %5 {offsets = [2, 0, 0], sizes = [4, 4, 16], strides = [1, 1, 1]} : vector<6x6x16xbf16> to vector<4x4x16xbf16>
    %19 = vector.shape_cast %18 : vector<4x4x16xbf16> to vector<16x16xbf16>
    %20 = vector.extract_strided_slice %5 {offsets = [2, 1, 0], sizes = [4, 4, 16], strides = [1, 1, 1]} : vector<6x6x16xbf16> to vector<4x4x16xbf16>
    %21 = vector.shape_cast %20 : vector<4x4x16xbf16> to vector<16x16xbf16>
    %22 = vector.extract_strided_slice %5 {offsets = [2, 2, 0], sizes = [4, 4, 16], strides = [1, 1, 1]} : vector<6x6x16xbf16> to vector<4x4x16xbf16>
    %23 = vector.shape_cast %22 : vector<4x4x16xbf16> to vector<16x16xbf16>
    %24 = tpu.concatenate %7, %9, %11, %13, %15, %17, %19, %21, %23 in 1 : vector<16x16xbf16>, vector<16x16xbf16>, vector<16x16xbf16>, vector<16x16xbf16>, vector<16x16xbf16>, vector<16x16xbf16>, vector<16x16xbf16>, vector<16x16xbf16>, vector<16x16xbf16> -> vector<16x144xbf16>
    %c0_4 = arith.constant 0 : index
    %c0_5 = arith.constant 0 : index
    %25 = vector.load %arg2[%c0_4, %c0_5] : memref<144x32xbf16, #tpu.memory_space<vmem>>, vector<144x32xbf16>
    %cst_6 = arith.constant dense<0.000000e+00> : vector<16x32xf32>
    %26 = tpu.matmul %24, %25, %cst_6 {dimension_numbers = #tpu.dot_dimension_numbers<[1], [0], [0], [1], [0, 0, 1, 1], [], []>} : vector<16x144xbf16>, vector<144x32xbf16>, vector<16x32xf32> -> vector<16x32xf32>
    %c0_7 = arith.constant 0 : index
    %c0_8 = arith.constant 0 : index
    %27 = vector.load %arg3[%c0_7, %c0_8] : memref<1x32xf32, #tpu.memory_space<vmem>>, vector<1x32xf32>
    %28 = vector.broadcast %27 : vector<1x32xf32> to vector<16x32xf32>
    %29 = arith.mulf %26, %28 : vector<16x32xf32>
    %c0_9 = arith.constant 0 : index
    %c0_10 = arith.constant 0 : index
    %30 = vector.load %arg4[%c0_9, %c0_10] : memref<1x32xf32, #tpu.memory_space<vmem>>, vector<1x32xf32>
    %31 = vector.broadcast %30 : vector<1x32xf32> to vector<16x32xf32>
    %32 = arith.addf %29, %31 : vector<16x32xf32>
    %cst_11 = arith.constant 0.000000e+00 : f32
    %33 = vector.broadcast %cst_11 : f32 to vector<16x32xf32>
    %34 = arith.maximumf %32, %33 : vector<16x32xf32>
    %35 = vector.shape_cast %34 : vector<16x32xf32> to vector<2x2x4x32xf32>
    %36 = vector.extract_strided_slice %35 {offsets = [0, 0, 0, 0], sizes = [2, 1, 4, 32], strides = [1, 1, 1, 1]} : vector<2x2x4x32xf32> to vector<2x1x4x32xf32>
    %37 = vector.shape_cast %36 : vector<2x1x4x32xf32> to vector<2x4x32xf32>
    %38 = vector.extract_strided_slice %35 {offsets = [0, 1, 0, 0], sizes = [2, 1, 4, 32], strides = [1, 1, 1, 1]} : vector<2x2x4x32xf32> to vector<2x1x4x32xf32>
    %39 = vector.shape_cast %38 : vector<2x1x4x32xf32> to vector<2x4x32xf32>
    %40 = arith.maximumf %37, %39 : vector<2x4x32xf32>
    %41 = vector.shape_cast %40 : vector<2x4x32xf32> to vector<2x2x2x32xf32>
    %42 = vector.extract_strided_slice %41 {offsets = [0, 0, 0, 0], sizes = [2, 2, 1, 32], strides = [1, 1, 1, 1]} : vector<2x2x2x32xf32> to vector<2x2x1x32xf32>
    %43 = vector.shape_cast %42 : vector<2x2x1x32xf32> to vector<2x2x32xf32>
    %44 = vector.extract_strided_slice %41 {offsets = [0, 0, 1, 0], sizes = [2, 2, 1, 32], strides = [1, 1, 1, 1]} : vector<2x2x2x32xf32> to vector<2x2x1x32xf32>
    %45 = vector.shape_cast %44 : vector<2x2x1x32xf32> to vector<2x2x32xf32>
    %46 = arith.maximumf %43, %45 : vector<2x2x32xf32>
    %47 = arith.truncf %46 : vector<2x2x32xf32> to vector<2x2x32xbf16>
    %c0_12 = arith.constant 0 : index
    %c0_13 = arith.constant 0 : index
    %c0_14 = arith.constant 0 : index
    %c0_15 = arith.constant 0 : index
    %48 = vector.load %arg5[%c0_12, %c0_13, %c0_14, %c0_15] : memref<1x2x2x32xbf16, #tpu.memory_space<vmem>>, vector<1x2x2x32xbf16>
    %49 = vector.shape_cast %48 : vector<1x2x2x32xbf16> to vector<2x2x32xbf16>
    %50 = vector.shape_cast %47 : vector<2x2x32xbf16> to vector<1x2x2x32xbf16>
    tpu.vector_store %arg5[%c0_12, %c0_13, %c0_14, %c0_15], %50 {strides = array<i32>} : memref<1x2x2x32xbf16, #tpu.memory_space<vmem>>, vector<1x2x2x32xbf16>,
    return
  }
  func.func @transform_0(%arg0: i32) -> (i32, i32, i32, i32) {
    %c0_i32 = arith.constant 0 : i32
    %c0_i32_0 = arith.constant 0 : i32
    %c0_i32_1 = arith.constant 0 : i32
    %c0_i32_2 = arith.constant 0 : i32
    return %arg0, %c0_i32, %c0_i32_0, %c0_i32_1 : i32, i32, i32, i32
  }
  func.func @transform_1(%arg0: i32) -> (i32, i32) {
    %c0_i32 = arith.constant 0 : i32
    %c0_i32_0 = arith.constant 0 : i32
    %c0_i32_1 = arith.constant 0 : i32
    return %c0_i32, %c0_i32_0 : i32, i32
  }
  func.func @transform_2(%arg0: i32) -> (i32, i32) {
    %c0_i32 = arith.constant 0 : i32
    %c0_i32_0 = arith.constant 0 : i32
    %c0_i32_1 = arith.constant 0 : i32
    return %c0_i32, %c0_i32_0 : i32, i32
  }
  func.func @transform_3(%arg0: i32) -> (i32, i32) {
    %c0_i32 = arith.constant 0 : i32
    %c0_i32_0 = arith.constant 0 : i32
    %c0_i32_1 = arith.constant 0 : i32
    return %c0_i32, %c0_i32_0 : i32, i32
  }
  func.func @transform_4(%arg0: i32) -> (i32, i32, i32, i32) {
    %c0_i32 = arith.constant 0 : i32
    %c0_i32_0 = arith.constant 0 : i32
    %c0_i32_1 = arith.constant 0 : i32
    %c0_i32_2 = arith.constant 0 : i32
    return %arg0, %c0_i32, %c0_i32_0, %c0_i32_1 : i32, i32, i32, i32
  }
}

module attributes {stable_mosaic.version = 11 : i64} {
  func.func @_linear_logsoftmax_kernel(%arg0: i32, %arg1: memref<2x32xbf16, #tpu.memory_space<vmem>>, %arg2: memref<32x128xbf16, #tpu.memory_space<vmem>>, %arg3: memref<1x128xf32, #tpu.memory_space<vmem>>, %arg4: memref<2x128xf32, #tpu.memory_space<vmem>>) attributes {dimension_semantics = [#tpu.dimension_semantics<arbitrary>], iteration_bounds = array<i64: 1>, scalar_prefetch = 0 : i64, scratch_operands = 0 : i64, tpu.core_type = #tpu.core_type<tc>, window_params = [{pipeline_mode = #tpu.pipeline_mode<synchronous>, transform_indices = @transform_0, window_bounds = array<i64: 2, 32>}, {pipeline_mode = #tpu.pipeline_mode<synchronous>, transform_indices = @transform_1, window_bounds = array<i64: 32, 128>}, {pipeline_mode = #tpu.pipeline_mode<synchronous>, transform_indices = @transform_2, window_bounds = array<i64: 1, 128>}, {pipeline_mode = #tpu.pipeline_mode<synchronous>, transform_indices = @transform_3, window_bounds = array<i64: 2, 128>}]} {
    %c0 = arith.constant 0 : index
    %c0_0 = arith.constant 0 : index
    %0 = vector.load %arg1[%c0, %c0_0] : memref<2x32xbf16, #tpu.memory_space<vmem>>, vector<2x32xbf16>
    %c0_1 = arith.constant 0 : index
    %c0_2 = arith.constant 0 : index
    %1 = vector.load %arg2[%c0_1, %c0_2] : memref<32x128xbf16, #tpu.memory_space<vmem>>, vector<32x128xbf16>
    %cst = arith.constant dense<0.000000e+00> : vector<2x128xf32>
    %2 = tpu.matmul %0, %1, %cst {dimension_numbers = #tpu.dot_dimension_numbers<[1], [0], [0], [1], [0, 0, 1, 1], [], []>} : vector<2x32xbf16>, vector<32x128xbf16>, vector<2x128xf32> -> vector<2x128xf32>
    %c0_3 = arith.constant 0 : index
    %c0_4 = arith.constant 0 : index
    %3 = vector.load %arg3[%c0_3, %c0_4] : memref<1x128xf32, #tpu.memory_space<vmem>>, vector<1x128xf32>
    %4 = vector.broadcast %3 : vector<1x128xf32> to vector<2x128xf32>
    %5 = arith.addf %2, %4 : vector<2x128xf32>
    %cst_5 = arith.constant dense<0xFF800000> : vector<2xf32>
    %6 = vector.multi_reduction <maximumf>, %5, %cst_5 [1] : vector<2x128xf32> to vector<2xf32>
    %7 = vector.shape_cast %6 : vector<2xf32> to vector<2x1xf32>
    %8 = vector.broadcast %7 : vector<2x1xf32> to vector<2x128xf32>
    %9 = arith.subf %5, %8 : vector<2x128xf32>
    %10 = math.exp %9 : vector<2x128xf32>
    %cst_6 = arith.constant dense<0.000000e+00> : vector<2xf32>
    %11 = vector.multi_reduction <add>, %10, %cst_6 [1] : vector<2x128xf32> to vector<2xf32>
    %12 = vector.shape_cast %11 : vector<2xf32> to vector<2x1xf32>
    %13 = math.log %12 : vector<2x1xf32>
    %14 = vector.broadcast %13 : vector<2x1xf32> to vector<2x128xf32>
    %15 = arith.subf %9, %14 : vector<2x128xf32>
    %c0_7 = arith.constant 0 : index
    %c0_8 = arith.constant 0 : index
    %16 = vector.load %arg4[%c0_7, %c0_8] : memref<2x128xf32, #tpu.memory_space<vmem>>, vector<2x128xf32>
    tpu.vector_store %arg4[%c0_7, %c0_8], %15 {strides = array<i32>} : memref<2x128xf32, #tpu.memory_space<vmem>>, vector<2x128xf32>,
    return
  }
  func.func @transform_0(%arg0: i32) -> (i32, i32) {
    %c0_i32 = arith.constant 0 : i32
    %c0_i32_0 = arith.constant 0 : i32
    %c0_i32_1 = arith.constant 0 : i32
    return %c0_i32, %c0_i32_0 : i32, i32
  }
  func.func @transform_1(%arg0: i32) -> (i32, i32) {
    %c0_i32 = arith.constant 0 : i32
    %c0_i32_0 = arith.constant 0 : i32
    %c0_i32_1 = arith.constant 0 : i32
    return %c0_i32, %c0_i32_0 : i32, i32
  }
  func.func @transform_2(%arg0: i32) -> (i32, i32) {
    %c0_i32 = arith.constant 0 : i32
    %c0_i32_0 = arith.constant 0 : i32
    %c0_i32_1 = arith.constant 0 : i32
    return %c0_i32, %c0_i32_0 : i32, i32
  }
  func.func @transform_3(%arg0: i32) -> (i32, i32) {
    %c0_i32 = arith.constant 0 : i32
    %c0_i32_0 = arith.constant 0 : i32
    %c0_i32_1 = arith.constant 0 : i32
    return %c0_i32, %c0_i32_0 : i32, i32
  }
}

</mosaic_0001>

<llo_original>
// kernel: _lambda_.6
$region0: #{_lambda_.6}
  #allocation0 [shape = 'u32[]', space=smem, size = 0x4, offset = 0x4, fixed_abs, tag = 'smem constant byte address 0x4 - core index']
  #allocation1 [shape = 'u32[72,128]{1,0:T(1,128)}', space=vmem, size = 0x9000, scoped, tag = 'internal scratch']
  %s0 = inlined_call_operand.vmem [shape: bf16[2,8,8,8], index: 0, kind: input, shape index: {}]
  %s1 = inlined_call_operand.vmem [shape: bf16[72,16], index: 1, kind: input, shape index: {}]
  %s2 = inlined_call_operand.vmem [shape: f32[1,16], index: 2, kind: input, shape index: {}]
  %s3 = inlined_call_operand.vmem [shape: f32[1,16], index: 3, kind: input, shape index: {}]
  %s4 = inlined_call_operand.vmem [shape: bf16[2,4,4,16], index: 4, kind: output, shape index: {}]
  %s5 = sld [smem:[#allocation0]]
  $region49: #{_lambda_.6} parent=0
    _
  %s7 = ssub.s32 1, %s5
  %s8 = scalar_select 0, %s7, %s5
  loop: start=0, step=1, limit=4
  $region2: #{_lambda_.6} parent=0 // loop_pre_header
    _
  $region3: #{_lambda_.6} parent=0 // loop_header
    %s10 = sphi 0, %s14
    %p11 = scmp.ge.s32.totalorder %s10, 4
    %s20 = sphi 0, %s22
    %s23 = sphi 0, %s20
    %s24 = sphi 0, %s23
    %s40 = sphi 0, %s24
    %s44 = sphi 0, %s44
    %s46 = sphi 0, %s44
    %s47 = sphi 0, %s46
    %s61 = sphi 0, %s47
    %s65 = sphi 0, %s65
    %s67 = sphi 0, %s65
    %s68 = sphi 0, %s67
    %s82 = sphi 0, %s68
    %s86 = sphi 0, %s86
    %s88 = sphi 0, %s86
    %s89 = sphi 0, %s88
    %s103 = sphi 0, %s89
    %s109 = sphi 0, %s111
    %s112 = sphi 0, %s109
    %s113 = sphi 0, %s112
    %s129 = sphi 0, %s113
  $region4: #{_lambda_.6} parent=0 // loop_header_branch
    %13 = sbr.rel (%p11) target = $region8
  $region5: #{_lambda_.6} parent=0 // loop_body
    %s15 = ssub.s32 %s10, 1
    %s16 = ssub.s32 %s10, 2
    %s17 = sadd.s32 %s10, 1
    %s18 = ssub.s32 %s10, %s17
    %p19 = scmp.eq.s32.totalorder %s18, 0
    %s21 = sadd.s32 %s20, 1
    %s22 = scalar_select %p19, %s20, %s21
    %p25 = pneg %p19
    %p26 = scmp.eq.s32.totalorder %s10, 1
    %p27 = por %p25, %p26
    %p28 = scmp.ne.s32.totalorder %s20, %s23
    %p29 = scmp.eq.s32.totalorder %s10, 0
    %p30 = por %p28, %p29
    %p31 = scmp.ne.s32.totalorder %s20, %s23
    %p32 = scmp.eq.s32.totalorder %s15, 1
    %p33 = por %p31, %p32
    %p34 = scmp.ne.s32.totalorder %s23, %s24
    %p35 = scmp.eq.s32.totalorder %s15, 0
    %p36 = por %p34, %p35
    %p37 = scmp.ne.s32.totalorder %s23, %s24
    %p38 = scmp.eq.s32.totalorder %s16, 1
    %p39 = por %p37, %p38
    %p41 = scmp.ne.s32.totalorder %s24, %s40
    %p42 = scmp.eq.s32.totalorder %s16, 0
    %p43 = por %p41, %p42
    %s45 = sadd.s32 %s44, 1
    %p48 = scmp.eq.s32.totalorder %s10, 1
    %p49 = scmp.ne.s32.totalorder %s44, %s46
    %p50 = scmp.eq.s32.totalorder %s10, 0
    %p51 = por %p49, %p50
    %p52 = scmp.ne.s32.totalorder %s44, %s46
    %p53 = scmp.eq.s32.totalorder %s15, 1
    %p54 = por %p52, %p53
    %p55 = scmp.ne.s32.totalorder %s46, %s47
    %p56 = scmp.eq.s32.totalorder %s15, 0
    %p57 = por %p55, %p56
    %p58 = scmp.ne.s32.totalorder %s46, %s47
    %p59 = scmp.eq.s32.totalorder %s16, 1
    %p60 = por %p58, %p59
    %p62 = scmp.ne.s32.totalorder %s47, %s61
    %p63 = scmp.eq.s32.totalorder %s16, 0
    %p64 = por %p62, %p63
    %s66 = sadd.s32 %s65, 1
    %p69 = scmp.eq.s32.totalorder %s10, 1
    %p70 = scmp.ne.s32.totalorder %s65, %s67
    %p71 = scmp.eq.s32.totalorder %s10, 0
    %p72 = por %p70, %p71
    %p73 = scmp.ne.s32.totalorder %s65, %s67
    %p74 = scmp.eq.s32.totalorder %s15, 1
    %p75 = por %p73, %p74
    %p76 = scmp.ne.s32.totalorder %s67, %s68
    %p77 = scmp.eq.s32.totalorder %s15, 0
    %p78 = por %p76, %p77
    %p79 = scmp.ne.s32.totalorder %s67, %s68
    %p80 = scmp.eq.s32.totalorder %s16, 1
    %p81 = por %p79, %p80
    %p83 = scmp.ne.s32.totalorder %s68, %s82
    %p84 = scmp.eq.s32.totalorder %s16, 0
    %p85 = por %p83, %p84
    %s87 = sadd.s32 %s86, 1
    %p90 = scmp.eq.s32.totalorder %s10, 1
    %p91 = scmp.ne.s32.totalorder %s86, %s88
    %p92 = scmp.eq.s32.totalorder %s10, 0
    %p93 = por %p91, %p92
    %p94 = scmp.ne.s32.totalorder %s86, %s88
    %p95 = scmp.eq.s32.totalorder %s15, 1
    %p96 = por %p94, %p95
    %p97 = scmp.ne.s32.totalorder %s88, %s89
    %p98 = scmp.eq.s32.totalorder %s15, 0
    %p99 = por %p97, %p98
    %p100 = scmp.ne.s32.totalorder %s88, %s89
    %p101 = scmp.eq.s32.totalorder %s16, 1
    %p102 = por %p100, %p101
    %p104 = scmp.ne.s32.totalorder %s89, %s103
    %p105 = scmp.eq.s32.totalorder %s16, 0
    %p106 = por %p104, %p105
    %s107 = ssub.s32 %s10, %s17
    %p108 = scmp.eq.s32.totalorder %s107, 0
    %s110 = sadd.s32 %s109, 1
    %s111 = scalar_select %p108, %s109, %s110
    %p114 = pneg %p108
    %p115 = scmp.eq.s32.totalorder %s10, 1
    %p116 = por %p114, %p115
    %p117 = scmp.ne.s32.totalorder %s109, %s112
    %p118 = scmp.eq.s32.totalorder %s10, 0
    %p119 = por %p117, %p118
    %p120 = scmp.ne.s32.totalorder %s109, %s112
    %p121 = scmp.eq.s32.totalorder %s15, 1
    %p122 = por %p120, %p121
    %p123 = scmp.ne.s32.totalorder %s112, %s113
    %p124 = scmp.eq.s32.totalorder %s15, 0
    %p125 = por %p123, %p124
    %p126 = scmp.ne.s32.totalorder %s112, %s113
    %p127 = scmp.eq.s32.totalorder %s16, 1
    %p128 = por %p126, %p127
    %p130 = scmp.ne.s32.totalorder %s113, %s129
    %p131 = scmp.eq.s32.totalorder %s16, 0
    %p132 = por %p130, %p131
    %p133 = scmp.le.s32.totalorder 1, %s10
    %p134 = scmp.lt.s32.totalorder %s10, 3
    %p135 = pnand %p133, %p134
    %p136 = pneg %p135
    // Predicated region
    $region9: #{_lambda_.6} parent=5 // pred_check
      _
    $region10: #{_lambda_.6} parent=5 // pred_check_branch
      %138 = sbr.rel (%p135) target = $region12
    $region11: #{_lambda_.6} parent=5 // pred_region
      %s139 = ssub.s32 %s10, 1
      // Predicated region
      $region13: #{_lambda_.6} parent=11 // pred_check
        %p140 = pneg %p57
      $region14: #{_lambda_.6} parent=11 // pred_check_branch
        %142 = sbr.rel (%p140) target = $region16
      $region15: #{_lambda_.6} parent=11 // pred_region
        _
      $region16: #{_lambda_.6} parent=11 // pred_fallthru
        _
      // Predicated region
      $region17: #{_lambda_.6} parent=11 // pred_check
        %p143 = pneg %p78
      $region18: #{_lambda_.6} parent=11 // pred_check_branch
        %145 = sbr.rel (%p143) target = $region20
      $region19: #{_lambda_.6} parent=11 // pred_region
        _
      $region20: #{_lambda_.6} parent=11 // pred_fallthru
        _
      // Predicated region
      $region21: #{_lambda_.6} parent=11 // pred_check
        %p146 = pneg %p99
      $region22: #{_lambda_.6} parent=11 // pred_check_branch
        %148 = sbr.rel (%p146) target = $region24
      $region23: #{_lambda_.6} parent=11 // pred_region
        _
      $region24: #{_lambda_.6} parent=11 // pred_fallthru
        _
    $region12: #{_lambda_.6} parent=5 // pred_fallthru
      _
    %p149 = scmp.lt.s32.totalorder %s10, 2
    // Predicated region
    $region25: #{_lambda_.6} parent=5 // pred_check
      %p150 = pneg %p149
    $region26: #{_lambda_.6} parent=5 // pred_check_branch
      %152 = sbr.rel (%p150) target = $region28
    $region27: #{_lambda_.6} parent=5 // pred_region
      // Predicated region
      $region29: #{_lambda_.6} parent=27 // pred_check
        %p153 = pneg %p30
      $region30: #{_lambda_.6} parent=27 // pred_check_branch
        %155 = sbr.rel (%p153) target = $region32
      $region31: #{_lambda_.6} parent=27 // pred_region
        %p156 = scmp.lt.s32.totalorder %s10, 1
        %s157 = scalar_select %p156, %s10, 1
        %s158 = smul.addr %s157, 8
        %s159 = smul.addr %s158, 4
        %s160 = scalar_lea.vmem %s0, %s159
      $region32: #{_lambda_.6} parent=27 // pred_fallthru
        _
    $region28: #{_lambda_.6} parent=5 // pred_fallthru
      _
    %p161 = scmp.le.s32.totalorder 1, %s10
    %p162 = scmp.lt.s32.totalorder %s10, 3
    %p163 = pnand %p161, %p162
    %p164 = pneg %p163
    // Predicated region
    $region33: #{_lambda_.6} parent=5 // pred_check
      _
    $region34: #{_lambda_.6} parent=5 // pred_check_branch
      %166 = sbr.rel (%p163) target = $region36
    $region35: #{_lambda_.6} parent=5 // pred_region
      %s167 = ssub.s32 %s10, 1
      %p168 = scmp.lt.s32.totalorder %s15, 1
      %s169 = scalar_select %p168, %s15, 1
      %s170 = smul.addr %s169, 8
      %s171 = smul.addr %s170, 4
      %s172 = scalar_lea.vmem %s0, %s171
      %p173 = pneg %p36
      %p174 = pneg %p33
      %p175 = pneg %p57
      %p176 = pneg %p54
      %p177 = pneg %p78
      %p178 = pneg %p75
      %p179 = pneg %p99
      %p180 = pneg %p96
      %p181 = pneg %p125
      %p182 = pneg %p122
      %p183 = scmp.lt.s32.totalorder %s15, 1
      %s184 = scalar_select %p183, %s15, 1
      %s185 = smul.addr %s184, 4
      %s186 = smul.addr %s185, 2
      %s187 = scalar_lea.vmem %s4, %s186
      %p188 = scmp.lt.s32.totalorder %s15, 1
      %s189 = scalar_select %p188, %s15, 1
      %s190 = smul.addr %s189, 8
      %s191 = smul.addr %s190, 4
      %s192 = scalar_lea.vmem %s0, %s191
      %p193 = scmp.lt.s32.totalorder %s15, 1
      %s194 = scalar_select %p193, %s15, 1
      %s195 = smul.addr %s194, 4
      %s196 = smul.addr %s195, 2
      %s197 = scalar_lea.vmem %s4, %s196
      %v199 = vld [vmem:[%s192] sm:$0xf]
      %v200 = vld [vmem:[%s192 + $0x4] sm:$0xf]
      %v201 = vld [vmem:[%s192 + $0x8] sm:$0xf]
      %v202 = vld [vmem:[%s192 + $0xc] sm:$0xf]
      %v203 = vld [vmem:[%s192 + $0x10] sm:$0xf]
      %v204 = vld [vmem:[%s192 + $0x14] sm:$0xf]
      %v205 = vld [vmem:[%s192 + $0x18] sm:$0xf]
      %v206 = vld [vmem:[%s192 + $0x1c] sm:$0xf]
      %v208 = vshrl.u32 0, 16
      %v210 = vrot.slane %v208, 7
      %v211 = vshll.u32 0, 16
      %v213 = vor.u32 %v210, %v211
      %v215 = vshrl.u32 %v199, 16
      %v217 = vrot.slane %v215, 7
      %v218 = vshll.u32 %v199, 16
      %v220 = vor.u32 %v217, %v218
      %v222 = vshrl.u32 %v200, 16
      %v224 = vrot.slane %v222, 7
      %v225 = vshll.u32 %v200, 16
      %v227 = vor.u32 %v224, %v225
      %v229 = vshrl.u32 %v201, 16
      %v231 = vrot.slane %v229, 7
      %v232 = vshll.u32 %v201, 16
      %v234 = vor.u32 %v231, %v232
      %v236 = vshrl.u32 %v202, 16
      %v238 = vrot.slane %v236, 7
      %v239 = vshll.u32 %v202, 16
      %v241 = vor.u32 %v238, %v239
      %v243 = vshrl.u32 %v203, 16
      %v245 = vrot.slane %v243, 7
      %v246 = vshll.u32 %v203, 16
      %v248 = vor.u32 %v245, %v246
      %v250 = vshrl.u32 %v204, 16
      %v252 = vrot.slane %v250, 7
      %v253 = vshll.u32 %v204, 16
      %v255 = vor.u32 %v252, %v253
      %v257 = vshrl.u32 %v205, 16
      %v259 = vrot.slane %v257, 7
      %v260 = vshll.u32 %v205, 16
      %v262 = vor.u32 %v259, %v260
      %v264 = vshrl.u32 %v206, 16
      %v266 = vrot.slane %v264, 7
      %v267 = vshll.u32 %v206, 16
      %v269 = vor.u32 %v266, %v267
      %vm279 = vcmask 1040384
      %vm280 = vsmask.f32 256
      %vm281 = vmand %vm279, %vm280
      %v282 = vsel %vm281, 0, %v213
      %v283 = vsel %vm281, 0, %v220
      %v284 = vsel %vm281, 0, %v227
      %v285 = vsel %vm281, 0, %v234
      %v286 = vsel %vm281, 0, %v241
      %v287 = vsel %vm281, 0, %v248
      %v288 = vsel %vm281, 0, %v255
      %v289 = vsel %vm281, 0, %v262
      %v290 = vsel %vm281, 0, %v269
      %vm291 = vcmask 1044480
      %vm292 = vsmask.f32 4352
      %vm293 = vmand %vm291, %vm292
      %v294 = vsel %vm293, %v282, 0
      %v295 = vsel %vm293, %v283, 0
      %v296 = vsel %vm293, %v284, 0
      %v297 = vsel %vm293, %v285, 0
      %v298 = vsel %vm293, %v286, 0
      %v299 = vsel %vm293, %v287, 0
      %v300 = vsel %vm293, %v288, 0
      %v301 = vsel %vm293, %v289, 0
      %v302 = vsel %vm293, %v290, 0
      %v311 = vunpack.c.l.b16 %v294
      %v312 = vunpack.c.h.b16 %v294
      %v313 = vunpack.c.l.b16 %v295
      %v314 = vunpack.c.h.b16 %v295
      %v315 = vunpack.c.l.b16 %v296
      %v316 = vunpack.c.h.b16 %v296
      %v317 = vunpack.c.l.b16 %v297
      %v318 = vunpack.c.h.b16 %v297
      %v319 = vunpack.c.l.b16 %v298
      %v320 = vunpack.c.h.b16 %v298
      %v321 = vunpack.c.l.b16 %v299
      %v322 = vunpack.c.h.b16 %v299
      %v323 = vunpack.c.l.b16 %v300
      %v324 = vunpack.c.h.b16 %v300
      %v325 = vunpack.c.l.b16 %v301
      %v326 = vunpack.c.h.b16 %v301
      %v327 = vpack.c.b16 %v311, %v311
      %v328 = vpack.c.b16 %v312, %v312
      %v329 = vpack.c.b16 %v313, %v313
      %v330 = vpack.c.b16 %v314, %v314
      %v331 = vpack.c.b16 %v315, %v315
      %v332 = vpack.c.b16 %v316, %v316
      %v333 = vpack.c.b16 %v317, %v317
      %v334 = vpack.c.b16 %v318, %v318
      %v335 = vpack.c.b16 %v319, %v319
      %v336 = vpack.c.b16 %v320, %v320
      %v337 = vpack.c.b16 %v321, %v321
      %v338 = vpack.c.b16 %v322, %v322
      %v339 = vpack.c.b16 %v323, %v323
      %v340 = vpack.c.b16 %v324, %v324
      %v341 = vpack.c.b16 %v325, %v325
      %v342 = vpack.c.b16 %v326, %v326
      %vm343 = vsmask.f32 3328
      %vm344 = vsmask.f32 7440
      %vm345 = vmor %vm343, %vm344
      %v347 = vshrl.u32 %v327, 16
      %v349 = vrot.slane %v347, 4
      %v350 = vshll.u32 %v327, 16
      %v352 = vrot.slane %v350, 5
      %v353 = vor.u32 %v349, %v352
      %v354 = vrot.slane %v353, 4
      %v356 = vshll.u32 %v328, 16
      %v358 = vrot.slane %v356, 5
      %v359 = vsel %vm345, %v354, %v358
      %v361 = vshrl.u32 %v329, 16
      %v363 = vrot.slane %v361, 4
      %v364 = vshll.u32 %v329, 16
      %v366 = vrot.slane %v364, 5
      %v367 = vor.u32 %v363, %v366
      %v368 = vrot.slane %v367, 4
      %v370 = vshll.u32 %v330, 16
      %v372 = vrot.slane %v370, 5
      %v373 = vsel %vm345, %v368, %v372
      %v375 = vshrl.u32 %v331, 16
      %v377 = vrot.slane %v375, 4
      %v378 = vshll.u32 %v331, 16
      %v380 = vrot.slane %v378, 5
      %v381 = vor.u32 %v377, %v380
      %v382 = vrot.slane %v381, 4
      %v384 = vshll.u32 %v332, 16
      %v386 = vrot.slane %v384, 5
      %v387 = vsel %vm345, %v382, %v386
      %v389 = vshrl.u32 %v333, 16
      %v391 = vrot.slane %v389, 4
      %v392 = vshll.u32 %v333, 16
      %v394 = vrot.slane %v392, 5
      %v395 = vor.u32 %v391, %v394
      %v396 = vrot.slane %v395, 4
      %v398 = vshll.u32 %v334, 16
      %v400 = vrot.slane %v398, 5
      %v401 = vsel %vm345, %v396, %v400
      %v403 = vshrl.u32 %v335, 16
      %v405 = vrot.slane %v403, 4
      %v406 = vshll.u32 %v335, 16
      %v408 = vrot.slane %v406, 5
      %v409 = vor.u32 %v405, %v408
      %v410 = vrot.slane %v409, 4
      %v412 = vshll.u32 %v336, 16
      %v414 = vrot.slane %v412, 5
      %v415 = vsel %vm345, %v410, %v414
      %v417 = vshrl.u32 %v337, 16
      %v419 = vrot.slane %v417, 4
      %v420 = vshll.u32 %v337, 16
      %v422 = vrot.slane %v420, 5
      %v423 = vor.u32 %v419, %v422
      %v424 = vrot.slane %v423, 4
      %v426 = vshll.u32 %v338, 16
      %v428 = vrot.slane %v426, 5
      %v429 = vsel %vm345, %v424, %v428
      %v431 = vshrl.u32 %v339, 16
      %v433 = vrot.slane %v431, 4
      %v434 = vshll.u32 %v339, 16
      %v436 = vrot.slane %v434, 5
      %v437 = vor.u32 %v433, %v436
      %v438 = vrot.slane %v437, 4
      %v440 = vshll.u32 %v340, 16
      %v442 = vrot.slane %v440, 5
      %v443 = vsel %vm345, %v438, %v442
      %v445 = vshrl.u32 %v341, 16
      %v447 = vrot.slane %v445, 4
      %v448 = vshll.u32 %v341, 16
      %v450 = vrot.slane %v448, 5
      %v451 = vor.u32 %v447, %v450
      %v452 = vrot.slane %v451, 4
      %v454 = vshll.u32 %v342, 16
      %v456 = vrot.slane %v454, 5
      %v457 = vsel %vm345, %v452, %v456
      %vm458 = vcmask 1042432
      %vm459 = vcmask 1046532
      %vm460 = vmor %vm458, %vm459
      %v461 = vrot.slane %v327, 5
      %v462 = vrot.slane %v461, 4
      %v463 = vrot.slane %v328, 5
      %v464 = vsel %vm460, %v462, %v463
      %v465 = vrot.slane %v329, 5
      %v466 = vrot.slane %v465, 4
      %v467 = vrot.slane %v330, 5
      %v468 = vsel %vm460, %v466, %v467
      %v469 = vrot.slane %v331, 5
      %v470 = vrot.slane %v469, 4
      %v471 = vrot.slane %v332, 5
      %v472 = vsel %vm460, %v470, %v471
      %v473 = vrot.slane %v333, 5
      %v474 = vrot.slane %v473, 4
      %v475 = vrot.slane %v334, 5
      %v476 = vsel %vm460, %v474, %v475
      %v477 = vrot.slane %v335, 5
      %v478 = vrot.slane %v477, 4
      %v479 = vrot.slane %v336, 5
      %v480 = vsel %vm460, %v478, %v479
      %v481 = vrot.slane %v337, 5
      %v482 = vrot.slane %v481, 4
      %v483 = vrot.slane %v338, 5
      %v484 = vsel %vm460, %v482, %v483
      %v485 = vrot.slane %v339, 5
      %v486 = vrot.slane %v485, 4
      %v487 = vrot.slane %v340, 5
      %v488 = vsel %vm460, %v486, %v487
      %v489 = vrot.slane %v341, 5
      %v490 = vrot.slane %v489, 4
      %v491 = vrot.slane %v342, 5
      %v492 = vsel %vm460, %v490, %v491
      %v494 = vunpack.c.l.b16 %v302
      %v495 = vunpack.c.h.b16 %v302
      %v496 = vpack.c.b16 %v494, %v494
      %v497 = vpack.c.b16 %v495, %v495
      %v499 = vshrl.u32 %v496, 16
      %v501 = vrot.slane %v499, 4
      %v502 = vshll.u32 %v496, 16
      %v504 = vrot.slane %v502, 5
      %v505 = vor.u32 %v501, %v504
      %v506 = vrot.slane %v505, 4
      %v508 = vshll.u32 %v497, 16
      %v510 = vrot.slane %v508, 5
      %v511 = vsel %vm345, %v506, %v510
      %v512 = vrot.slane %v496, 5
      %v513 = vrot.slane %v512, 4
      %v514 = vrot.slane %v497, 5
      %v515 = vsel %vm460, %v513, %v514
      %v516 = vpack.c.b16 %v313, %v311
      %v517 = vpack.c.b16 %v317, %v315
      %v518 = vpack.c.b16 %v321, %v319
      %v519 = vpack.c.b16 %v325, %v323
      %v520 = vunpack.c.l.b16 %v359
      %v521 = vunpack.c.l.b16 %v373
      %v522 = vunpack.c.l.b16 %v387
      %v523 = vunpack.c.l.b16 %v401
      %v524 = vunpack.c.l.b16 %v415
      %v525 = vunpack.c.l.b16 %v429
      %v526 = vunpack.c.l.b16 %v443
      %v527 = vunpack.c.l.b16 %v457
      %v528 = vpack.c.b16 %v521, %v520
      %v529 = vpack.c.b16 %v523, %v522
      %v530 = vpack.c.b16 %v525, %v524
      %v531 = vpack.c.b16 %v527, %v526
      %532 = vrot.lane.b32.xlu0 %v528, 8
      %v533 = vpop.permute.xlu0 %532
      %534 = vrot.lane.b32.xlu0 %v529, 8
      %v535 = vpop.permute.xlu0 %534
      %536 = vrot.lane.b32.xlu0 %v530, 8
      %v537 = vpop.permute.xlu0 %536
      %538 = vrot.lane.b32.xlu0 %v531, 8
      %v539 = vpop.permute.xlu0 %538
      %v540 = vunpack.c.l.b16 %v464
      %v541 = vunpack.c.l.b16 %v468
      %v542 = vunpack.c.l.b16 %v472
      %v543 = vunpack.c.l.b16 %v476
      %v544 = vunpack.c.l.b16 %v480
      %v545 = vunpack.c.l.b16 %v484
      %v546 = vunpack.c.l.b16 %v488
      %v547 = vunpack.c.l.b16 %v492
      %v548 = vpack.c.b16 %v541, %v540
      %v549 = vpack.c.b16 %v543, %v542
      %v550 = vpack.c.b16 %v545, %v544
      %v551 = vpack.c.b16 %v547, %v546
      %552 = vrot.lane.b32.xlu0 %v548, 16
      %v553 = vpop.permute.xlu0 %552
      %554 = vrot.lane.b32.xlu0 %v549, 16
      %v555 = vpop.permute.xlu0 %554
      %556 = vrot.lane.b32.xlu0 %v550, 16
      %v557 = vpop.permute.xlu0 %556
      %558 = vrot.lane.b32.xlu0 %v551, 16
      %v559 = vpop.permute.xlu0 %558
      %v560 = vpack.c.b16 %v315, %v313
      %v561 = vpack.c.b16 %v319, %v317
      %v562 = vpack.c.b16 %v323, %v321
      %v563 = vpack.c.b16 %v494, %v325
      %564 = vrot.lane.b32.xlu0 %v560, 24
      %v565 = vpop.permute.xlu0 %564
      %566 = vrot.lane.b32.xlu0 %v561, 24
      %v567 = vpop.permute.xlu0 %566
      %568 = vrot.lane.b32.xlu0 %v562, 24
      %v569 = vpop.permute.xlu0 %568
      %570 = vrot.lane.b32.xlu0 %v563, 24
      %v571 = vpop.permute.xlu0 %570
      %v572 = vunpack.c.l.b16 %v511
      %v573 = vpack.c.b16 %v522, %v521
      %v574 = vpack.c.b16 %v524, %v523
      %v575 = vpack.c.b16 %v526, %v525
      %v576 = vpack.c.b16 %v572, %v527
      %577 = vrot.lane.b32.xlu0 %v573, 32
      %v578 = vpop.permute.xlu0 %577
      %579 = vrot.lane.b32.xlu0 %v574, 32
      %v580 = vpop.permute.xlu0 %579
      %581 = vrot.lane.b32.xlu0 %v575, 32
      %v582 = vpop.permute.xlu0 %581
      %583 = vrot.lane.b32.xlu0 %v576, 32
      %v584 = vpop.permute.xlu0 %583
      %v585 = vunpack.c.l.b16 %v515
      %v586 = vpack.c.b16 %v542, %v541
      %v587 = vpack.c.b16 %v544, %v543
      %v588 = vpack.c.b16 %v546, %v545
      %v589 = vpack.c.b16 %v585, %v547
      %590 = vrot.lane.b32.xlu0 %v586, 40
      %v591 = vpop.permute.xlu0 %590
      %592 = vrot.lane.b32.xlu0 %v587, 40
      %v593 = vpop.permute.xlu0 %592
      %594 = vrot.lane.b32.xlu0 %v588, 40
      %v595 = vpop.permute.xlu0 %594
      %596 = vrot.lane.b32.xlu0 %v589, 40
      %v597 = vpop.permute.xlu0 %596
      %v598 = vpack.c.b16 %v311, %v494
      %599 = vrot.lane.b32.xlu0 %v517, 48
      %v600 = vpop.permute.xlu0 %599
      %601 = vrot.lane.b32.xlu0 %v518, 48
      %v602 = vpop.permute.xlu0 %601
      %603 = vrot.lane.b32.xlu0 %v519, 48
      %v604 = vpop.permute.xlu0 %603
      %605 = vrot.lane.b32.xlu0 %v598, 48
      %v606 = vpop.permute.xlu0 %605
      %v607 = vpack.c.b16 %v520, %v572
      %608 = vrot.lane.b32.xlu0 %v529, 56
      %v609 = vpop.permute.xlu0 %608
      %610 = vrot.lane.b32.xlu0 %v530, 56
      %v611 = vpop.permute.xlu0 %610
      %612 = vrot.lane.b32.xlu0 %v531, 56
      %v613 = vpop.permute.xlu0 %612
      %614 = vrot.lane.b32.xlu0 %v607, 56
      %v615 = vpop.permute.xlu0 %614
      %v616 = vpack.c.b16 %v540, %v585
      %617 = vrot.lane.b32.xlu0 %v549, 64
      %v618 = vpop.permute.xlu0 %617
      %619 = vrot.lane.b32.xlu0 %v550, 64
      %v620 = vpop.permute.xlu0 %619
      %621 = vrot.lane.b32.xlu0 %v551, 64
      %v622 = vpop.permute.xlu0 %621
      %623 = vrot.lane.b32.xlu0 %v616, 64
      %v624 = vpop.permute.xlu0 %623
      %vm625 = vcmask 64512
      %v628 = vsel %vm625, %v516, %v533
      %v631 = vsel %vm625, %v517, %v535
      %v634 = vsel %vm625, %v518, %v537
      %v637 = vsel %vm625, %v519, %v539
      %vm638 = vcmask 130048
      %v640 = vsel %vm638, %v628, %v553
      %v642 = vsel %vm638, %v631, %v555
      %v644 = vsel %vm638, %v634, %v557
      %v646 = vsel %vm638, %v637, %v559
      %vm647 = vcmask 195584
      %v649 = vsel %vm647, %v640, %v565
      %v651 = vsel %vm647, %v642, %v567
      %v653 = vsel %vm647, %v644, %v569
      %v655 = vsel %vm647, %v646, %v571
      %vm656 = vcmask 261120
      %v658 = vsel %vm656, %v649, %v578
      %v660 = vsel %vm656, %v651, %v580
      %v662 = vsel %vm656, %v653, %v582
      %v664 = vsel %vm656, %v655, %v584
      %vm665 = vcmask 326656
      %v667 = vsel %vm665, %v658, %v591
      %v669 = vsel %vm665, %v660, %v593
      %v671 = vsel %vm665, %v662, %v595
      %v673 = vsel %vm665, %v664, %v597
      %vm674 = vcmask 392192
      %v676 = vsel %vm674, %v667, %v600
      %v678 = vsel %vm674, %v669, %v602
      %v680 = vsel %vm674, %v671, %v604
      %v682 = vsel %vm674, %v673, %v606
      %vm683 = vcmask 457728
      %v685 = vsel %vm683, %v676, %v609
      %v687 = vsel %vm683, %v678, %v611
      %v689 = vsel %vm683, %v680, %v613
      %v691 = vsel %vm683, %v682, %v615
      %vm692 = vcmask 523264
      %v694 = vsel %vm692, %v685, %v618
      %v696 = vsel %vm692, %v687, %v620
      %v698 = vsel %vm692, %v689, %v622
      %v700 = vsel %vm692, %v691, %v624
      %v701 = vld [vmem:[%s1] sm:$0xf]
      %v702 = vld [vmem:[%s1 + $0x4] sm:$0xf]
      %v703 = vld [vmem:[%s1 + $0x8] sm:$0xf]
      %v704 = vld [vmem:[%s1 + $0xc] sm:$0xf]
      %v705 = vld [vmem:[%s1 + $0x10] sm:$0xf]
      %v706 = vld [vmem:[%s1 + $0x14] sm:$0xf]
      %v707 = vld [vmem:[%s1 + $0x18] sm:$0xf]
      %v708 = vld [vmem:[%s1 + $0x1c] sm:$0xf]
      %v709 = vld [vmem:[%s1 + $0x20] sm:$0xf]
      %v719 = vunpack.c.l.b16 %v701
      %v720 = vunpack.c.l.b16 %v702
      %v721 = vunpack.c.l.b16 %v703
      %v722 = vunpack.c.l.b16 %v704
      %v723 = vunpack.c.l.b16 %v705
      %v724 = vunpack.c.l.b16 %v706
      %v725 = vunpack.c.l.b16 %v707
      %v726 = vunpack.c.l.b16 %v708
      %v727 = vunpack.c.l.b16 %v709
      %v728 = vpack.c.b16 %v720, %v719
      %v729 = vpack.c.b16 %v722, %v721
      %v730 = vpack.c.b16 %v724, %v723
      %v731 = vpack.c.b16 %v726, %v725
      %v732 = vpack.c.b16 %v727, %v727
      %vm737 = vcmask 588800
      %v738 = vsel %vm737, %v694, 0
      %v740 = vsel %vm737, %v696, 0
      %v742 = vsel %vm737, %v698, 0
      %v744 = vsel %vm737, %v700, 0
      %vm746 = vcmask 1043456
      %v748 = vsel %vm746, %v732, 0
      %750 = vmatpush.bf16.msra.mxu0 0
      %751 = vmatpush.bf16.msra.mxu0 0
      %752 = vmatpush.bf16.msra.mxu0 0
      %753 = vmatpush.bf16.msra.mxu0 %v748
      %754 = vmatpush.bf16.msra.mxu0 %v731
      %755 = vmatpush.bf16.msra.mxu0 %v730
      %756 = vmatpush.bf16.msra.mxu0 %v729
      %757 = vmatpush.bf16.msra.mxu0 %v728
      %758 = vmatmul.bf16.gmra.mxu0 %v738
      %v759 = vpop.f32.mrf.mxu0
      %v760 = vadd.f32 0.0, %v759
      %v761 = vpop.f32.mrf.mxu0
      %v762 = vadd.f32 0.0, %v761
      %763 = vmatmul.bf16.gmra.mxu0 %v740
      %v764 = vpop.f32.mrf.mxu0
      %v765 = vadd.f32 0.0, %v764
      %v766 = vpop.f32.mrf.mxu0
      %v767 = vadd.f32 0.0, %v766
      %768 = vmatmul.bf16.gmra.mxu0 %v742
      %v769 = vpop.f32.mrf.mxu0
      %v770 = vadd.f32 0.0, %v769
      %v771 = vpop.f32.mrf.mxu0
      %v772 = vadd.f32 0.0, %v771
      %773 = vmatmul.bf16.gmra.mxu0 %v744
      %v774 = vpop.f32.mrf.mxu0
      %v775 = vadd.f32 0.0, %v774
      %v776 = vpop.f32.mrf.mxu0
      %v777 = vadd.f32 0.0, %v776
      %778 = vdwg.mxu0
      %v779 = vld [vmem:[%s2] sm:$0x1]
      %v781 = vperm.slane %v779, 0
      %v783 = vmul.f32 %v760, %v781
      %v784 = vmul.f32 %v762, %v781
      %v785 = vmul.f32 %v765, %v781
      %v786 = vmul.f32 %v767, %v781
      %v787 = vmul.f32 %v770, %v781
      %v788 = vmul.f32 %v772, %v781
      %v789 = vmul.f32 %v775, %v781
      %v790 = vmul.f32 %v777, %v781
      %v791 = vld [vmem:[%s3] sm:$0x1]
      %v793 = vperm.slane %v791, 0
      %v795 = vadd.f32 %v783, %v793
      %v796 = vadd.f32 %v784, %v793
      %v797 = vadd.f32 %v785, %v793
      %v798 = vadd.f32 %v786, %v793
      %v799 = vadd.f32 %v787, %v793
      %v800 = vadd.f32 %v788, %v793
      %v801 = vadd.f32 %v789, %v793
      %v802 = vadd.f32 %v790, %v793
      %v803 = vmax.f32 %v795, 0.0
      %v804 = vmax.f32 %v796, 0.0
      %v805 = vmax.f32 %v797, 0.0
      %v806 = vmax.f32 %v798, 0.0
      %v807 = vmax.f32 %v799, 0.0
      %v808 = vmax.f32 %v800, 0.0
      %v809 = vmax.f32 %v801, 0.0
      %v810 = vmax.f32 %v802, 0.0
      %v811 = vmax.f32 %v803, %v804
      %v812 = vmax.f32 %v805, %v806
      %v813 = vmax.f32 %v807, %v808
      %v814 = vmax.f32 %v809, %v810
      %v819 = vrot.slane %v811, 2
      %v820 = vrot.slane %v811, 4
      %v821 = vrot.slane %v811, 6
      %v822 = vrot.slane %v812, 2
      %v823 = vrot.slane %v812, 4
      %v824 = vrot.slane %v812, 6
      %v825 = vrot.slane %v813, 2
      %v826 = vrot.slane %v813, 4
      %v827 = vrot.slane %v813, 6
      %v828 = vrot.slane %v814, 2
      %v829 = vrot.slane %v814, 4
      %v830 = vrot.slane %v814, 6
      %v843 = vrot.slane %v811, 7
      %v844 = vrot.slane %v843, 2
      %v845 = vrot.slane %v819, 7
      %v846 = vrot.slane %v845, 2
      %v847 = vrot.slane %v820, 7
      %v848 = vrot.slane %v847, 2
      %v849 = vrot.slane %v821, 7
      %v850 = vrot.slane %v849, 2
      %v851 = vrot.slane %v812, 7
      %v852 = vrot.slane %v851, 2
      %v853 = vrot.slane %v822, 7
      %v854 = vrot.slane %v853, 2
      %v855 = vrot.slane %v823, 7
      %v856 = vrot.slane %v855, 2
      %v857 = vrot.slane %v824, 7
      %v858 = vrot.slane %v857, 2
      %v859 = vrot.slane %v813, 7
      %v860 = vrot.slane %v859, 2
      %v861 = vrot.slane %v825, 7
      %v862 = vrot.slane %v861, 2
      %v863 = vrot.slane %v826, 7
      %v864 = vrot.slane %v863, 2
      %v865 = vrot.slane %v827, 7
      %v866 = vrot.slane %v865, 2
      %v867 = vrot.slane %v814, 7
      %v868 = vrot.slane %v867, 2
      %v869 = vrot.slane %v828, 7
      %v870 = vrot.slane %v869, 2
      %v871 = vrot.slane %v829, 7
      %v872 = vrot.slane %v871, 2
      %v873 = vrot.slane %v830, 7
      %v874 = vrot.slane %v873, 2
      %v891 = vmax.f32 %v811, %v844
      %v892 = vmax.f32 %v819, %v846
      %v893 = vmax.f32 %v820, %v848
      %v894 = vmax.f32 %v821, %v850
      %v895 = vmax.f32 %v812, %v852
      %v896 = vmax.f32 %v822, %v854
      %v897 = vmax.f32 %v823, %v856
      %v898 = vmax.f32 %v824, %v858
      %v899 = vmax.f32 %v813, %v860
      %v900 = vmax.f32 %v825, %v862
      %v901 = vmax.f32 %v826, %v864
      %v902 = vmax.f32 %v827, %v866
      %v903 = vmax.f32 %v814, %v868
      %v904 = vmax.f32 %v828, %v870
      %v905 = vmax.f32 %v829, %v872
      %v906 = vmax.f32 %v830, %v874
      %v907 = vpack.c.bf16 %v891, %v891
      %v908 = vpack.c.bf16 %v892, %v892
      %v909 = vpack.c.bf16 %v893, %v893
      %v910 = vpack.c.bf16 %v894, %v894
      %v911 = vpack.c.bf16 %v895, %v895
      %v912 = vpack.c.bf16 %v896, %v896
      %v913 = vpack.c.bf16 %v897, %v897
      %v914 = vpack.c.bf16 %v898, %v898
      %v915 = vpack.c.bf16 %v899, %v899
      %v916 = vpack.c.bf16 %v900, %v900
      %v917 = vpack.c.bf16 %v901, %v901
      %v918 = vpack.c.bf16 %v902, %v902
      %v919 = vpack.c.bf16 %v903, %v903
      %v920 = vpack.c.bf16 %v904, %v904
      %v921 = vpack.c.bf16 %v905, %v905
      %v922 = vpack.c.bf16 %v906, %v906
      %v939 = vrot.slane %v907, 2
      %v940 = vrot.slane %v908, 2
      %v941 = vrot.slane %v909, 2
      %v942 = vrot.slane %v910, 2
      %v943 = vrot.slane %v911, 2
      %v944 = vrot.slane %v912, 2
      %v945 = vrot.slane %v913, 2
      %v946 = vrot.slane %v914, 2
      %v947 = vrot.slane %v915, 2
      %v948 = vrot.slane %v916, 2
      %v949 = vrot.slane %v917, 2
      %v950 = vrot.slane %v918, 2
      %v951 = vrot.slane %v919, 2
      %v952 = vrot.slane %v920, 2
      %v953 = vrot.slane %v921, 2
      %v954 = vrot.slane %v922, 2
      %vm955 = vcmask 1041408
      %v958 = vsel %vm955, %v907, %v939
      %v961 = vsel %vm955, %v908, %v940
      %v964 = vsel %vm955, %v909, %v941
      %v967 = vsel %vm955, %v910, %v942
      %v970 = vsel %vm955, %v911, %v943
      %v973 = vsel %vm955, %v912, %v944
      %v976 = vsel %vm955, %v913, %v945
      %v979 = vsel %vm955, %v914, %v946
      %v982 = vsel %vm955, %v915, %v947
      %v985 = vsel %vm955, %v916, %v948
      %v988 = vsel %vm955, %v917, %v949
      %v991 = vsel %vm955, %v918, %v950
      %v994 = vsel %vm955, %v919, %v951
      %v997 = vsel %vm955, %v920, %v952
      %v1000 = vsel %vm955, %v921, %v953
      %v1003 = vsel %vm955, %v922, %v954
      %1004 = vst [vmem:[#allocation1] ss:$2 sm:$0xff] %v958
      %v1005 = vld.sshfl [vmem:[#allocation1] sm:$0xff pattern:$0x75643120]
      %s1007 = scalar_lea.vmem [#allocation1], 16
      %1008 = vst [vmem:[%s1007] ss:$2 sm:$0xff] %v961
      %v1009 = vld.sshfl [vmem:[#allocation1 + $0x10] sm:$0xff pattern:$0x75643120]
      %s1011 = scalar_lea.vmem [#allocation1], 32
      %1012 = vst [vmem:[%s1011] ss:$2 sm:$0xff] %v964
      %v1013 = vld.sshfl [vmem:[#allocation1 + $0x20] sm:$0xff pattern:$0x75643120]
      %s1015 = scalar_lea.vmem [#allocation1], 48
      %1016 = vst [vmem:[%s1015] ss:$2 sm:$0xff] %v967
      %v1017 = vld.sshfl [vmem:[#allocation1 + $0x30] sm:$0xff pattern:$0x75643120]
      %1019 = vst [vmem:[#allocation1] ss:$2 sm:$0xff] %v970
      %v1020 = vld.sshfl [vmem:[#allocation1] sm:$0xff pattern:$0x75643120]
      %1022 = vst [vmem:[%s1007] ss:$2 sm:$0xff] %v973
      %v1023 = vld.sshfl [vmem:[#allocation1 + $0x10] sm:$0xff pattern:$0x75643120]
      %1025 = vst [vmem:[%s1011] ss:$2 sm:$0xff] %v976
      %v1026 = vld.sshfl [vmem:[#allocation1 + $0x20] sm:$0xff pattern:$0x75643120]
      %1028 = vst [vmem:[%s1015] ss:$2 sm:$0xff] %v979
      %v1029 = vld.sshfl [vmem:[#allocation1 + $0x30] sm:$0xff pattern:$0x75643120]
      %1031 = vst [vmem:[#allocation1] ss:$2 sm:$0xff] %v982
      %v1032 = vld.sshfl [vmem:[#allocation1] sm:$0xff pattern:$0x75643120]
      %1034 = vst [vmem:[%s1007] ss:$2 sm:$0xff] %v985
      %v1035 = vld.sshfl [vmem:[#allocation1 + $0x10] sm:$0xff pattern:$0x75643120]
      %1037 = vst [vmem:[%s1011] ss:$2 sm:$0xff] %v988
      %v1038 = vld.sshfl [vmem:[#allocation1 + $0x20] sm:$0xff pattern:$0x75643120]
      %1040 = vst [vmem:[%s1015] ss:$2 sm:$0xff] %v991
      %v1041 = vld.sshfl [vmem:[#allocation1 + $0x30] sm:$0xff pattern:$0x75643120]
      %1043 = vst [vmem:[#allocation1] ss:$2 sm:$0xff] %v994
      %v1044 = vld.sshfl [vmem:[#allocation1] sm:$0xff pattern:$0x75643120]
      %1046 = vst [vmem:[%s1007] ss:$2 sm:$0xff] %v997
      %v1047 = vld.sshfl [vmem:[#allocation1 + $0x10] sm:$0xff pattern:$0x75643120]
      %1049 = vst [vmem:[%s1011] ss:$2 sm:$0xff] %v1000
      %v1050 = vld.sshfl [vmem:[#allocation1 + $0x20] sm:$0xff pattern:$0x75643120]
      %1052 = vst [vmem:[%s1015] ss:$2 sm:$0xff] %v1003
      %v1053 = vld.sshfl [vmem:[#allocation1 + $0x30] sm:$0xff pattern:$0x75643120]
      %v1055 = vunpack.c.l.b16 %v1005
      %v1056 = vunpack.c.l.b16 %v1009
      %v1057 = vunpack.c.l.b16 %v1013
      %v1058 = vunpack.c.l.b16 %v1017
      %v1059 = vunpack.c.l.b16 %v1020
      %v1060 = vunpack.c.l.b16 %v1023
      %v1061 = vunpack.c.l.b16 %v1026
      %v1062 = vunpack.c.l.b16 %v1029
      %v1063 = vunpack.c.l.b16 %v1032
      %v1064 = vunpack.c.l.b16 %v1035
      %v1065 = vunpack.c.l.b16 %v1038
      %v1066 = vunpack.c.l.b16 %v1041
      %v1067 = vunpack.c.l.b16 %v1044
      %v1068 = vunpack.c.l.b16 %v1047
      %v1069 = vunpack.c.l.b16 %v1050
      %v1070 = vunpack.c.l.b16 %v1053
      %v1071 = vrot.slane %v1056, 7
      %vm1072 = vcmask 1041409
      %v1073 = vsel %vm1072, %v1071, %v1055
      %v1074 = vrot.slane %v1057, 6
      %vm1075 = vcmask 1042434
      %v1076 = vsel %vm1075, %v1074, %v1073
      %v1077 = vrot.slane %v1058, 5
      %vm1078 = vcmask 1043459
      %v1079 = vsel %vm1078, %v1077, %v1076
      %v1080 = vrot.slane %v1060, 7
      %v1081 = vsel %vm1072, %v1080, %v1059
      %v1082 = vrot.slane %v1061, 6
      %v1083 = vsel %vm1075, %v1082, %v1081
      %v1084 = vrot.slane %v1062, 5
      %v1085 = vsel %vm1078, %v1084, %v1083
      %v1086 = vrot.slane %v1064, 7
      %v1087 = vsel %vm1072, %v1086, %v1063
      %v1088 = vrot.slane %v1065, 6
      %v1089 = vsel %vm1075, %v1088, %v1087
      %v1090 = vrot.slane %v1066, 5
      %v1091 = vsel %vm1078, %v1090, %v1089
      %v1092 = vrot.slane %v1068, 7
      %v1093 = vsel %vm1072, %v1092, %v1067
      %v1094 = vrot.slane %v1069, 6
      %v1095 = vsel %vm1075, %v1094, %v1093
      %v1096 = vrot.slane %v1070, 5
      %v1097 = vsel %vm1078, %v1096, %v1095
      %v1098 = vpack.c.b16 %v1079, %v1079
      %v1099 = vpack.c.b16 %v1085, %v1085
      %v1100 = vpack.c.b16 %v1091, %v1091
      %v1101 = vpack.c.b16 %v1097, %v1097
      %v1102 = vrot.slane %v1098, 2
      %v1103 = vrot.slane %v1099, 2
      %v1104 = vrot.slane %v1100, 2
      %v1105 = vrot.slane %v1101, 2
      %v1108 = vsel %vm955, %v1098, %v1102
      %v1111 = vsel %vm955, %v1099, %v1103
      %v1114 = vsel %vm955, %v1100, %v1104
      %v1117 = vsel %vm955, %v1101, %v1105
      %vm1122 = vcmask 123904
      %1123 = vst.msk [vmem:[%s197] sm:$0x3] %vm1122, %v1108
      %1124 = vst.msk [vmem:[%s197 + $0x2] sm:$0x3] %vm1122, %v1111
      %1125 = vst.msk [vmem:[%s197 + $0x4] sm:$0x3] %vm1122, %v1114
      %1126 = vst.msk [vmem:[%s197 + $0x6] sm:$0x3] %vm1122, %v1117
      %p1127 = scmp.lt.s32.totalorder %s15, 1
      %s1128 = scalar_select %p1127, %s15, 1
      %s1129 = smul.addr %s1128, 4
      %s1130 = smul.addr %s1129, 2
      %s1131 = scalar_lea.vmem %s4, %s1130
      // Predicated region
      $region37: #{_lambda_.6} parent=35 // pred_check
        %p1132 = pneg %p122
      $region38: #{_lambda_.6} parent=35 // pred_check_branch
        %1134 = sbr.rel (%p1132) target = $region40
      $region39: #{_lambda_.6} parent=35 // pred_region
        _
      $region40: #{_lambda_.6} parent=35 // pred_fallthru
        _
    $region36: #{_lambda_.6} parent=5 // pred_fallthru
      _
    %p1135 = scmp.le.s32.totalorder 2, %s10
    // Predicated region
    $region41: #{_lambda_.6} parent=5 // pred_check
      %p1136 = pneg %p1135
    $region42: #{_lambda_.6} parent=5 // pred_check_branch
      %1138 = sbr.rel (%p1136) target = $region44
    $region43: #{_lambda_.6} parent=5 // pred_region
      %s1139 = ssub.s32 %s10, 2
      // Predicated region
      $region45: #{_lambda_.6} parent=43 // pred_check
        %p1140 = pneg %p128
      $region46: #{_lambda_.6} parent=43 // pred_check_branch
        %1142 = sbr.rel (%p1140) target = $region48
      $region47: #{_lambda_.6} parent=43 // pred_region
        %p1143 = scmp.lt.s32.totalorder %s16, 1
        %s1144 = scalar_select %p1143, %s16, 1
        %s1145 = smul.addr %s1144, 4
        %s1146 = smul.addr %s1145, 2
        %s1147 = scalar_lea.vmem %s4, %s1146
      $region48: #{_lambda_.6} parent=43 // pred_fallthru
        _
    $region44: #{_lambda_.6} parent=5 // pred_fallthru
      _
  $region6: #{_lambda_.6} parent=0 // loop_footer
    %s14 = sadd.s32 1, %s10
  $region7: #{_lambda_.6} parent=0 // loop_footer_branch
    %9 = sbr.rel target = $region3
  $region8: #{_lambda_.6} parent=0 // loop_exit
    _

// kernel: _lambda_.8
$region0: #{_lambda_.8}
  #allocation0 [shape = 'u32[]', space=smem, size = 0x4, offset = 0x4, fixed_abs, tag = 'smem constant byte address 0x4 - core index']
  #allocation1 [shape = 'u32[72,128]{1,0:T(1,128)}', space=vmem, size = 0x9000, scoped, tag = 'internal scratch']
  %s0 = inlined_call_operand.vmem [shape: bf16[2,2,2,32], index: 0, kind: input, shape index: {}]
  %s1 = inlined_call_operand.vmem [shape: bf16[288,32], index: 1, kind: input, shape index: {}]
  %s2 = inlined_call_operand.vmem [shape: f32[1,32], index: 2, kind: input, shape index: {}]
  %s3 = inlined_call_operand.vmem [shape: f32[1,32], index: 3, kind: input, shape index: {}]
  %s4 = inlined_call_operand.vmem [shape: bf16[2,1,1,32], index: 4, kind: output, shape index: {}]
  %s5 = sld [smem:[#allocation0]]
  $region49: #{_lambda_.8} parent=0
    _
  %s7 = ssub.s32 1, %s5
  %s8 = scalar_select 0, %s7, %s5
  loop: start=0, step=1, limit=4
  $region2: #{_lambda_.8} parent=0 // loop_pre_header
    _
  $region3: #{_lambda_.8} parent=0 // loop_header
    %s10 = sphi 0, %s14
    %p11 = scmp.ge.s32.totalorder %s10, 4
    %s20 = sphi 0, %s22
    %s23 = sphi 0, %s20
    %s24 = sphi 0, %s23
    %s40 = sphi 0, %s24
    %s44 = sphi 0, %s44
    %s46 = sphi 0, %s44
    %s47 = sphi 0, %s46
    %s61 = sphi 0, %s47
    %s65 = sphi 0, %s65
    %s67 = sphi 0, %s65
    %s68 = sphi 0, %s67
    %s82 = sphi 0, %s68
    %s86 = sphi 0, %s86
    %s88 = sphi 0, %s86
    %s89 = sphi 0, %s88
    %s103 = sphi 0, %s89
    %s109 = sphi 0, %s111
    %s112 = sphi 0, %s109
    %s113 = sphi 0, %s112
    %s129 = sphi 0, %s113
  $region4: #{_lambda_.8} parent=0 // loop_header_branch
    %13 = sbr.rel (%p11) target = $region8
  $region5: #{_lambda_.8} parent=0 // loop_body
    %s15 = ssub.s32 %s10, 1
    %s16 = ssub.s32 %s10, 2
    %s17 = sadd.s32 %s10, 1
    %s18 = ssub.s32 %s10, %s17
    %p19 = scmp.eq.s32.totalorder %s18, 0
    %s21 = sadd.s32 %s20, 1
    %s22 = scalar_select %p19, %s20, %s21
    %p25 = pneg %p19
    %p26 = scmp.eq.s32.totalorder %s10, 1
    %p27 = por %p25, %p26
    %p28 = scmp.ne.s32.totalorder %s20, %s23
    %p29 = scmp.eq.s32.totalorder %s10, 0
    %p30 = por %p28, %p29
    %p31 = scmp.ne.s32.totalorder %s20, %s23
    %p32 = scmp.eq.s32.totalorder %s15, 1
    %p33 = por %p31, %p32
    %p34 = scmp.ne.s32.totalorder %s23, %s24
    %p35 = scmp.eq.s32.totalorder %s15, 0
    %p36 = por %p34, %p35
    %p37 = scmp.ne.s32.totalorder %s23, %s24
    %p38 = scmp.eq.s32.totalorder %s16, 1
    %p39 = por %p37, %p38
    %p41 = scmp.ne.s32.totalorder %s24, %s40
    %p42 = scmp.eq.s32.totalorder %s16, 0
    %p43 = por %p41, %p42
    %s45 = sadd.s32 %s44, 1
    %p48 = scmp.eq.s32.totalorder %s10, 1
    %p49 = scmp.ne.s32.totalorder %s44, %s46
    %p50 = scmp.eq.s32.totalorder %s10, 0
    %p51 = por %p49, %p50
    %p52 = scmp.ne.s32.totalorder %s44, %s46
    %p53 = scmp.eq.s32.totalorder %s15, 1
    %p54 = por %p52, %p53
    %p55 = scmp.ne.s32.totalorder %s46, %s47
    %p56 = scmp.eq.s32.totalorder %s15, 0
    %p57 = por %p55, %p56
    %p58 = scmp.ne.s32.totalorder %s46, %s47
    %p59 = scmp.eq.s32.totalorder %s16, 1
    %p60 = por %p58, %p59
    %p62 = scmp.ne.s32.totalorder %s47, %s61
    %p63 = scmp.eq.s32.totalorder %s16, 0
    %p64 = por %p62, %p63
    %s66 = sadd.s32 %s65, 1
    %p69 = scmp.eq.s32.totalorder %s10, 1
    %p70 = scmp.ne.s32.totalorder %s65, %s67
    %p71 = scmp.eq.s32.totalorder %s10, 0
    %p72 = por %p70, %p71
    %p73 = scmp.ne.s32.totalorder %s65, %s67
    %p74 = scmp.eq.s32.totalorder %s15, 1
    %p75 = por %p73, %p74
    %p76 = scmp.ne.s32.totalorder %s67, %s68
    %p77 = scmp.eq.s32.totalorder %s15, 0
    %p78 = por %p76, %p77
    %p79 = scmp.ne.s32.totalorder %s67, %s68
    %p80 = scmp.eq.s32.totalorder %s16, 1
    %p81 = por %p79, %p80
    %p83 = scmp.ne.s32.totalorder %s68, %s82
    %p84 = scmp.eq.s32.totalorder %s16, 0
    %p85 = por %p83, %p84
    %s87 = sadd.s32 %s86, 1
    %p90 = scmp.eq.s32.totalorder %s10, 1
    %p91 = scmp.ne.s32.totalorder %s86, %s88
    %p92 = scmp.eq.s32.totalorder %s10, 0
    %p93 = por %p91, %p92
    %p94 = scmp.ne.s32.totalorder %s86, %s88
    %p95 = scmp.eq.s32.totalorder %s15, 1
    %p96 = por %p94, %p95
    %p97 = scmp.ne.s32.totalorder %s88, %s89
    %p98 = scmp.eq.s32.totalorder %s15, 0
    %p99 = por %p97, %p98
    %p100 = scmp.ne.s32.totalorder %s88, %s89
    %p101 = scmp.eq.s32.totalorder %s16, 1
    %p102 = por %p100, %p101
    %p104 = scmp.ne.s32.totalorder %s89, %s103
    %p105 = scmp.eq.s32.totalorder %s16, 0
    %p106 = por %p104, %p105
    %s107 = ssub.s32 %s10, %s17
    %p108 = scmp.eq.s32.totalorder %s107, 0
    %s110 = sadd.s32 %s109, 1
    %s111 = scalar_select %p108, %s109, %s110
    %p114 = pneg %p108
    %p115 = scmp.eq.s32.totalorder %s10, 1
    %p116 = por %p114, %p115
    %p117 = scmp.ne.s32.totalorder %s109, %s112
    %p118 = scmp.eq.s32.totalorder %s10, 0
    %p119 = por %p117, %p118
    %p120 = scmp.ne.s32.totalorder %s109, %s112
    %p121 = scmp.eq.s32.totalorder %s15, 1
    %p122 = por %p120, %p121
    %p123 = scmp.ne.s32.totalorder %s112, %s113
    %p124 = scmp.eq.s32.totalorder %s15, 0
    %p125 = por %p123, %p124
    %p126 = scmp.ne.s32.totalorder %s112, %s113
    %p127 = scmp.eq.s32.totalorder %s16, 1
    %p128 = por %p126, %p127
    %p130 = scmp.ne.s32.totalorder %s113, %s129
    %p131 = scmp.eq.s32.totalorder %s16, 0
    %p132 = por %p130, %p131
    %p133 = scmp.le.s32.totalorder 1, %s10
    %p134 = scmp.lt.s32.totalorder %s10, 3
    %p135 = pnand %p133, %p134
    %p136 = pneg %p135
    // Predicated region
    $region9: #{_lambda_.8} parent=5 // pred_check
      _
    $region10: #{_lambda_.8} parent=5 // pred_check_branch
      %138 = sbr.rel (%p135) target = $region12
    $region11: #{_lambda_.8} parent=5 // pred_region
      %s139 = ssub.s32 %s10, 1
      // Predicated region
      $region13: #{_lambda_.8} parent=11 // pred_check
        %p140 = pneg %p57
      $region14: #{_lambda_.8} parent=11 // pred_check_branch
        %142 = sbr.rel (%p140) target = $region16
      $region15: #{_lambda_.8} parent=11 // pred_region
        _
      $region16: #{_lambda_.8} parent=11 // pred_fallthru
        _
      // Predicated region
      $region17: #{_lambda_.8} parent=11 // pred_check
        %p143 = pneg %p78
      $region18: #{_lambda_.8} parent=11 // pred_check_branch
        %145 = sbr.rel (%p143) target = $region20
      $region19: #{_lambda_.8} parent=11 // pred_region
        _
      $region20: #{_lambda_.8} parent=11 // pred_fallthru
        _
      // Predicated region
      $region21: #{_lambda_.8} parent=11 // pred_check
        %p146 = pneg %p99
      $region22: #{_lambda_.8} parent=11 // pred_check_branch
        %148 = sbr.rel (%p146) target = $region24
      $region23: #{_lambda_.8} parent=11 // pred_region
        _
      $region24: #{_lambda_.8} parent=11 // pred_fallthru
        _
    $region12: #{_lambda_.8} parent=5 // pred_fallthru
      _
    %p149 = scmp.lt.s32.totalorder %s10, 2
    // Predicated region
    $region25: #{_lambda_.8} parent=5 // pred_check
      %p150 = pneg %p149
    $region26: #{_lambda_.8} parent=5 // pred_check_branch
      %152 = sbr.rel (%p150) target = $region28
    $region27: #{_lambda_.8} parent=5 // pred_region
      // Predicated region
      $region29: #{_lambda_.8} parent=27 // pred_check
        %p153 = pneg %p30
      $region30: #{_lambda_.8} parent=27 // pred_check_branch
        %155 = sbr.rel (%p153) target = $region32
      $region31: #{_lambda_.8} parent=27 // pred_region
        %p156 = scmp.lt.s32.totalorder %s10, 1
        %s157 = scalar_select %p156, %s10, 1
        %s158 = smul.addr %s157, 2
        %s159 = scalar_lea.vmem %s0, %s158
      $region32: #{_lambda_.8} parent=27 // pred_fallthru
        _
    $region28: #{_lambda_.8} parent=5 // pred_fallthru
      _
    %p160 = scmp.le.s32.totalorder 1, %s10
    %p161 = scmp.lt.s32.totalorder %s10, 3
    %p162 = pnand %p160, %p161
    %p163 = pneg %p162
    // Predicated region
    $region33: #{_lambda_.8} parent=5 // pred_check
      _
    $region34: #{_lambda_.8} parent=5 // pred_check_branch
      %165 = sbr.rel (%p162) target = $region36
    $region35: #{_lambda_.8} parent=5 // pred_region
      %s166 = ssub.s32 %s10, 1
      %p167 = scmp.lt.s32.totalorder %s15, 1
      %s168 = scalar_select %p167, %s15, 1
      %s169 = smul.addr %s168, 2
      %s170 = scalar_lea.vmem %s0, %s169
      %p171 = pneg %p36
      %p172 = pneg %p33
      %p173 = pneg %p57
      %p174 = pneg %p54
      %p175 = pneg %p78
      %p176 = pneg %p75
      %p177 = pneg %p99
      %p178 = pneg %p96
      %p179 = pneg %p125
      %p180 = pneg %p122
      %p181 = scmp.lt.s32.totalorder %s15, 1
      %s182 = scalar_select %p181, %s15, 1
      %s183 = scalar_lea.vmem %s4, %s182
      %p184 = scmp.lt.s32.totalorder %s15, 1
      %s185 = scalar_select %p184, %s15, 1
      %s186 = smul.addr %s185, 2
      %s187 = scalar_lea.vmem %s0, %s186
      %p188 = scmp.lt.s32.totalorder %s15, 1
      %s189 = scalar_select %p188, %s15, 1
      %s190 = scalar_lea.vmem %s4, %s189
      %v192 = vld [vmem:[%s187] sm:$0x1]
      %v193 = vld [vmem:[%s187 + $0x1] sm:$0x1]
      %v195 = vshrl.u32 0, 16
      %v197 = vrot.slane %v195, 7
      %v198 = vshll.u32 0, 16
      %v200 = vor.u32 %v197, %v198
      %v202 = vshrl.u32 %v192, 16
      %v204 = vrot.slane %v202, 7
      %v205 = vshll.u32 %v192, 16
      %v207 = vor.u32 %v204, %v205
      %v209 = vshrl.u32 %v193, 16
      %v211 = vrot.slane %v209, 7
      %v212 = vshll.u32 %v193, 16
      %v214 = vor.u32 %v211, %v212
      %vm218 = vcmask 1040384
      %vm219 = vsmask.f32 256
      %vm220 = vmand %vm218, %vm219
      %v221 = vsel %vm220, 0, %v200
      %v222 = vsel %vm220, 0, %v207
      %v223 = vsel %vm220, 0, %v214
      %vm224 = vcmask 1041408
      %vm225 = vsmask.f32 1280
      %vm226 = vmand %vm224, %vm225
      %v227 = vsel %vm226, %v221, 0
      %v228 = vsel %vm226, %v222, 0
      %v229 = vsel %vm226, %v223, 0
      %v232 = vrot.slane %v227, 1
      %v233 = vrot.slane %v228, 1
      %vm234 = vsmask.f32 1284
      %vm235 = vmor %vm219, %vm234
      %vm236 = vsmask.f32 2312
      %vm237 = vmor %vm235, %vm236
      %vm238 = vsmask.f32 3340
      %vm239 = vmor %vm237, %vm238
      %vm240 = vsmask.f32 4368
      %vm241 = vmor %vm239, %vm240
      %vm242 = vsmask.f32 5396
      %vm243 = vmor %vm241, %vm242
      %vm244 = vsmask.f32 6424
      %vm245 = vmor %vm243, %vm244
      %vm246 = vsmask.f32 7452
      %vm247 = vmor %vm245, %vm246
      %v249 = vshrl.u32 %v227, 16
      %v251 = vrot.slane %v249, 7
      %v252 = vrot.slane %v251, 1
      %v254 = vshll.u32 %v232, 16
      %v256 = vsel %vm247, %v252, %v254
      %v258 = vshrl.u32 %v228, 16
      %v260 = vrot.slane %v258, 7
      %v261 = vrot.slane %v260, 1
      %v263 = vshll.u32 %v233, 16
      %v265 = vsel %vm247, %v261, %v263
      %266 = vst [vmem:[#allocation1] sm:$0xff] %v227
      %s267 = scalar_lea.vmem [#allocation1], 1
      %v268 = vld [vmem:[%s267] ss:$9 sm:$0xff]
      %269 = vst [vmem:[#allocation1] sm:$0xff] %v228
      %v270 = vld [vmem:[%s267] ss:$9 sm:$0xff]
      %v272 = vrot.slane %v229, 1
      %v274 = vshrl.u32 %v229, 16
      %v276 = vrot.slane %v274, 7
      %v277 = vrot.slane %v276, 1
      %v279 = vshll.u32 %v272, 16
      %v281 = vsel %vm247, %v277, %v279
      %282 = vst [vmem:[#allocation1] sm:$0xff] %v228
      %s283 = scalar_lea.vmem [#allocation1], 1
      %v284 = vld [vmem:[%s283] ss:$9 sm:$0xff]
      %285 = vst [vmem:[#allocation1] sm:$0xff] %v229
      %v286 = vld [vmem:[%s283] ss:$9 sm:$0xff]
      %287 = vst [vmem:[#allocation1] sm:$0xff] %v229
      %s288 = scalar_lea.vmem [#allocation1], 1
      %v289 = vld [vmem:[%s288] ss:$9 sm:$0xff]
      %290 = vst [vmem:[#allocation1] sm:$0xff] %v227
      %v291 = vld [vmem:[%s288] ss:$9 sm:$0xff]
      %292 = vst [vmem:[#allocation1] ss:$9 sm:$0xff] %v227
      %s293 = scalar_lea.vmem [#allocation1], 1
      %294 = vst [vmem:[%s293] ss:$9 sm:$0xff] %v228
      %v295 = vld [vmem:[#allocation1] sm:$0xff]
      %297 = vst [vmem:[#allocation1] ss:$9 sm:$0xff] %v256
      %s299 = scalar_lea.vmem [#allocation1], 1
      %300 = vst [vmem:[%s299] ss:$9 sm:$0xff] %v265
      %v301 = vld [vmem:[#allocation1] sm:$0xff]
      %303 = vrot.lane.b32.xlu0 %v301, 32
      %v304 = vpop.permute.xlu0 %303
      %305 = vst [vmem:[#allocation1] ss:$9 sm:$0xff] %v268
      %s306 = scalar_lea.vmem [#allocation1], 1
      %307 = vst [vmem:[%s306] ss:$9 sm:$0xff] %v270
      %v308 = vld [vmem:[#allocation1] sm:$0xff]
      %310 = vrot.lane.b32.xlu0 %v308, 64
      %v311 = vpop.permute.xlu0 %310
      %312 = vst [vmem:[#allocation1] ss:$9 sm:$0xff] %v228
      %s313 = scalar_lea.vmem [#allocation1], 1
      %314 = vst [vmem:[%s313] ss:$9 sm:$0xff] %v229
      %v315 = vld [vmem:[#allocation1] sm:$0xff]
      %317 = vrot.lane.b32.xlu0 %v315, 96
      %v318 = vpop.permute.xlu0 %317
      %319 = vst [vmem:[#allocation1] ss:$9 sm:$0xff] %v265
      %s321 = scalar_lea.vmem [#allocation1], 1
      %322 = vst [vmem:[%s321] ss:$9 sm:$0xff] %v281
      %v323 = vld [vmem:[#allocation1] sm:$0xff]
      %324 = vst [vmem:[#allocation1] ss:$9 sm:$0xff] %v284
      %s325 = scalar_lea.vmem [#allocation1], 1
      %326 = vst [vmem:[%s325] ss:$9 sm:$0xff] %v286
      %v327 = vld [vmem:[#allocation1] sm:$0xff]
      %329 = vrot.lane.b32.xlu0 %v327, 32
      %v330 = vpop.permute.xlu0 %329
      %331 = vst [vmem:[#allocation1] ss:$9 sm:$0xff] %v229
      %s332 = scalar_lea.vmem [#allocation1], 1
      %333 = vst [vmem:[%s332] ss:$9 sm:$0xff] %v227
      %v334 = vld [vmem:[#allocation1] sm:$0xff]
      %336 = vrot.lane.b32.xlu0 %v334, 64
      %v337 = vpop.permute.xlu0 %336
      %338 = vst [vmem:[#allocation1] ss:$9 sm:$0xff] %v281
      %s339 = scalar_lea.vmem [#allocation1], 1
      %340 = vst [vmem:[%s339] ss:$9 sm:$0xff] %v256
      %v341 = vld [vmem:[#allocation1] sm:$0xff]
      %343 = vrot.lane.b32.xlu0 %v341, 96
      %v344 = vpop.permute.xlu0 %343
      %345 = vst [vmem:[#allocation1] ss:$9 sm:$0xff] %v289
      %s346 = scalar_lea.vmem [#allocation1], 1
      %347 = vst [vmem:[%s346] ss:$9 sm:$0xff] %v291
      %v348 = vld [vmem:[#allocation1] sm:$0xff]
      %vm349 = vcmask 261120
      %v351 = vsel %vm349, %v295, %v304
      %vm352 = vcmask 523264
      %v354 = vsel %vm352, %v351, %v311
      %vm355 = vcmask 785408
      %v357 = vsel %vm355, %v354, %v318
      %v360 = vsel %vm349, %v323, %v330
      %v362 = vsel %vm352, %v360, %v337
      %v364 = vsel %vm355, %v362, %v344
      %v366 = vld [vmem:[%s1] sm:$0xf]
      %v367 = vld [vmem:[%s1 + $0x4] sm:$0xf]
      %v368 = vld [vmem:[%s1 + $0x8] sm:$0xf]
      %v369 = vld [vmem:[%s1 + $0xc] sm:$0xf]
      %v370 = vld [vmem:[%s1 + $0x10] sm:$0xf]
      %v371 = vld [vmem:[%s1 + $0x14] sm:$0xf]
      %v372 = vld [vmem:[%s1 + $0x18] sm:$0xf]
      %v373 = vld [vmem:[%s1 + $0x1c] sm:$0xf]
      %v374 = vld [vmem:[%s1 + $0x20] sm:$0xf]
      %v375 = vld [vmem:[%s1 + $0x24] sm:$0xf]
      %v376 = vld [vmem:[%s1 + $0x28] sm:$0xf]
      %v377 = vld [vmem:[%s1 + $0x2c] sm:$0xf]
      %v378 = vld [vmem:[%s1 + $0x30] sm:$0xf]
      %v379 = vld [vmem:[%s1 + $0x34] sm:$0xf]
      %v380 = vld [vmem:[%s1 + $0x38] sm:$0xf]
      %v381 = vld [vmem:[%s1 + $0x3c] sm:$0xf]
      %v382 = vld [vmem:[%s1 + $0x40] sm:$0xf]
      %v383 = vld [vmem:[%s1 + $0x44] sm:$0xf]
      %v384 = vld [vmem:[%s1 + $0x48] sm:$0xf]
      %v385 = vld [vmem:[%s1 + $0x4c] sm:$0xf]
      %v386 = vld [vmem:[%s1 + $0x50] sm:$0xf]
      %v387 = vld [vmem:[%s1 + $0x54] sm:$0xf]
      %v388 = vld [vmem:[%s1 + $0x58] sm:$0xf]
      %v389 = vld [vmem:[%s1 + $0x5c] sm:$0xf]
      %v390 = vld [vmem:[%s1 + $0x60] sm:$0xf]
      %v391 = vld [vmem:[%s1 + $0x64] sm:$0xf]
      %v392 = vld [vmem:[%s1 + $0x68] sm:$0xf]
      %v393 = vld [vmem:[%s1 + $0x6c] sm:$0xf]
      %v394 = vld [vmem:[%s1 + $0x70] sm:$0xf]
      %v395 = vld [vmem:[%s1 + $0x74] sm:$0xf]
      %v396 = vld [vmem:[%s1 + $0x78] sm:$0xf]
      %v397 = vld [vmem:[%s1 + $0x7c] sm:$0xf]
      %v398 = vld [vmem:[%s1 + $0x80] sm:$0xf]
      %v399 = vld [vmem:[%s1 + $0x84] sm:$0xf]
      %v400 = vld [vmem:[%s1 + $0x88] sm:$0xf]
      %v401 = vld [vmem:[%s1 + $0x8c] sm:$0xf]
      %v438 = vunpack.c.l.b16 %v366
      %v439 = vunpack.c.l.b16 %v367
      %v440 = vunpack.c.l.b16 %v368
      %v441 = vunpack.c.l.b16 %v369
      %v442 = vunpack.c.l.b16 %v370
      %v443 = vunpack.c.l.b16 %v371
      %v444 = vunpack.c.l.b16 %v372
      %v445 = vunpack.c.l.b16 %v373
      %v446 = vunpack.c.l.b16 %v374
      %v447 = vunpack.c.l.b16 %v375
      %v448 = vunpack.c.l.b16 %v376
      %v449 = vunpack.c.l.b16 %v377
      %v450 = vunpack.c.l.b16 %v378
      %v451 = vunpack.c.l.b16 %v379
      %v452 = vunpack.c.l.b16 %v380
      %v453 = vunpack.c.l.b16 %v381
      %v454 = vunpack.c.l.b16 %v382
      %v455 = vunpack.c.l.b16 %v383
      %v456 = vunpack.c.l.b16 %v384
      %v457 = vunpack.c.l.b16 %v385
      %v458 = vunpack.c.l.b16 %v386
      %v459 = vunpack.c.l.b16 %v387
      %v460 = vunpack.c.l.b16 %v388
      %v461 = vunpack.c.l.b16 %v389
      %v462 = vunpack.c.l.b16 %v390
      %v463 = vunpack.c.l.b16 %v391
      %v464 = vunpack.c.l.b16 %v392
      %v465 = vunpack.c.l.b16 %v393
      %v466 = vunpack.c.l.b16 %v394
      %v467 = vunpack.c.l.b16 %v395
      %v468 = vunpack.c.l.b16 %v396
      %v469 = vunpack.c.l.b16 %v397
      %v470 = vunpack.c.l.b16 %v398
      %v471 = vunpack.c.l.b16 %v399
      %v472 = vunpack.c.l.b16 %v400
      %v473 = vunpack.c.l.b16 %v401
      %v474 = vpack.c.b16 %v439, %v438
      %v475 = vpack.c.b16 %v441, %v440
      %v476 = vpack.c.b16 %v443, %v442
      %v477 = vpack.c.b16 %v445, %v444
      %v478 = vpack.c.b16 %v447, %v446
      %v479 = vpack.c.b16 %v449, %v448
      %v480 = vpack.c.b16 %v451, %v450
      %v481 = vpack.c.b16 %v453, %v452
      %v482 = vpack.c.b16 %v455, %v454
      %v483 = vpack.c.b16 %v457, %v456
      %v484 = vpack.c.b16 %v459, %v458
      %v485 = vpack.c.b16 %v461, %v460
      %v486 = vpack.c.b16 %v463, %v462
      %v487 = vpack.c.b16 %v465, %v464
      %v488 = vpack.c.b16 %v467, %v466
      %v489 = vpack.c.b16 %v469, %v468
      %v490 = vpack.c.b16 %v471, %v470
      %v491 = vpack.c.b16 %v473, %v472
      %v510 = vsel %vm349, %v348, 0
      %512 = vmatpush.bf16.msra.mxu0 %v481
      %513 = vmatpush.bf16.msra.mxu0 %v480
      %514 = vmatpush.bf16.msra.mxu0 %v479
      %515 = vmatpush.bf16.msra.mxu0 %v478
      %516 = vmatpush.bf16.msra.mxu0 %v477
      %517 = vmatpush.bf16.msra.mxu0 %v476
      %518 = vmatpush.bf16.msra.mxu0 %v475
      %519 = vmatpush.bf16.msra.mxu0 %v474
      %520 = vmatmul.bf16.gmra.mxu0 %v357
      %v521 = vpop.f32.mrf.mxu0
      %v522 = vadd.f32 0.0, %v521
      %v523 = vpop.f32.mrf.mxu0
      %524 = vdwg.mxu0
      %525 = vmatpush.bf16.msra.mxu0 %v489
      %526 = vmatpush.bf16.msra.mxu0 %v488
      %527 = vmatpush.bf16.msra.mxu0 %v487
      %528 = vmatpush.bf16.msra.mxu0 %v486
      %529 = vmatpush.bf16.msra.mxu0 %v485
      %530 = vmatpush.bf16.msra.mxu0 %v484
      %531 = vmatpush.bf16.msra.mxu0 %v483
      %532 = vmatpush.bf16.msra.mxu0 %v482
      %533 = vmatmul.bf16.gmra.mxu0 %v364
      %v534 = vpop.f32.mrf.mxu0
      %v535 = vadd.f32 %v522, %v534
      %v536 = vpop.f32.mrf.mxu0
      %537 = vdwg.mxu0
      %538 = vmatpush.bf16.msra.mxu0 0
      %539 = vmatpush.bf16.msra.mxu0 0
      %540 = vmatpush.bf16.msra.mxu0 0
      %541 = vmatpush.bf16.msra.mxu0 0
      %542 = vmatpush.bf16.msra.mxu0 0
      %543 = vmatpush.bf16.msra.mxu0 0
      %544 = vmatpush.bf16.msra.mxu0 %v491
      %545 = vmatpush.bf16.msra.mxu0 %v490
      %546 = vmatmul.bf16.gmra.mxu0 %v510
      %v547 = vpop.f32.mrf.mxu0
      %v548 = vadd.f32 %v535, %v547
      %v549 = vpop.f32.mrf.mxu0
      %550 = vdwg.mxu0
      %v551 = vld [vmem:[%s2] sm:$0x1]
      %v553 = vperm.slane %v551, 0
      %v555 = vmul.f32 %v548, %v553
      %v556 = vld [vmem:[%s3] sm:$0x1]
      %v558 = vperm.slane %v556, 0
      %v560 = vadd.f32 %v555, %v558
      %v561 = vmax.f32 %v560, 0.0
      %v563 = vrot.slane %v561, 2
      %v565 = vadd.f32 %v561, %v563
      %v567 = vrot.slane %v565, 7
      %v568 = vrot.slane %v567, 2
      %v570 = vadd.f32 %v565, %v568
      %v571 = vmul.f32 %v570, 0.25
      %v572 = vpack.c.bf16 %v571, %v571
      %vm573 = vcmask 253952
      %vm574 = vmand %vm573, %vm219
      %v575 = vld [vmem:[%s190] sm:$0x1]
      %v576 = vsel %vm574, %v572, %v575
      %577 = vst [vmem:[%s190] sm:$0x1] %v576
      %p578 = scmp.lt.s32.totalorder %s15, 1
      %s579 = scalar_select %p578, %s15, 1
      %s580 = scalar_lea.vmem %s4, %s579
      // Predicated region
      $region37: #{_lambda_.8} parent=35 // pred_check
        %p581 = pneg %p122
      $region38: #{_lambda_.8} parent=35 // pred_check_branch
        %583 = sbr.rel (%p581) target = $region40
      $region39: #{_lambda_.8} parent=35 // pred_region
        _
      $region40: #{_lambda_.8} parent=35 // pred_fallthru
        _
    $region36: #{_lambda_.8} parent=5 // pred_fallthru
      _
    %p584 = scmp.le.s32.totalorder 2, %s10
    // Predicated region
    $region41: #{_lambda_.8} parent=5 // pred_check
      %p585 = pneg %p584
    $region42: #{_lambda_.8} parent=5 // pred_check_branch
      %587 = sbr.rel (%p585) target = $region44
    $region43: #{_lambda_.8} parent=5 // pred_region
      %s588 = ssub.s32 %s10, 2
      // Predicated region
      $region45: #{_lambda_.8} parent=43 // pred_check
        %p589 = pneg %p128
      $region46: #{_lambda_.8} parent=43 // pred_check_branch
        %591 = sbr.rel (%p589) target = $region48
      $region47: #{_lambda_.8} parent=43 // pred_region
        %p592 = scmp.lt.s32.totalorder %s16, 1
        %s593 = scalar_select %p592, %s16, 1
        %s594 = scalar_lea.vmem %s4, %s593
      $region48: #{_lambda_.8} parent=43 // pred_fallthru
        _
    $region44: #{_lambda_.8} parent=5 // pred_fallthru
      _
  $region6: #{_lambda_.8} parent=0 // loop_footer
    %s14 = sadd.s32 1, %s10
  $region7: #{_lambda_.8} parent=0 // loop_footer_branch
    %9 = sbr.rel target = $region3
  $region8: #{_lambda_.8} parent=0 // loop_exit
    _

// kernel: _lambda_.7
$region0: #{_lambda_.7}
  #allocation0 [shape = 'u32[]', space=smem, size = 0x4, offset = 0x4, fixed_abs, tag = 'smem constant byte address 0x4 - core index']
  #allocation1 [shape = 'u32[72,128]{1,0:T(1,128)}', space=vmem, size = 0x9000, scoped, tag = 'internal scratch']
  %s0 = inlined_call_operand.vmem [shape: bf16[2,4,4,16], index: 0, kind: input, shape index: {}]
  %s1 = inlined_call_operand.vmem [shape: bf16[144,32], index: 1, kind: input, shape index: {}]
  %s2 = inlined_call_operand.vmem [shape: f32[1,32], index: 2, kind: input, shape index: {}]
  %s3 = inlined_call_operand.vmem [shape: f32[1,32], index: 3, kind: input, shape index: {}]
  %s4 = inlined_call_operand.vmem [shape: bf16[2,2,2,32], index: 4, kind: output, shape index: {}]
  %s5 = sld [smem:[#allocation0]]
  $region49: #{_lambda_.7} parent=0
    _
  %s7 = ssub.s32 1, %s5
  %s8 = scalar_select 0, %s7, %s5
  loop: start=0, step=1, limit=4
  $region2: #{_lambda_.7} parent=0 // loop_pre_header
    _
  $region3: #{_lambda_.7} parent=0 // loop_header
    %s10 = sphi 0, %s14
    %p11 = scmp.ge.s32.totalorder %s10, 4
    %s20 = sphi 0, %s22
    %s23 = sphi 0, %s20
    %s24 = sphi 0, %s23
    %s40 = sphi 0, %s24
    %s44 = sphi 0, %s44
    %s46 = sphi 0, %s44
    %s47 = sphi 0, %s46
    %s61 = sphi 0, %s47
    %s65 = sphi 0, %s65
    %s67 = sphi 0, %s65
    %s68 = sphi 0, %s67
    %s82 = sphi 0, %s68
    %s86 = sphi 0, %s86
    %s88 = sphi 0, %s86
    %s89 = sphi 0, %s88
    %s103 = sphi 0, %s89
    %s109 = sphi 0, %s111
    %s112 = sphi 0, %s109
    %s113 = sphi 0, %s112
    %s129 = sphi 0, %s113
  $region4: #{_lambda_.7} parent=0 // loop_header_branch
    %13 = sbr.rel (%p11) target = $region8
  $region5: #{_lambda_.7} parent=0 // loop_body
    %s15 = ssub.s32 %s10, 1
    %s16 = ssub.s32 %s10, 2
    %s17 = sadd.s32 %s10, 1
    %s18 = ssub.s32 %s10, %s17
    %p19 = scmp.eq.s32.totalorder %s18, 0
    %s21 = sadd.s32 %s20, 1
    %s22 = scalar_select %p19, %s20, %s21
    %p25 = pneg %p19
    %p26 = scmp.eq.s32.totalorder %s10, 1
    %p27 = por %p25, %p26
    %p28 = scmp.ne.s32.totalorder %s20, %s23
    %p29 = scmp.eq.s32.totalorder %s10, 0
    %p30 = por %p28, %p29
    %p31 = scmp.ne.s32.totalorder %s20, %s23
    %p32 = scmp.eq.s32.totalorder %s15, 1
    %p33 = por %p31, %p32
    %p34 = scmp.ne.s32.totalorder %s23, %s24
    %p35 = scmp.eq.s32.totalorder %s15, 0
    %p36 = por %p34, %p35
    %p37 = scmp.ne.s32.totalorder %s23, %s24
    %p38 = scmp.eq.s32.totalorder %s16, 1
    %p39 = por %p37, %p38
    %p41 = scmp.ne.s32.totalorder %s24, %s40
    %p42 = scmp.eq.s32.totalorder %s16, 0
    %p43 = por %p41, %p42
    %s45 = sadd.s32 %s44, 1
    %p48 = scmp.eq.s32.totalorder %s10, 1
    %p49 = scmp.ne.s32.totalorder %s44, %s46
    %p50 = scmp.eq.s32.totalorder %s10, 0
    %p51 = por %p49, %p50
    %p52 = scmp.ne.s32.totalorder %s44, %s46
    %p53 = scmp.eq.s32.totalorder %s15, 1
    %p54 = por %p52, %p53
    %p55 = scmp.ne.s32.totalorder %s46, %s47
    %p56 = scmp.eq.s32.totalorder %s15, 0
    %p57 = por %p55, %p56
    %p58 = scmp.ne.s32.totalorder %s46, %s47
    %p59 = scmp.eq.s32.totalorder %s16, 1
    %p60 = por %p58, %p59
    %p62 = scmp.ne.s32.totalorder %s47, %s61
    %p63 = scmp.eq.s32.totalorder %s16, 0
    %p64 = por %p62, %p63
    %s66 = sadd.s32 %s65, 1
    %p69 = scmp.eq.s32.totalorder %s10, 1
    %p70 = scmp.ne.s32.totalorder %s65, %s67
    %p71 = scmp.eq.s32.totalorder %s10, 0
    %p72 = por %p70, %p71
    %p73 = scmp.ne.s32.totalorder %s65, %s67
    %p74 = scmp.eq.s32.totalorder %s15, 1
    %p75 = por %p73, %p74
    %p76 = scmp.ne.s32.totalorder %s67, %s68
    %p77 = scmp.eq.s32.totalorder %s15, 0
    %p78 = por %p76, %p77
    %p79 = scmp.ne.s32.totalorder %s67, %s68
    %p80 = scmp.eq.s32.totalorder %s16, 1
    %p81 = por %p79, %p80
    %p83 = scmp.ne.s32.totalorder %s68, %s82
    %p84 = scmp.eq.s32.totalorder %s16, 0
    %p85 = por %p83, %p84
    %s87 = sadd.s32 %s86, 1
    %p90 = scmp.eq.s32.totalorder %s10, 1
    %p91 = scmp.ne.s32.totalorder %s86, %s88
    %p92 = scmp.eq.s32.totalorder %s10, 0
    %p93 = por %p91, %p92
    %p94 = scmp.ne.s32.totalorder %s86, %s88
    %p95 = scmp.eq.s32.totalorder %s15, 1
    %p96 = por %p94, %p95
    %p97 = scmp.ne.s32.totalorder %s88, %s89
    %p98 = scmp.eq.s32.totalorder %s15, 0
    %p99 = por %p97, %p98
    %p100 = scmp.ne.s32.totalorder %s88, %s89
    %p101 = scmp.eq.s32.totalorder %s16, 1
    %p102 = por %p100, %p101
    %p104 = scmp.ne.s32.totalorder %s89, %s103
    %p105 = scmp.eq.s32.totalorder %s16, 0
    %p106 = por %p104, %p105
    %s107 = ssub.s32 %s10, %s17
    %p108 = scmp.eq.s32.totalorder %s107, 0
    %s110 = sadd.s32 %s109, 1
    %s111 = scalar_select %p108, %s109, %s110
    %p114 = pneg %p108
    %p115 = scmp.eq.s32.totalorder %s10, 1
    %p116 = por %p114, %p115
    %p117 = scmp.ne.s32.totalorder %s109, %s112
    %p118 = scmp.eq.s32.totalorder %s10, 0
    %p119 = por %p117, %p118
    %p120 = scmp.ne.s32.totalorder %s109, %s112
    %p121 = scmp.eq.s32.totalorder %s15, 1
    %p122 = por %p120, %p121
    %p123 = scmp.ne.s32.totalorder %s112, %s113
    %p124 = scmp.eq.s32.totalorder %s15, 0
    %p125 = por %p123, %p124
    %p126 = scmp.ne.s32.totalorder %s112, %s113
    %p127 = scmp.eq.s32.totalorder %s16, 1
    %p128 = por %p126, %p127
    %p130 = scmp.ne.s32.totalorder %s113, %s129
    %p131 = scmp.eq.s32.totalorder %s16, 0
    %p132 = por %p130, %p131
    %p133 = scmp.le.s32.totalorder 1, %s10
    %p134 = scmp.lt.s32.totalorder %s10, 3
    %p135 = pnand %p133, %p134
    %p136 = pneg %p135
    // Predicated region
    $region9: #{_lambda_.7} parent=5 // pred_check
      _
    $region10: #{_lambda_.7} parent=5 // pred_check_branch
      %138 = sbr.rel (%p135) target = $region12
    $region11: #{_lambda_.7} parent=5 // pred_region
      %s139 = ssub.s32 %s10, 1
      // Predicated region
      $region13: #{_lambda_.7} parent=11 // pred_check
        %p140 = pneg %p57
      $region14: #{_lambda_.7} parent=11 // pred_check_branch
        %142 = sbr.rel (%p140) target = $region16
      $region15: #{_lambda_.7} parent=11 // pred_region
        _
      $region16: #{_lambda_.7} parent=11 // pred_fallthru
        _
      // Predicated region
      $region17: #{_lambda_.7} parent=11 // pred_check
        %p143 = pneg %p78
      $region18: #{_lambda_.7} parent=11 // pred_check_branch
        %145 = sbr.rel (%p143) target = $region20
      $region19: #{_lambda_.7} parent=11 // pred_region
        _
      $region20: #{_lambda_.7} parent=11 // pred_fallthru
        _
      // Predicated region
      $region21: #{_lambda_.7} parent=11 // pred_check
        %p146 = pneg %p99
      $region22: #{_lambda_.7} parent=11 // pred_check_branch
        %148 = sbr.rel (%p146) target = $region24
      $region23: #{_lambda_.7} parent=11 // pred_region
        _
      $region24: #{_lambda_.7} parent=11 // pred_fallthru
        _
    $region12: #{_lambda_.7} parent=5 // pred_fallthru
      _
    %p149 = scmp.lt.s32.totalorder %s10, 2
    // Predicated region
    $region25: #{_lambda_.7} parent=5 // pred_check
      %p150 = pneg %p149
    $region26: #{_lambda_.7} parent=5 // pred_check_branch
      %152 = sbr.rel (%p150) target = $region28
    $region27: #{_lambda_.7} parent=5 // pred_region
      // Predicated region
      $region29: #{_lambda_.7} parent=27 // pred_check
        %p153 = pneg %p30
      $region30: #{_lambda_.7} parent=27 // pred_check_branch
        %155 = sbr.rel (%p153) target = $region32
      $region31: #{_lambda_.7} parent=27 // pred_region
        %p156 = scmp.lt.s32.totalorder %s10, 1
        %s157 = scalar_select %p156, %s10, 1
        %s158 = smul.addr %s157, 4
        %s159 = smul.addr %s158, 2
        %s160 = scalar_lea.vmem %s0, %s159
      $region32: #{_lambda_.7} parent=27 // pred_fallthru
        _
    $region28: #{_lambda_.7} parent=5 // pred_fallthru
      _
    %p161 = scmp.le.s32.totalorder 1, %s10
    %p162 = scmp.lt.s32.totalorder %s10, 3
    %p163 = pnand %p161, %p162
    %p164 = pneg %p163
    // Predicated region
    $region33: #{_lambda_.7} parent=5 // pred_check
      _
    $region34: #{_lambda_.7} parent=5 // pred_check_branch
      %166 = sbr.rel (%p163) target = $region36
    $region35: #{_lambda_.7} parent=5 // pred_region
      %s167 = ssub.s32 %s10, 1
      %p168 = scmp.lt.s32.totalorder %s15, 1
      %s169 = scalar_select %p168, %s15, 1
      %s170 = smul.addr %s169, 4
      %s171 = smul.addr %s170, 2
      %s172 = scalar_lea.vmem %s0, %s171
      %p173 = pneg %p36
      %p174 = pneg %p33
      %p175 = pneg %p57
      %p176 = pneg %p54
      %p177 = pneg %p78
      %p178 = pneg %p75
      %p179 = pneg %p99
      %p180 = pneg %p96
      %p181 = pneg %p125
      %p182 = pneg %p122
      %p183 = scmp.lt.s32.totalorder %s15, 1
      %s184 = scalar_select %p183, %s15, 1
      %s185 = smul.addr %s184, 2
      %s186 = scalar_lea.vmem %s4, %s185
      %p187 = scmp.lt.s32.totalorder %s15, 1
      %s188 = scalar_select %p187, %s15, 1
      %s189 = smul.addr %s188, 4
      %s190 = smul.addr %s189, 2
      %s191 = scalar_lea.vmem %s0, %s190
      %p192 = scmp.lt.s32.totalorder %s15, 1
      %s193 = scalar_select %p192, %s15, 1
      %s194 = smul.addr %s193, 2
      %s195 = scalar_lea.vmem %s4, %s194
      %v197 = vld [vmem:[%s191] sm:$0x3]
      %v198 = vld [vmem:[%s191 + $0x2] sm:$0x3]
      %v199 = vld [vmem:[%s191 + $0x4] sm:$0x3]
      %v200 = vld [vmem:[%s191 + $0x6] sm:$0x3]
      %v202 = vshrl.u32 0, 16
      %v204 = vrot.slane %v202, 7
      %v205 = vshll.u32 0, 16
      %v207 = vor.u32 %v204, %v205
      %v209 = vshrl.u32 %v197, 16
      %v211 = vrot.slane %v209, 7
      %v212 = vshll.u32 %v197, 16
      %v214 = vor.u32 %v211, %v212
      %v216 = vshrl.u32 %v198, 16
      %v218 = vrot.slane %v216, 7
      %v219 = vshll.u32 %v198, 16
      %v221 = vor.u32 %v218, %v219
      %v223 = vshrl.u32 %v199, 16
      %v225 = vrot.slane %v223, 7
      %v226 = vshll.u32 %v199, 16
      %v228 = vor.u32 %v225, %v226
      %v230 = vshrl.u32 %v200, 16
      %v232 = vrot.slane %v230, 7
      %v233 = vshll.u32 %v200, 16
      %v235 = vor.u32 %v232, %v233
      %vm241 = vcmask 1040384
      %vm242 = vsmask.f32 256
      %vm243 = vmand %vm241, %vm242
      %v244 = vsel %vm243, 0, %v207
      %v245 = vsel %vm243, 0, %v214
      %v246 = vsel %vm243, 0, %v221
      %v247 = vsel %vm243, 0, %v228
      %v248 = vsel %vm243, 0, %v235
      %vm249 = vcmask 1042432
      %vm250 = vsmask.f32 2304
      %vm251 = vmand %vm249, %vm250
      %v252 = vsel %vm251, %v244, 0
      %v253 = vsel %vm251, %v245, 0
      %v254 = vsel %vm251, %v246, 0
      %v255 = vsel %vm251, %v247, 0
      %v256 = vsel %vm251, %v248, 0
      %v261 = vrot.slane %v252, 2
      %v262 = vrot.slane %v253, 2
      %v263 = vrot.slane %v254, 2
      %v264 = vrot.slane %v255, 2
      %vm265 = vsmask.f32 1280
      %vm266 = vsmask.f32 3336
      %vm267 = vmor %vm265, %vm266
      %vm268 = vsmask.f32 5392
      %vm269 = vmor %vm267, %vm268
      %vm270 = vsmask.f32 7448
      %vm271 = vmor %vm269, %vm270
      %v273 = vshrl.u32 %v252, 16
      %v275 = vrot.slane %v273, 6
      %v276 = vshll.u32 %v252, 16
      %v278 = vrot.slane %v276, 7
      %v279 = vor.u32 %v275, %v278
      %v280 = vrot.slane %v279, 2
      %v282 = vshll.u32 %v261, 16
      %v284 = vrot.slane %v282, 7
      %v285 = vsel %vm271, %v280, %v284
      %v287 = vshrl.u32 %v253, 16
      %v289 = vrot.slane %v287, 6
      %v290 = vshll.u32 %v253, 16
      %v292 = vrot.slane %v290, 7
      %v293 = vor.u32 %v289, %v292
      %v294 = vrot.slane %v293, 2
      %v296 = vshll.u32 %v262, 16
      %v298 = vrot.slane %v296, 7
      %v299 = vsel %vm271, %v294, %v298
      %v301 = vshrl.u32 %v254, 16
      %v303 = vrot.slane %v301, 6
      %v304 = vshll.u32 %v254, 16
      %v306 = vrot.slane %v304, 7
      %v307 = vor.u32 %v303, %v306
      %v308 = vrot.slane %v307, 2
      %v310 = vshll.u32 %v263, 16
      %v312 = vrot.slane %v310, 7
      %v313 = vsel %vm271, %v308, %v312
      %v315 = vshrl.u32 %v255, 16
      %v317 = vrot.slane %v315, 6
      %v318 = vshll.u32 %v255, 16
      %v320 = vrot.slane %v318, 7
      %v321 = vor.u32 %v317, %v320
      %v322 = vrot.slane %v321, 2
      %v324 = vshll.u32 %v264, 16
      %v326 = vrot.slane %v324, 7
      %v327 = vsel %vm271, %v322, %v326
      %vm328 = vcmask 1042434
      %vm329 = vmor %vm241, %vm328
      %vm330 = vcmask 1044484
      %vm331 = vmor %vm329, %vm330
      %vm332 = vcmask 1046534
      %vm333 = vmor %vm331, %vm332
      %v334 = vrot.slane %v252, 7
      %v335 = vrot.slane %v334, 2
      %v336 = vrot.slane %v261, 7
      %v337 = vsel %vm333, %v335, %v336
      %v338 = vrot.slane %v253, 7
      %v339 = vrot.slane %v338, 2
      %v340 = vrot.slane %v262, 7
      %v341 = vsel %vm333, %v339, %v340
      %v342 = vrot.slane %v254, 7
      %v343 = vrot.slane %v342, 2
      %v344 = vrot.slane %v263, 7
      %v345 = vsel %vm333, %v343, %v344
      %v346 = vrot.slane %v255, 7
      %v347 = vrot.slane %v346, 2
      %v348 = vrot.slane %v264, 7
      %v349 = vsel %vm333, %v347, %v348
      %v351 = vrot.slane %v256, 2
      %v353 = vshrl.u32 %v256, 16
      %v355 = vrot.slane %v353, 6
      %v356 = vshll.u32 %v256, 16
      %v358 = vrot.slane %v356, 7
      %v359 = vor.u32 %v355, %v358
      %v360 = vrot.slane %v359, 2
      %v362 = vshll.u32 %v351, 16
      %v364 = vrot.slane %v362, 7
      %v365 = vsel %vm271, %v360, %v364
      %v366 = vrot.slane %v256, 7
      %v367 = vrot.slane %v366, 2
      %v368 = vrot.slane %v351, 7
      %v369 = vsel %vm333, %v367, %v368
      %370 = vst [vmem:[#allocation1] ss:$4 sm:$0xff] %v252
      %s371 = scalar_lea.vmem [#allocation1], 1
      %372 = vst [vmem:[%s371] ss:$4 sm:$0xff] %v253
      %s373 = scalar_lea.vmem [#allocation1], 2
      %374 = vst [vmem:[%s373] ss:$4 sm:$0xff] %v254
      %s375 = scalar_lea.vmem [#allocation1], 3
      %376 = vst [vmem:[%s375] ss:$4 sm:$0xff] %v255
      %v377 = vld.sshfl [vmem:[#allocation1] sm:$0xff pattern:$0x73625140]
      %379 = vst [vmem:[#allocation1] ss:$4 sm:$0xff] %v285
      %s381 = scalar_lea.vmem [#allocation1], 1
      %382 = vst [vmem:[%s381] ss:$4 sm:$0xff] %v299
      %s384 = scalar_lea.vmem [#allocation1], 2
      %385 = vst [vmem:[%s384] ss:$4 sm:$0xff] %v313
      %s387 = scalar_lea.vmem [#allocation1], 3
      %388 = vst [vmem:[%s387] ss:$4 sm:$0xff] %v327
      %v389 = vld.sshfl [vmem:[#allocation1] sm:$0xff pattern:$0x73625140]
      %391 = vrot.lane.b32.xlu0 %v389, 16
      %v392 = vpop.permute.xlu0 %391
      %394 = vst [vmem:[#allocation1] ss:$4 sm:$0xff] %v337
      %s396 = scalar_lea.vmem [#allocation1], 1
      %397 = vst [vmem:[%s396] ss:$4 sm:$0xff] %v341
      %s399 = scalar_lea.vmem [#allocation1], 2
      %400 = vst [vmem:[%s399] ss:$4 sm:$0xff] %v345
      %s402 = scalar_lea.vmem [#allocation1], 3
      %403 = vst [vmem:[%s402] ss:$4 sm:$0xff] %v349
      %v404 = vld.sshfl [vmem:[#allocation1] sm:$0xff pattern:$0x73625140]
      %406 = vrot.lane.b32.xlu0 %v404, 32
      %v407 = vpop.permute.xlu0 %406
      %408 = vst [vmem:[#allocation1] ss:$4 sm:$0xff] %v253
      %s409 = scalar_lea.vmem [#allocation1], 1
      %410 = vst [vmem:[%s409] ss:$4 sm:$0xff] %v254
      %s411 = scalar_lea.vmem [#allocation1], 2
      %412 = vst [vmem:[%s411] ss:$4 sm:$0xff] %v255
      %s413 = scalar_lea.vmem [#allocation1], 3
      %414 = vst [vmem:[%s413] ss:$4 sm:$0xff] %v256
      %v415 = vld.sshfl [vmem:[#allocation1] sm:$0xff pattern:$0x73625140]
      %417 = vrot.lane.b32.xlu0 %v415, 48
      %v418 = vpop.permute.xlu0 %417
      %419 = vst [vmem:[#allocation1] ss:$4 sm:$0xff] %v299
      %s420 = scalar_lea.vmem [#allocation1], 1
      %421 = vst [vmem:[%s420] ss:$4 sm:$0xff] %v313
      %s422 = scalar_lea.vmem [#allocation1], 2
      %423 = vst [vmem:[%s422] ss:$4 sm:$0xff] %v327
      %s425 = scalar_lea.vmem [#allocation1], 3
      %426 = vst [vmem:[%s425] ss:$4 sm:$0xff] %v365
      %v427 = vld.sshfl [vmem:[#allocation1] sm:$0xff pattern:$0x73625140]
      %429 = vrot.lane.b32.xlu0 %v427, 64
      %v430 = vpop.permute.xlu0 %429
      %431 = vst [vmem:[#allocation1] ss:$4 sm:$0xff] %v341
      %s432 = scalar_lea.vmem [#allocation1], 1
      %433 = vst [vmem:[%s432] ss:$4 sm:$0xff] %v345
      %s434 = scalar_lea.vmem [#allocation1], 2
      %435 = vst [vmem:[%s434] ss:$4 sm:$0xff] %v349
      %s437 = scalar_lea.vmem [#allocation1], 3
      %438 = vst [vmem:[%s437] ss:$4 sm:$0xff] %v369
      %v439 = vld.sshfl [vmem:[#allocation1] sm:$0xff pattern:$0x73625140]
      %441 = vrot.lane.b32.xlu0 %v439, 80
      %v442 = vpop.permute.xlu0 %441
      %443 = vst [vmem:[#allocation1] ss:$4 sm:$0xff] %v254
      %s444 = scalar_lea.vmem [#allocation1], 1
      %445 = vst [vmem:[%s444] ss:$4 sm:$0xff] %v255
      %s446 = scalar_lea.vmem [#allocation1], 2
      %447 = vst [vmem:[%s446] ss:$4 sm:$0xff] %v256
      %s448 = scalar_lea.vmem [#allocation1], 3
      %449 = vst [vmem:[%s448] ss:$4 sm:$0xff] %v252
      %v450 = vld.sshfl [vmem:[#allocation1] sm:$0xff pattern:$0x73625140]
      %452 = vrot.lane.b32.xlu0 %v450, 96
      %v453 = vpop.permute.xlu0 %452
      %454 = vst [vmem:[#allocation1] ss:$4 sm:$0xff] %v313
      %s455 = scalar_lea.vmem [#allocation1], 1
      %456 = vst [vmem:[%s455] ss:$4 sm:$0xff] %v327
      %s457 = scalar_lea.vmem [#allocation1], 2
      %458 = vst [vmem:[%s457] ss:$4 sm:$0xff] %v365
      %s459 = scalar_lea.vmem [#allocation1], 3
      %460 = vst [vmem:[%s459] ss:$4 sm:$0xff] %v285
      %v461 = vld.sshfl [vmem:[#allocation1] sm:$0xff pattern:$0x73625140]
      %463 = vrot.lane.b32.xlu0 %v461, 112
      %v464 = vpop.permute.xlu0 %463
      %465 = vst [vmem:[#allocation1] ss:$4 sm:$0xff] %v345
      %s466 = scalar_lea.vmem [#allocation1], 1
      %467 = vst [vmem:[%s466] ss:$4 sm:$0xff] %v349
      %s468 = scalar_lea.vmem [#allocation1], 2
      %469 = vst [vmem:[%s468] ss:$4 sm:$0xff] %v369
      %s470 = scalar_lea.vmem [#allocation1], 3
      %471 = vst [vmem:[%s470] ss:$4 sm:$0xff] %v337
      %v472 = vld.sshfl [vmem:[#allocation1] sm:$0xff pattern:$0x73625140]
      %vm473 = vcmask 130048
      %v475 = vsel %vm473, %v377, %v392
      %vm476 = vcmask 261120
      %v478 = vsel %vm476, %v475, %v407
      %vm479 = vcmask 392192
      %v481 = vsel %vm479, %v478, %v418
      %vm482 = vcmask 523264
      %v484 = vsel %vm482, %v481, %v430
      %vm485 = vcmask 654336
      %v487 = vsel %vm485, %v484, %v442
      %vm488 = vcmask 785408
      %v490 = vsel %vm488, %v487, %v453
      %vm491 = vcmask 916480
      %v493 = vsel %vm491, %v490, %v464
      %v495 = vld [vmem:[%s1] sm:$0xf]
      %v496 = vld [vmem:[%s1 + $0x4] sm:$0xf]
      %v497 = vld [vmem:[%s1 + $0x8] sm:$0xf]
      %v498 = vld [vmem:[%s1 + $0xc] sm:$0xf]
      %v499 = vld [vmem:[%s1 + $0x10] sm:$0xf]
      %v500 = vld [vmem:[%s1 + $0x14] sm:$0xf]
      %v501 = vld [vmem:[%s1 + $0x18] sm:$0xf]
      %v502 = vld [vmem:[%s1 + $0x1c] sm:$0xf]
      %v503 = vld [vmem:[%s1 + $0x20] sm:$0xf]
      %v504 = vld [vmem:[%s1 + $0x24] sm:$0xf]
      %v505 = vld [vmem:[%s1 + $0x28] sm:$0xf]
      %v506 = vld [vmem:[%s1 + $0x2c] sm:$0xf]
      %v507 = vld [vmem:[%s1 + $0x30] sm:$0xf]
      %v508 = vld [vmem:[%s1 + $0x34] sm:$0xf]
      %v509 = vld [vmem:[%s1 + $0x38] sm:$0xf]
      %v510 = vld [vmem:[%s1 + $0x3c] sm:$0xf]
      %v511 = vld [vmem:[%s1 + $0x40] sm:$0xf]
      %v512 = vld [vmem:[%s1 + $0x44] sm:$0xf]
      %v531 = vunpack.c.l.b16 %v495
      %v532 = vunpack.c.l.b16 %v496
      %v533 = vunpack.c.l.b16 %v497
      %v534 = vunpack.c.l.b16 %v498
      %v535 = vunpack.c.l.b16 %v499
      %v536 = vunpack.c.l.b16 %v500
      %v537 = vunpack.c.l.b16 %v501
      %v538 = vunpack.c.l.b16 %v502
      %v539 = vunpack.c.l.b16 %v503
      %v540 = vunpack.c.l.b16 %v504
      %v541 = vunpack.c.l.b16 %v505
      %v542 = vunpack.c.l.b16 %v506
      %v543 = vunpack.c.l.b16 %v507
      %v544 = vunpack.c.l.b16 %v508
      %v545 = vunpack.c.l.b16 %v509
      %v546 = vunpack.c.l.b16 %v510
      %v547 = vunpack.c.l.b16 %v511
      %v548 = vunpack.c.l.b16 %v512
      %v549 = vpack.c.b16 %v532, %v531
      %v550 = vpack.c.b16 %v534, %v533
      %v551 = vpack.c.b16 %v536, %v535
      %v552 = vpack.c.b16 %v538, %v537
      %v553 = vpack.c.b16 %v540, %v539
      %v554 = vpack.c.b16 %v542, %v541
      %v555 = vpack.c.b16 %v544, %v543
      %v556 = vpack.c.b16 %v546, %v545
      %v557 = vpack.c.b16 %v548, %v547
      %v567 = vsel %vm473, %v472, 0
      %569 = vmatpush.bf16.msra.mxu0 %v556
      %570 = vmatpush.bf16.msra.mxu0 %v555
      %571 = vmatpush.bf16.msra.mxu0 %v554
      %572 = vmatpush.bf16.msra.mxu0 %v553
      %573 = vmatpush.bf16.msra.mxu0 %v552
      %574 = vmatpush.bf16.msra.mxu0 %v551
      %575 = vmatpush.bf16.msra.mxu0 %v550
      %576 = vmatpush.bf16.msra.mxu0 %v549
      %577 = vmatmul.bf16.gmra.mxu0 %v493
      %v578 = vpop.f32.mrf.mxu0
      %v579 = vadd.f32 0.0, %v578
      %v580 = vpop.f32.mrf.mxu0
      %v581 = vadd.f32 0.0, %v580
      %582 = vdwg.mxu0
      %583 = vmatpush.bf16.msra.mxu0 0
      %584 = vmatpush.bf16.msra.mxu0 0
      %585 = vmatpush.bf16.msra.mxu0 0
      %586 = vmatpush.bf16.msra.mxu0 0
      %587 = vmatpush.bf16.msra.mxu0 0
      %588 = vmatpush.bf16.msra.mxu0 0
      %589 = vmatpush.bf16.msra.mxu0 0
      %590 = vmatpush.bf16.msra.mxu0 %v557
      %591 = vmatmul.bf16.gmra.mxu0 %v567
      %v592 = vpop.f32.mrf.mxu0
      %v593 = vadd.f32 %v579, %v592
      %v594 = vpop.f32.mrf.mxu0
      %v595 = vadd.f32 %v581, %v594
      %596 = vdwg.mxu0
      %v597 = vld [vmem:[%s2] sm:$0x1]
      %v599 = vperm.slane %v597, 0
      %v601 = vmul.f32 %v593, %v599
      %v602 = vmul.f32 %v595, %v599
      %v603 = vld [vmem:[%s3] sm:$0x1]
      %v605 = vperm.slane %v603, 0
      %v607 = vadd.f32 %v601, %v605
      %v608 = vadd.f32 %v602, %v605
      %v609 = vmax.f32 %v607, 0.0
      %v610 = vmax.f32 %v608, 0.0
      %v613 = vrot.slane %v609, 4
      %v614 = vrot.slane %v610, 4
      %v617 = vmax.f32 %v609, %v613
      %v618 = vmax.f32 %v610, %v614
      %v621 = vrot.slane %v617, 2
      %v622 = vrot.slane %v618, 2
      %vm623 = vcmask 1041408
      %v624 = vsel %vm623, %v617, %v621
      %vm625 = vcmask 1043458
      %v626 = vsel %vm625, %v617, %v621
      %v627 = vrot.slane %v626, 2
      %v628 = vsel %vm623, %v618, %v622
      %v629 = vsel %vm625, %v618, %v622
      %v630 = vrot.slane %v629, 2
      %v635 = vrot.slane %v624, 7
      %v636 = vrot.slane %v635, 2
      %v637 = vrot.slane %v627, 7
      %v638 = vrot.slane %v637, 2
      %v639 = vrot.slane %v628, 7
      %v640 = vrot.slane %v639, 2
      %v641 = vrot.slane %v630, 7
      %v642 = vrot.slane %v641, 2
      %v647 = vmax.f32 %v624, %v636
      %v648 = vmax.f32 %v627, %v638
      %v649 = vmax.f32 %v628, %v640
      %v650 = vmax.f32 %v630, %v642
      %v651 = vpack.c.bf16 %v647, %v647
      %v652 = vpack.c.bf16 %v648, %v648
      %v653 = vpack.c.bf16 %v649, %v649
      %v654 = vpack.c.bf16 %v650, %v650
      %v659 = vrot.slane %v651, 3
      %v660 = vrot.slane %v652, 3
      %v661 = vrot.slane %v653, 3
      %v662 = vrot.slane %v654, 3
      %vm663 = vcmask 1040384
      %v666 = vsel %vm663, %v651, %v659
      %v669 = vsel %vm663, %v652, %v660
      %v672 = vsel %vm663, %v653, %v661
      %v675 = vsel %vm663, %v654, %v662
      %676 = vst [vmem:[#allocation1] ss:$4 sm:$0xff] %v666
      %v677 = vld [vmem:[#allocation1] sm:$0xff]
      %s679 = scalar_lea.vmem [#allocation1], 32
      %680 = vst [vmem:[%s679] ss:$4 sm:$0xff] %v669
      %v681 = vld [vmem:[#allocation1 + $0x20] sm:$0xff]
      %683 = vst [vmem:[#allocation1] ss:$4 sm:$0xff] %v672
      %v684 = vld [vmem:[#allocation1] sm:$0xff]
      %686 = vst [vmem:[%s679] ss:$4 sm:$0xff] %v675
      %v687 = vld [vmem:[#allocation1 + $0x20] sm:$0xff]
      %v689 = vunpack.c.l.b16 %v677
      %v690 = vunpack.c.l.b16 %v681
      %v691 = vunpack.c.l.b16 %v684
      %v692 = vunpack.c.l.b16 %v687
      %v693 = vrot.slane %v690, 7
      %vm694 = vcmask 1041409
      %v695 = vsel %vm694, %v693, %v689
      %v696 = vrot.slane %v692, 7
      %v697 = vsel %vm694, %v696, %v691
      %v698 = vpack.c.b16 %v695, %v695
      %v699 = vpack.c.b16 %v697, %v697
      %v700 = vrot.slane %v698, 3
      %v701 = vrot.slane %v699, 3
      %v704 = vsel %vm663, %v698, %v700
      %v707 = vsel %vm663, %v699, %v701
      %vm710 = vcmask 253952
      %711 = vst.msk [vmem:[%s195] sm:$0x1] %vm710, %v704
      %712 = vst.msk [vmem:[%s195 + $0x1] sm:$0x1] %vm710, %v707
      %p713 = scmp.lt.s32.totalorder %s15, 1
      %s714 = scalar_select %p713, %s15, 1
      %s715 = smul.addr %s714, 2
      %s716 = scalar_lea.vmem %s4, %s715
      // Predicated region
      $region37: #{_lambda_.7} parent=35 // pred_check
        %p717 = pneg %p122
      $region38: #{_lambda_.7} parent=35 // pred_check_branch
        %719 = sbr.rel (%p717) target = $region40
      $region39: #{_lambda_.7} parent=35 // pred_region
        _
      $region40: #{_lambda_.7} parent=35 // pred_fallthru
        _
    $region36: #{_lambda_.7} parent=5 // pred_fallthru
      _
    %p720 = scmp.le.s32.totalorder 2, %s10
    // Predicated region
    $region41: #{_lambda_.7} parent=5 // pred_check
      %p721 = pneg %p720
    $region42: #{_lambda_.7} parent=5 // pred_check_branch
      %723 = sbr.rel (%p721) target = $region44
    $region43: #{_lambda_.7} parent=5 // pred_region
      %s724 = ssub.s32 %s10, 2
      // Predicated region
      $region45: #{_lambda_.7} parent=43 // pred_check
        %p725 = pneg %p128
      $region46: #{_lambda_.7} parent=43 // pred_check_branch
        %727 = sbr.rel (%p725) target = $region48
      $region47: #{_lambda_.7} parent=43 // pred_region
        %p728 = scmp.lt.s32.totalorder %s16, 1
        %s729 = scalar_select %p728, %s16, 1
        %s730 = smul.addr %s729, 2
        %s731 = scalar_lea.vmem %s4, %s730
      $region48: #{_lambda_.7} parent=43 // pred_fallthru
        _
    $region44: #{_lambda_.7} parent=5 // pred_fallthru
      _
  $region6: #{_lambda_.7} parent=0 // loop_footer
    %s14 = sadd.s32 1, %s10
  $region7: #{_lambda_.7} parent=0 // loop_footer_branch
    %9 = sbr.rel target = $region3
  $region8: #{_lambda_.7} parent=0 // loop_exit
    _

// kernel: _lambda_.5
$region0: #{_lambda_.5}
  #allocation0 [shape = 'u32[]', space=smem, size = 0x4, offset = 0x4, fixed_abs, tag = 'smem constant byte address 0x4 - core index']
  #allocation1 [shape = 'u32[72,128]{1,0:T(1,128)}', space=vmem, size = 0x9000, scoped, tag = 'internal scratch']
  %s0 = inlined_call_operand.vmem [shape: bf16[2,16,16,8], index: 0, kind: input, shape index: {}]
  %s1 = inlined_call_operand.vmem [shape: bf16[72,8], index: 1, kind: input, shape index: {}]
  %s2 = inlined_call_operand.vmem [shape: f32[1,8], index: 2, kind: input, shape index: {}]
  %s3 = inlined_call_operand.vmem [shape: f32[1,8], index: 3, kind: input, shape index: {}]
  %s4 = inlined_call_operand.vmem [shape: bf16[2,8,8,8], index: 4, kind: output, shape index: {}]
  %s5 = sld [smem:[#allocation0]]
  $region49: #{_lambda_.5} parent=0
    _
  %s7 = ssub.s32 1, %s5
  %s8 = scalar_select 0, %s7, %s5
  loop: start=0, step=1, limit=4
  $region2: #{_lambda_.5} parent=0 // loop_pre_header
    _
  $region3: #{_lambda_.5} parent=0 // loop_header
    %s10 = sphi 0, %s14
    %p11 = scmp.ge.s32.totalorder %s10, 4
    %s20 = sphi 0, %s22
    %s23 = sphi 0, %s20
    %s24 = sphi 0, %s23
    %s40 = sphi 0, %s24
    %s44 = sphi 0, %s44
    %s46 = sphi 0, %s44
    %s47 = sphi 0, %s46
    %s61 = sphi 0, %s47
    %s65 = sphi 0, %s65
    %s67 = sphi 0, %s65
    %s68 = sphi 0, %s67
    %s82 = sphi 0, %s68
    %s86 = sphi 0, %s86
    %s88 = sphi 0, %s86
    %s89 = sphi 0, %s88
    %s103 = sphi 0, %s89
    %s109 = sphi 0, %s111
    %s112 = sphi 0, %s109
    %s113 = sphi 0, %s112
    %s129 = sphi 0, %s113
  $region4: #{_lambda_.5} parent=0 // loop_header_branch
    %13 = sbr.rel (%p11) target = $region8
  $region5: #{_lambda_.5} parent=0 // loop_body
    %s15 = ssub.s32 %s10, 1
    %s16 = ssub.s32 %s10, 2
    %s17 = sadd.s32 %s10, 1
    %s18 = ssub.s32 %s10, %s17
    %p19 = scmp.eq.s32.totalorder %s18, 0
    %s21 = sadd.s32 %s20, 1
    %s22 = scalar_select %p19, %s20, %s21
    %p25 = pneg %p19
    %p26 = scmp.eq.s32.totalorder %s10, 1
    %p27 = por %p25, %p26
    %p28 = scmp.ne.s32.totalorder %s20, %s23
    %p29 = scmp.eq.s32.totalorder %s10, 0
    %p30 = por %p28, %p29
    %p31 = scmp.ne.s32.totalorder %s20, %s23
    %p32 = scmp.eq.s32.totalorder %s15, 1
    %p33 = por %p31, %p32
    %p34 = scmp.ne.s32.totalorder %s23, %s24
    %p35 = scmp.eq.s32.totalorder %s15, 0
    %p36 = por %p34, %p35
    %p37 = scmp.ne.s32.totalorder %s23, %s24
    %p38 = scmp.eq.s32.totalorder %s16, 1
    %p39 = por %p37, %p38
    %p41 = scmp.ne.s32.totalorder %s24, %s40
    %p42 = scmp.eq.s32.totalorder %s16, 0
    %p43 = por %p41, %p42
    %s45 = sadd.s32 %s44, 1
    %p48 = scmp.eq.s32.totalorder %s10, 1
    %p49 = scmp.ne.s32.totalorder %s44, %s46
    %p50 = scmp.eq.s32.totalorder %s10, 0
    %p51 = por %p49, %p50
    %p52 = scmp.ne.s32.totalorder %s44, %s46
    %p53 = scmp.eq.s32.totalorder %s15, 1
    %p54 = por %p52, %p53
    %p55 = scmp.ne.s32.totalorder %s46, %s47
    %p56 = scmp.eq.s32.totalorder %s15, 0
    %p57 = por %p55, %p56
    %p58 = scmp.ne.s32.totalorder %s46, %s47
    %p59 = scmp.eq.s32.totalorder %s16, 1
    %p60 = por %p58, %p59
    %p62 = scmp.ne.s32.totalorder %s47, %s61
    %p63 = scmp.eq.s32.totalorder %s16, 0
    %p64 = por %p62, %p63
    %s66 = sadd.s32 %s65, 1
    %p69 = scmp.eq.s32.totalorder %s10, 1
    %p70 = scmp.ne.s32.totalorder %s65, %s67
    %p71 = scmp.eq.s32.totalorder %s10, 0
    %p72 = por %p70, %p71
    %p73 = scmp.ne.s32.totalorder %s65, %s67
    %p74 = scmp.eq.s32.totalorder %s15, 1
    %p75 = por %p73, %p74
    %p76 = scmp.ne.s32.totalorder %s67, %s68
    %p77 = scmp.eq.s32.totalorder %s15, 0
    %p78 = por %p76, %p77
    %p79 = scmp.ne.s32.totalorder %s67, %s68
    %p80 = scmp.eq.s32.totalorder %s16, 1
    %p81 = por %p79, %p80
    %p83 = scmp.ne.s32.totalorder %s68, %s82
    %p84 = scmp.eq.s32.totalorder %s16, 0
    %p85 = por %p83, %p84
    %s87 = sadd.s32 %s86, 1
    %p90 = scmp.eq.s32.totalorder %s10, 1
    %p91 = scmp.ne.s32.totalorder %s86, %s88
    %p92 = scmp.eq.s32.totalorder %s10, 0
    %p93 = por %p91, %p92
    %p94 = scmp.ne.s32.totalorder %s86, %s88
    %p95 = scmp.eq.s32.totalorder %s15, 1
    %p96 = por %p94, %p95
    %p97 = scmp.ne.s32.totalorder %s88, %s89
    %p98 = scmp.eq.s32.totalorder %s15, 0
    %p99 = por %p97, %p98
    %p100 = scmp.ne.s32.totalorder %s88, %s89
    %p101 = scmp.eq.s32.totalorder %s16, 1
    %p102 = por %p100, %p101
    %p104 = scmp.ne.s32.totalorder %s89, %s103
    %p105 = scmp.eq.s32.totalorder %s16, 0
    %p106 = por %p104, %p105
    %s107 = ssub.s32 %s10, %s17
    %p108 = scmp.eq.s32.totalorder %s107, 0
    %s110 = sadd.s32 %s109, 1
    %s111 = scalar_select %p108, %s109, %s110
    %p114 = pneg %p108
    %p115 = scmp.eq.s32.totalorder %s10, 1
    %p116 = por %p114, %p115
    %p117 = scmp.ne.s32.totalorder %s109, %s112
    %p118 = scmp.eq.s32.totalorder %s10, 0
    %p119 = por %p117, %p118
    %p120 = scmp.ne.s32.totalorder %s109, %s112
    %p121 = scmp.eq.s32.totalorder %s15, 1
    %p122 = por %p120, %p121
    %p123 = scmp.ne.s32.totalorder %s112, %s113
    %p124 = scmp.eq.s32.totalorder %s15, 0
    %p125 = por %p123, %p124
    %p126 = scmp.ne.s32.totalorder %s112, %s113
    %p127 = scmp.eq.s32.totalorder %s16, 1
    %p128 = por %p126, %p127
    %p130 = scmp.ne.s32.totalorder %s113, %s129
    %p131 = scmp.eq.s32.totalorder %s16, 0
    %p132 = por %p130, %p131
    %p133 = scmp.le.s32.totalorder 1, %s10
    %p134 = scmp.lt.s32.totalorder %s10, 3
    %p135 = pnand %p133, %p134
    %p136 = pneg %p135
    // Predicated region
    $region9: #{_lambda_.5} parent=5 // pred_check
      _
    $region10: #{_lambda_.5} parent=5 // pred_check_branch
      %138 = sbr.rel (%p135) target = $region12
    $region11: #{_lambda_.5} parent=5 // pred_region
      %s139 = ssub.s32 %s10, 1
      // Predicated region
      $region13: #{_lambda_.5} parent=11 // pred_check
        %p140 = pneg %p57
      $region14: #{_lambda_.5} parent=11 // pred_check_branch
        %142 = sbr.rel (%p140) target = $region16
      $region15: #{_lambda_.5} parent=11 // pred_region
        _
      $region16: #{_lambda_.5} parent=11 // pred_fallthru
        _
      // Predicated region
      $region17: #{_lambda_.5} parent=11 // pred_check
        %p143 = pneg %p78
      $region18: #{_lambda_.5} parent=11 // pred_check_branch
        %145 = sbr.rel (%p143) target = $region20
      $region19: #{_lambda_.5} parent=11 // pred_region
        _
      $region20: #{_lambda_.5} parent=11 // pred_fallthru
        _
      // Predicated region
      $region21: #{_lambda_.5} parent=11 // pred_check
        %p146 = pneg %p99
      $region22: #{_lambda_.5} parent=11 // pred_check_branch
        %148 = sbr.rel (%p146) target = $region24
      $region23: #{_lambda_.5} parent=11 // pred_region
        _
      $region24: #{_lambda_.5} parent=11 // pred_fallthru
        _
    $region12: #{_lambda_.5} parent=5 // pred_fallthru
      _
    %p149 = scmp.lt.s32.totalorder %s10, 2
    // Predicated region
    $region25: #{_lambda_.5} parent=5 // pred_check
      %p150 = pneg %p149
    $region26: #{_lambda_.5} parent=5 // pred_check_branch
      %152 = sbr.rel (%p150) target = $region28
    $region27: #{_lambda_.5} parent=5 // pred_region
      // Predicated region
      $region29: #{_lambda_.5} parent=27 // pred_check
        %p153 = pneg %p30
      $region30: #{_lambda_.5} parent=27 // pred_check_branch
        %155 = sbr.rel (%p153) target = $region32
      $region31: #{_lambda_.5} parent=27 // pred_region
        %p156 = scmp.lt.s32.totalorder %s10, 1
        %s157 = scalar_select %p156, %s10, 1
        %s158 = smul.addr %s157, 32
        %s159 = smul.addr %s158, 4
        %s160 = scalar_lea.vmem %s0, %s159
      $region32: #{_lambda_.5} parent=27 // pred_fallthru
        _
    $region28: #{_lambda_.5} parent=5 // pred_fallthru
      _
    %p161 = scmp.le.s32.totalorder 1, %s10
    %p162 = scmp.lt.s32.totalorder %s10, 3
    %p163 = pnand %p161, %p162
    %p164 = pneg %p163
    // Predicated region
    $region33: #{_lambda_.5} parent=5 // pred_check
      _
    $region34: #{_lambda_.5} parent=5 // pred_check_branch
      %166 = sbr.rel (%p163) target = $region36
    $region35: #{_lambda_.5} parent=5 // pred_region
      %s167 = ssub.s32 %s10, 1
      %p168 = scmp.lt.s32.totalorder %s15, 1
      %s169 = scalar_select %p168, %s15, 1
      %s170 = smul.addr %s169, 32
      %s171 = smul.addr %s170, 4
      %s172 = scalar_lea.vmem %s0, %s171
      %p173 = pneg %p36
      %p174 = pneg %p33
      %p175 = pneg %p57
      %p176 = pneg %p54
      %p177 = pneg %p78
      %p178 = pneg %p75
      %p179 = pneg %p99
      %p180 = pneg %p96
      %p181 = pneg %p125
      %p182 = pneg %p122
      %p183 = scmp.lt.s32.totalorder %s15, 1
      %s184 = scalar_select %p183, %s15, 1
      %s185 = smul.addr %s184, 8
      %s186 = smul.addr %s185, 4
      %s187 = scalar_lea.vmem %s4, %s186
      %p188 = scmp.lt.s32.totalorder %s15, 1
      %s189 = scalar_select %p188, %s15, 1
      %s190 = smul.addr %s189, 32
      %s191 = smul.addr %s190, 4
      %s192 = scalar_lea.vmem %s0, %s191
      %p193 = scmp.lt.s32.totalorder %s15, 1
      %s194 = scalar_select %p193, %s15, 1
      %s195 = smul.addr %s194, 8
      %s196 = smul.addr %s195, 4
      %s197 = scalar_lea.vmem %s4, %s196
      %v199 = vld [vmem:[%s192] sm:$0xf]
      %v200 = vld [vmem:[%s192 + $0x4] sm:$0xf]
      %v201 = vld [vmem:[%s192 + $0x8] sm:$0xf]
      %v202 = vld [vmem:[%s192 + $0xc] sm:$0xf]
      %v203 = vld [vmem:[%s192 + $0x10] sm:$0xf]
      %v204 = vld [vmem:[%s192 + $0x14] sm:$0xf]
      %v205 = vld [vmem:[%s192 + $0x18] sm:$0xf]
      %v206 = vld [vmem:[%s192 + $0x1c] sm:$0xf]
      %v207 = vld [vmem:[%s192 + $0x20] sm:$0xf]
      %v208 = vld [vmem:[%s192 + $0x24] sm:$0xf]
      %v209 = vld [vmem:[%s192 + $0x28] sm:$0xf]
      %v210 = vld [vmem:[%s192 + $0x2c] sm:$0xf]
      %v211 = vld [vmem:[%s192 + $0x30] sm:$0xf]
      %v212 = vld [vmem:[%s192 + $0x34] sm:$0xf]
      %v213 = vld [vmem:[%s192 + $0x38] sm:$0xf]
      %v214 = vld [vmem:[%s192 + $0x3c] sm:$0xf]
      %v215 = vld [vmem:[%s192 + $0x40] sm:$0xf]
      %v216 = vld [vmem:[%s192 + $0x44] sm:$0xf]
      %v217 = vld [vmem:[%s192 + $0x48] sm:$0xf]
      %v218 = vld [vmem:[%s192 + $0x4c] sm:$0xf]
      %v219 = vld [vmem:[%s192 + $0x50] sm:$0xf]
      %v220 = vld [vmem:[%s192 + $0x54] sm:$0xf]
      %v221 = vld [vmem:[%s192 + $0x58] sm:$0xf]
      %v222 = vld [vmem:[%s192 + $0x5c] sm:$0xf]
      %v223 = vld [vmem:[%s192 + $0x60] sm:$0xf]
      %v224 = vld [vmem:[%s192 + $0x64] sm:$0xf]
      %v225 = vld [vmem:[%s192 + $0x68] sm:$0xf]
      %v226 = vld [vmem:[%s192 + $0x6c] sm:$0xf]
      %v227 = vld [vmem:[%s192 + $0x70] sm:$0xf]
      %v228 = vld [vmem:[%s192 + $0x74] sm:$0xf]
      %v229 = vld [vmem:[%s192 + $0x78] sm:$0xf]
      %v230 = vld [vmem:[%s192 + $0x7c] sm:$0xf]
      %v263 = vunpack.c.l.b16 %v199
      %v264 = vunpack.c.l.b16 %v200
      %v265 = vunpack.c.l.b16 %v201
      %v266 = vunpack.c.l.b16 %v202
      %v267 = vunpack.c.l.b16 %v203
      %v268 = vunpack.c.l.b16 %v204
      %v269 = vunpack.c.l.b16 %v205
      %v270 = vunpack.c.l.b16 %v206
      %v271 = vunpack.c.l.b16 %v207
      %v272 = vunpack.c.l.b16 %v208
      %v273 = vunpack.c.l.b16 %v209
      %v274 = vunpack.c.l.b16 %v210
      %v275 = vunpack.c.l.b16 %v211
      %v276 = vunpack.c.l.b16 %v212
      %v277 = vunpack.c.l.b16 %v213
      %v278 = vunpack.c.l.b16 %v214
      %v279 = vunpack.c.l.b16 %v215
      %v280 = vunpack.c.l.b16 %v216
      %v281 = vunpack.c.l.b16 %v217
      %v282 = vunpack.c.l.b16 %v218
      %v283 = vunpack.c.l.b16 %v219
      %v284 = vunpack.c.l.b16 %v220
      %v285 = vunpack.c.l.b16 %v221
      %v286 = vunpack.c.l.b16 %v222
      %v287 = vunpack.c.l.b16 %v223
      %v288 = vunpack.c.l.b16 %v224
      %v289 = vunpack.c.l.b16 %v225
      %v290 = vunpack.c.l.b16 %v226
      %v291 = vunpack.c.l.b16 %v227
      %v292 = vunpack.c.l.b16 %v228
      %v293 = vunpack.c.l.b16 %v229
      %v294 = vunpack.c.l.b16 %v230
      %v295 = vpack.c.b16 %v264, %v263
      %v296 = vpack.c.b16 %v266, %v265
      %v297 = vpack.c.b16 %v268, %v267
      %v298 = vpack.c.b16 %v270, %v269
      %v299 = vpack.c.b16 %v272, %v271
      %v300 = vpack.c.b16 %v274, %v273
      %v301 = vpack.c.b16 %v276, %v275
      %v302 = vpack.c.b16 %v278, %v277
      %v303 = vpack.c.b16 %v280, %v279
      %v304 = vpack.c.b16 %v282, %v281
      %v305 = vpack.c.b16 %v284, %v283
      %v306 = vpack.c.b16 %v286, %v285
      %v307 = vpack.c.b16 %v288, %v287
      %v308 = vpack.c.b16 %v290, %v289
      %v309 = vpack.c.b16 %v292, %v291
      %v310 = vpack.c.b16 %v294, %v293
      %v312 = vshrl.u32 0, 16
      %v314 = vrot.slane %v312, 7
      %v315 = vshll.u32 0, 16
      %v317 = vor.u32 %v314, %v315
      %v319 = vshrl.u32 %v295, 16
      %v321 = vrot.slane %v319, 7
      %v322 = vshll.u32 %v295, 16
      %v324 = vor.u32 %v321, %v322
      %v326 = vshrl.u32 %v296, 16
      %v328 = vrot.slane %v326, 7
      %v329 = vshll.u32 %v296, 16
      %v331 = vor.u32 %v328, %v329
      %v333 = vshrl.u32 %v297, 16
      %v335 = vrot.slane %v333, 7
      %v336 = vshll.u32 %v297, 16
      %v338 = vor.u32 %v335, %v336
      %v340 = vshrl.u32 %v298, 16
      %v342 = vrot.slane %v340, 7
      %v343 = vshll.u32 %v298, 16
      %v345 = vor.u32 %v342, %v343
      %v347 = vshrl.u32 %v299, 16
      %v349 = vrot.slane %v347, 7
      %v350 = vshll.u32 %v299, 16
      %v352 = vor.u32 %v349, %v350
      %v354 = vshrl.u32 %v300, 16
      %v356 = vrot.slane %v354, 7
      %v357 = vshll.u32 %v300, 16
      %v359 = vor.u32 %v356, %v357
      %v361 = vshrl.u32 %v301, 16
      %v363 = vrot.slane %v361, 7
      %v364 = vshll.u32 %v301, 16
      %v366 = vor.u32 %v363, %v364
      %v368 = vshrl.u32 %v302, 16
      %v370 = vrot.slane %v368, 7
      %v371 = vshll.u32 %v302, 16
      %v373 = vor.u32 %v370, %v371
      %v375 = vshrl.u32 %v303, 16
      %v377 = vrot.slane %v375, 7
      %v378 = vshll.u32 %v303, 16
      %v380 = vor.u32 %v377, %v378
      %v382 = vshrl.u32 %v304, 16
      %v384 = vrot.slane %v382, 7
      %v385 = vshll.u32 %v304, 16
      %v387 = vor.u32 %v384, %v385
      %v389 = vshrl.u32 %v305, 16
      %v391 = vrot.slane %v389, 7
      %v392 = vshll.u32 %v305, 16
      %v394 = vor.u32 %v391, %v392
      %v396 = vshrl.u32 %v306, 16
      %v398 = vrot.slane %v396, 7
      %v399 = vshll.u32 %v306, 16
      %v401 = vor.u32 %v398, %v399
      %v403 = vshrl.u32 %v307, 16
      %v405 = vrot.slane %v403, 7
      %v406 = vshll.u32 %v307, 16
      %v408 = vor.u32 %v405, %v406
      %v410 = vshrl.u32 %v308, 16
      %v412 = vrot.slane %v410, 7
      %v413 = vshll.u32 %v308, 16
      %v415 = vor.u32 %v412, %v413
      %v417 = vshrl.u32 %v309, 16
      %v419 = vrot.slane %v417, 7
      %v420 = vshll.u32 %v309, 16
      %v422 = vor.u32 %v419, %v420
      %v424 = vshrl.u32 %v310, 16
      %v426 = vrot.slane %v424, 7
      %v427 = vshll.u32 %v310, 16
      %v429 = vor.u32 %v426, %v427
      %vm464 = vcmask 1040384
      %vm465 = vsmask.f32 256
      %vm466 = vmand %vm464, %vm465
      %v467 = vsel %vm466, 0, %v317
      %v468 = vsel %vm466, 0, %v324
      %v469 = vsel %vm466, 0, %v331
      %v470 = vsel %vm466, 0, %v338
      %v471 = vsel %vm466, 0, %v345
      %v472 = vsel %vm466, 0, %v352
      %v473 = vsel %vm466, 0, %v359
      %v474 = vsel %vm466, 0, %v366
      %v475 = vsel %vm466, 0, %v373
      %v476 = vsel %vm466, 0, %v380
      %v477 = vsel %vm466, 0, %v387
      %v478 = vsel %vm466, 0, %v394
      %v479 = vsel %vm466, 0, %v401
      %v480 = vsel %vm466, 0, %v408
      %v481 = vsel %vm466, 0, %v415
      %v482 = vsel %vm466, 0, %v422
      %v483 = vsel %vm466, 0, %v429
      %v484 = vsel %vm466, %v314, 0
      %v485 = vsel %vm466, %v321, 0
      %v486 = vsel %vm466, %v328, 0
      %v487 = vsel %vm466, %v335, 0
      %v488 = vsel %vm466, %v342, 0
      %v489 = vsel %vm466, %v349, 0
      %v490 = vsel %vm466, %v356, 0
      %v491 = vsel %vm466, %v363, 0
      %v492 = vsel %vm466, %v370, 0
      %v493 = vsel %vm466, %v377, 0
      %v494 = vsel %vm466, %v384, 0
      %v495 = vsel %vm466, %v391, 0
      %v496 = vsel %vm466, %v398, 0
      %v497 = vsel %vm466, %v405, 0
      %v498 = vsel %vm466, %v412, 0
      %v499 = vsel %vm466, %v419, 0
      %v500 = vsel %vm466, %v426, 0
      %vm501 = vsmask.f32 7424
      %v503 = vshrl.u32 %v467, 16
      %v505 = vshll.u32 %v467, 16
      %v507 = vrot.slane %v505, 1
      %v508 = vor.u32 %v503, %v507
      %v510 = vshll.u32 %v484, 16
      %v512 = vrot.slane %v510, 1
      %v513 = vsel %vm501, %v508, %v512
      %v515 = vshrl.u32 %v468, 16
      %v517 = vshll.u32 %v468, 16
      %v519 = vrot.slane %v517, 1
      %v520 = vor.u32 %v515, %v519
      %v522 = vshll.u32 %v485, 16
      %v524 = vrot.slane %v522, 1
      %v525 = vsel %vm501, %v520, %v524
      %v527 = vshrl.u32 %v469, 16
      %v529 = vshll.u32 %v469, 16
      %v531 = vrot.slane %v529, 1
      %v532 = vor.u32 %v527, %v531
      %v534 = vshll.u32 %v486, 16
      %v536 = vrot.slane %v534, 1
      %v537 = vsel %vm501, %v532, %v536
      %v539 = vshrl.u32 %v470, 16
      %v541 = vshll.u32 %v470, 16
      %v543 = vrot.slane %v541, 1
      %v544 = vor.u32 %v539, %v543
      %v546 = vshll.u32 %v487, 16
      %v548 = vrot.slane %v546, 1
      %v549 = vsel %vm501, %v544, %v548
      %v551 = vshrl.u32 %v471, 16
      %v553 = vshll.u32 %v471, 16
      %v555 = vrot.slane %v553, 1
      %v556 = vor.u32 %v551, %v555
      %v558 = vshll.u32 %v488, 16
      %v560 = vrot.slane %v558, 1
      %v561 = vsel %vm501, %v556, %v560
      %v563 = vshrl.u32 %v472, 16
      %v565 = vshll.u32 %v472, 16
      %v567 = vrot.slane %v565, 1
      %v568 = vor.u32 %v563, %v567
      %v570 = vshll.u32 %v489, 16
      %v572 = vrot.slane %v570, 1
      %v573 = vsel %vm501, %v568, %v572
      %v575 = vshrl.u32 %v473, 16
      %v577 = vshll.u32 %v473, 16
      %v579 = vrot.slane %v577, 1
      %v580 = vor.u32 %v575, %v579
      %v582 = vshll.u32 %v490, 16
      %v584 = vrot.slane %v582, 1
      %v585 = vsel %vm501, %v580, %v584
      %v587 = vshrl.u32 %v474, 16
      %v589 = vshll.u32 %v474, 16
      %v591 = vrot.slane %v589, 1
      %v592 = vor.u32 %v587, %v591
      %v594 = vshll.u32 %v491, 16
      %v596 = vrot.slane %v594, 1
      %v597 = vsel %vm501, %v592, %v596
      %v599 = vshrl.u32 %v475, 16
      %v601 = vshll.u32 %v475, 16
      %v603 = vrot.slane %v601, 1
      %v604 = vor.u32 %v599, %v603
      %v606 = vshll.u32 %v492, 16
      %v608 = vrot.slane %v606, 1
      %v609 = vsel %vm501, %v604, %v608
      %v611 = vshrl.u32 %v476, 16
      %v613 = vshll.u32 %v476, 16
      %v615 = vrot.slane %v613, 1
      %v616 = vor.u32 %v611, %v615
      %v618 = vshll.u32 %v493, 16
      %v620 = vrot.slane %v618, 1
      %v621 = vsel %vm501, %v616, %v620
      %v623 = vshrl.u32 %v477, 16
      %v625 = vshll.u32 %v477, 16
      %v627 = vrot.slane %v625, 1
      %v628 = vor.u32 %v623, %v627
      %v630 = vshll.u32 %v494, 16
      %v632 = vrot.slane %v630, 1
      %v633 = vsel %vm501, %v628, %v632
      %v635 = vshrl.u32 %v478, 16
      %v637 = vshll.u32 %v478, 16
      %v639 = vrot.slane %v637, 1
      %v640 = vor.u32 %v635, %v639
      %v642 = vshll.u32 %v495, 16
      %v644 = vrot.slane %v642, 1
      %v645 = vsel %vm501, %v640, %v644
      %v647 = vshrl.u32 %v479, 16
      %v649 = vshll.u32 %v479, 16
      %v651 = vrot.slane %v649, 1
      %v652 = vor.u32 %v647, %v651
      %v654 = vshll.u32 %v496, 16
      %v656 = vrot.slane %v654, 1
      %v657 = vsel %vm501, %v652, %v656
      %v659 = vshrl.u32 %v480, 16
      %v661 = vshll.u32 %v480, 16
      %v663 = vrot.slane %v661, 1
      %v664 = vor.u32 %v659, %v663
      %v666 = vshll.u32 %v497, 16
      %v668 = vrot.slane %v666, 1
      %v669 = vsel %vm501, %v664, %v668
      %v671 = vshrl.u32 %v481, 16
      %v673 = vshll.u32 %v481, 16
      %v675 = vrot.slane %v673, 1
      %v676 = vor.u32 %v671, %v675
      %v678 = vshll.u32 %v498, 16
      %v680 = vrot.slane %v678, 1
      %v681 = vsel %vm501, %v676, %v680
      %v683 = vshrl.u32 %v482, 16
      %v685 = vshll.u32 %v482, 16
      %v687 = vrot.slane %v685, 1
      %v688 = vor.u32 %v683, %v687
      %v690 = vshll.u32 %v499, 16
      %v692 = vrot.slane %v690, 1
      %v693 = vsel %vm501, %v688, %v692
      %vm726 = vcmask 1046528
      %v727 = vrot.slane %v467, 1
      %v728 = vrot.slane %v484, 1
      %v729 = vsel %vm726, %v727, %v728
      %v730 = vrot.slane %v468, 1
      %v731 = vrot.slane %v485, 1
      %v732 = vsel %vm726, %v730, %v731
      %v733 = vrot.slane %v469, 1
      %v734 = vrot.slane %v486, 1
      %v735 = vsel %vm726, %v733, %v734
      %v736 = vrot.slane %v470, 1
      %v737 = vrot.slane %v487, 1
      %v738 = vsel %vm726, %v736, %v737
      %v739 = vrot.slane %v471, 1
      %v740 = vrot.slane %v488, 1
      %v741 = vsel %vm726, %v739, %v740
      %v742 = vrot.slane %v472, 1
      %v743 = vrot.slane %v489, 1
      %v744 = vsel %vm726, %v742, %v743
      %v745 = vrot.slane %v473, 1
      %v746 = vrot.slane %v490, 1
      %v747 = vsel %vm726, %v745, %v746
      %v748 = vrot.slane %v474, 1
      %v749 = vrot.slane %v491, 1
      %v750 = vsel %vm726, %v748, %v749
      %v751 = vrot.slane %v475, 1
      %v752 = vrot.slane %v492, 1
      %v753 = vsel %vm726, %v751, %v752
      %v754 = vrot.slane %v476, 1
      %v755 = vrot.slane %v493, 1
      %v756 = vsel %vm726, %v754, %v755
      %v757 = vrot.slane %v477, 1
      %v758 = vrot.slane %v494, 1
      %v759 = vsel %vm726, %v757, %v758
      %v760 = vrot.slane %v478, 1
      %v761 = vrot.slane %v495, 1
      %v762 = vsel %vm726, %v760, %v761
      %v763 = vrot.slane %v479, 1
      %v764 = vrot.slane %v496, 1
      %v765 = vsel %vm726, %v763, %v764
      %v766 = vrot.slane %v480, 1
      %v767 = vrot.slane %v497, 1
      %v768 = vsel %vm726, %v766, %v767
      %v769 = vrot.slane %v481, 1
      %v770 = vrot.slane %v498, 1
      %v771 = vsel %vm726, %v769, %v770
      %v772 = vrot.slane %v482, 1
      %v773 = vrot.slane %v499, 1
      %v774 = vsel %vm726, %v772, %v773
      %v776 = vshrl.u32 %v483, 16
      %v778 = vshll.u32 %v483, 16
      %v780 = vrot.slane %v778, 1
      %v781 = vor.u32 %v776, %v780
      %v783 = vshll.u32 %v500, 16
      %v785 = vrot.slane %v783, 1
      %v786 = vsel %vm501, %v781, %v785
      %v789 = vrot.slane %v483, 1
      %v790 = vrot.slane %v500, 1
      %v791 = vsel %vm726, %v789, %v790
      %792 = vrot.lane.b32.xlu0 %v513, 8
      %v793 = vpop.permute.xlu0 %792
      %794 = vrot.lane.b32.xlu0 %v525, 8
      %v795 = vpop.permute.xlu0 %794
      %796 = vrot.lane.b32.xlu0 %v537, 8
      %v797 = vpop.permute.xlu0 %796
      %798 = vrot.lane.b32.xlu0 %v549, 8
      %v799 = vpop.permute.xlu0 %798
      %800 = vrot.lane.b32.xlu0 %v561, 8
      %v801 = vpop.permute.xlu0 %800
      %802 = vrot.lane.b32.xlu0 %v573, 8
      %v803 = vpop.permute.xlu0 %802
      %804 = vrot.lane.b32.xlu0 %v585, 8
      %v805 = vpop.permute.xlu0 %804
      %806 = vrot.lane.b32.xlu0 %v597, 8
      %v807 = vpop.permute.xlu0 %806
      %808 = vrot.lane.b32.xlu0 %v609, 8
      %v809 = vpop.permute.xlu0 %808
      %810 = vrot.lane.b32.xlu0 %v621, 8
      %v811 = vpop.permute.xlu0 %810
      %812 = vrot.lane.b32.xlu0 %v633, 8
      %v813 = vpop.permute.xlu0 %812
      %814 = vrot.lane.b32.xlu0 %v645, 8
      %v815 = vpop.permute.xlu0 %814
      %816 = vrot.lane.b32.xlu0 %v657, 8
      %v817 = vpop.permute.xlu0 %816
      %818 = vrot.lane.b32.xlu0 %v669, 8
      %v819 = vpop.permute.xlu0 %818
      %820 = vrot.lane.b32.xlu0 %v681, 8
      %v821 = vpop.permute.xlu0 %820
      %822 = vrot.lane.b32.xlu0 %v693, 8
      %v823 = vpop.permute.xlu0 %822
      %824 = vrot.lane.b32.xlu0 %v729, 16
      %v825 = vpop.permute.xlu0 %824
      %826 = vrot.lane.b32.xlu0 %v732, 16
      %v827 = vpop.permute.xlu0 %826
      %828 = vrot.lane.b32.xlu0 %v735, 16
      %v829 = vpop.permute.xlu0 %828
      %830 = vrot.lane.b32.xlu0 %v738, 16
      %v831 = vpop.permute.xlu0 %830
      %832 = vrot.lane.b32.xlu0 %v741, 16
      %v833 = vpop.permute.xlu0 %832
      %834 = vrot.lane.b32.xlu0 %v744, 16
      %v835 = vpop.permute.xlu0 %834
      %836 = vrot.lane.b32.xlu0 %v747, 16
      %v837 = vpop.permute.xlu0 %836
      %838 = vrot.lane.b32.xlu0 %v750, 16
      %v839 = vpop.permute.xlu0 %838
      %840 = vrot.lane.b32.xlu0 %v753, 16
      %v841 = vpop.permute.xlu0 %840
      %842 = vrot.lane.b32.xlu0 %v756, 16
      %v843 = vpop.permute.xlu0 %842
      %844 = vrot.lane.b32.xlu0 %v759, 16
      %v845 = vpop.permute.xlu0 %844
      %846 = vrot.lane.b32.xlu0 %v762, 16
      %v847 = vpop.permute.xlu0 %846
      %848 = vrot.lane.b32.xlu0 %v765, 16
      %v849 = vpop.permute.xlu0 %848
      %850 = vrot.lane.b32.xlu0 %v768, 16
      %v851 = vpop.permute.xlu0 %850
      %852 = vrot.lane.b32.xlu0 %v771, 16
      %v853 = vpop.permute.xlu0 %852
      %854 = vrot.lane.b32.xlu0 %v774, 16
      %v855 = vpop.permute.xlu0 %854
      %856 = vrot.lane.b32.xlu0 %v468, 24
      %v857 = vpop.permute.xlu0 %856
      %858 = vrot.lane.b32.xlu0 %v469, 24
      %v859 = vpop.permute.xlu0 %858
      %860 = vrot.lane.b32.xlu0 %v470, 24
      %v861 = vpop.permute.xlu0 %860
      %862 = vrot.lane.b32.xlu0 %v471, 24
      %v863 = vpop.permute.xlu0 %862
      %864 = vrot.lane.b32.xlu0 %v472, 24
      %v865 = vpop.permute.xlu0 %864
      %866 = vrot.lane.b32.xlu0 %v473, 24
      %v867 = vpop.permute.xlu0 %866
      %868 = vrot.lane.b32.xlu0 %v474, 24
      %v869 = vpop.permute.xlu0 %868
      %870 = vrot.lane.b32.xlu0 %v475, 24
      %v871 = vpop.permute.xlu0 %870
      %872 = vrot.lane.b32.xlu0 %v476, 24
      %v873 = vpop.permute.xlu0 %872
      %874 = vrot.lane.b32.xlu0 %v477, 24
      %v875 = vpop.permute.xlu0 %874
      %876 = vrot.lane.b32.xlu0 %v478, 24
      %v877 = vpop.permute.xlu0 %876
      %878 = vrot.lane.b32.xlu0 %v479, 24
      %v879 = vpop.permute.xlu0 %878
      %880 = vrot.lane.b32.xlu0 %v480, 24
      %v881 = vpop.permute.xlu0 %880
      %882 = vrot.lane.b32.xlu0 %v481, 24
      %v883 = vpop.permute.xlu0 %882
      %884 = vrot.lane.b32.xlu0 %v482, 24
      %v885 = vpop.permute.xlu0 %884
      %886 = vrot.lane.b32.xlu0 %v483, 24
      %v887 = vpop.permute.xlu0 %886
      %888 = vrot.lane.b32.xlu0 %v525, 32
      %v889 = vpop.permute.xlu0 %888
      %890 = vrot.lane.b32.xlu0 %v537, 32
      %v891 = vpop.permute.xlu0 %890
      %892 = vrot.lane.b32.xlu0 %v549, 32
      %v893 = vpop.permute.xlu0 %892
      %894 = vrot.lane.b32.xlu0 %v561, 32
      %v895 = vpop.permute.xlu0 %894
      %896 = vrot.lane.b32.xlu0 %v573, 32
      %v897 = vpop.permute.xlu0 %896
      %898 = vrot.lane.b32.xlu0 %v585, 32
      %v899 = vpop.permute.xlu0 %898
      %900 = vrot.lane.b32.xlu0 %v597, 32
      %v901 = vpop.permute.xlu0 %900
      %902 = vrot.lane.b32.xlu0 %v609, 32
      %v903 = vpop.permute.xlu0 %902
      %904 = vrot.lane.b32.xlu0 %v621, 32
      %v905 = vpop.permute.xlu0 %904
      %906 = vrot.lane.b32.xlu0 %v633, 32
      %v907 = vpop.permute.xlu0 %906
      %908 = vrot.lane.b32.xlu0 %v645, 32
      %v909 = vpop.permute.xlu0 %908
      %910 = vrot.lane.b32.xlu0 %v657, 32
      %v911 = vpop.permute.xlu0 %910
      %912 = vrot.lane.b32.xlu0 %v669, 32
      %v913 = vpop.permute.xlu0 %912
      %914 = vrot.lane.b32.xlu0 %v681, 32
      %v915 = vpop.permute.xlu0 %914
      %916 = vrot.lane.b32.xlu0 %v693, 32
      %v917 = vpop.permute.xlu0 %916
      %918 = vrot.lane.b32.xlu0 %v786, 32
      %v919 = vpop.permute.xlu0 %918
      %920 = vrot.lane.b32.xlu0 %v732, 40
      %v921 = vpop.permute.xlu0 %920
      %922 = vrot.lane.b32.xlu0 %v735, 40
      %v923 = vpop.permute.xlu0 %922
      %924 = vrot.lane.b32.xlu0 %v738, 40
      %v925 = vpop.permute.xlu0 %924
      %926 = vrot.lane.b32.xlu0 %v741, 40
      %v927 = vpop.permute.xlu0 %926
      %928 = vrot.lane.b32.xlu0 %v744, 40
      %v929 = vpop.permute.xlu0 %928
      %930 = vrot.lane.b32.xlu0 %v747, 40
      %v931 = vpop.permute.xlu0 %930
      %932 = vrot.lane.b32.xlu0 %v750, 40
      %v933 = vpop.permute.xlu0 %932
      %934 = vrot.lane.b32.xlu0 %v753, 40
      %v935 = vpop.permute.xlu0 %934
      %936 = vrot.lane.b32.xlu0 %v756, 40
      %v937 = vpop.permute.xlu0 %936
      %938 = vrot.lane.b32.xlu0 %v759, 40
      %v939 = vpop.permute.xlu0 %938
      %940 = vrot.lane.b32.xlu0 %v762, 40
      %v941 = vpop.permute.xlu0 %940
      %942 = vrot.lane.b32.xlu0 %v765, 40
      %v943 = vpop.permute.xlu0 %942
      %944 = vrot.lane.b32.xlu0 %v768, 40
      %v945 = vpop.permute.xlu0 %944
      %946 = vrot.lane.b32.xlu0 %v771, 40
      %v947 = vpop.permute.xlu0 %946
      %948 = vrot.lane.b32.xlu0 %v774, 40
      %v949 = vpop.permute.xlu0 %948
      %950 = vrot.lane.b32.xlu0 %v791, 40
      %v951 = vpop.permute.xlu0 %950
      %952 = vrot.lane.b32.xlu0 %v469, 48
      %v953 = vpop.permute.xlu0 %952
      %954 = vrot.lane.b32.xlu0 %v470, 48
      %v955 = vpop.permute.xlu0 %954
      %956 = vrot.lane.b32.xlu0 %v471, 48
      %v957 = vpop.permute.xlu0 %956
      %958 = vrot.lane.b32.xlu0 %v472, 48
      %v959 = vpop.permute.xlu0 %958
      %960 = vrot.lane.b32.xlu0 %v473, 48
      %v961 = vpop.permute.xlu0 %960
      %962 = vrot.lane.b32.xlu0 %v474, 48
      %v963 = vpop.permute.xlu0 %962
      %964 = vrot.lane.b32.xlu0 %v475, 48
      %v965 = vpop.permute.xlu0 %964
      %966 = vrot.lane.b32.xlu0 %v476, 48
      %v967 = vpop.permute.xlu0 %966
      %968 = vrot.lane.b32.xlu0 %v477, 48
      %v969 = vpop.permute.xlu0 %968
      %970 = vrot.lane.b32.xlu0 %v478, 48
      %v971 = vpop.permute.xlu0 %970
      %972 = vrot.lane.b32.xlu0 %v479, 48
      %v973 = vpop.permute.xlu0 %972
      %974 = vrot.lane.b32.xlu0 %v480, 48
      %v975 = vpop.permute.xlu0 %974
      %976 = vrot.lane.b32.xlu0 %v481, 48
      %v977 = vpop.permute.xlu0 %976
      %978 = vrot.lane.b32.xlu0 %v482, 48
      %v979 = vpop.permute.xlu0 %978
      %980 = vrot.lane.b32.xlu0 %v483, 48
      %v981 = vpop.permute.xlu0 %980
      %982 = vrot.lane.b32.xlu0 %v467, 48
      %v983 = vpop.permute.xlu0 %982
      %984 = vrot.lane.b32.xlu0 %v537, 56
      %v985 = vpop.permute.xlu0 %984
      %986 = vrot.lane.b32.xlu0 %v549, 56
      %v987 = vpop.permute.xlu0 %986
      %988 = vrot.lane.b32.xlu0 %v561, 56
      %v989 = vpop.permute.xlu0 %988
      %990 = vrot.lane.b32.xlu0 %v573, 56
      %v991 = vpop.permute.xlu0 %990
      %992 = vrot.lane.b32.xlu0 %v585, 56
      %v993 = vpop.permute.xlu0 %992
      %994 = vrot.lane.b32.xlu0 %v597, 56
      %v995 = vpop.permute.xlu0 %994
      %996 = vrot.lane.b32.xlu0 %v609, 56
      %v997 = vpop.permute.xlu0 %996
      %998 = vrot.lane.b32.xlu0 %v621, 56
      %v999 = vpop.permute.xlu0 %998
      %1000 = vrot.lane.b32.xlu0 %v633, 56
      %v1001 = vpop.permute.xlu0 %1000
      %1002 = vrot.lane.b32.xlu0 %v645, 56
      %v1003 = vpop.permute.xlu0 %1002
      %1004 = vrot.lane.b32.xlu0 %v657, 56
      %v1005 = vpop.permute.xlu0 %1004
      %1006 = vrot.lane.b32.xlu0 %v669, 56
      %v1007 = vpop.permute.xlu0 %1006
      %1008 = vrot.lane.b32.xlu0 %v681, 56
      %v1009 = vpop.permute.xlu0 %1008
      %1010 = vrot.lane.b32.xlu0 %v693, 56
      %v1011 = vpop.permute.xlu0 %1010
      %1012 = vrot.lane.b32.xlu0 %v786, 56
      %v1013 = vpop.permute.xlu0 %1012
      %1014 = vrot.lane.b32.xlu0 %v513, 56
      %v1015 = vpop.permute.xlu0 %1014
      %1016 = vrot.lane.b32.xlu0 %v735, 64
      %v1017 = vpop.permute.xlu0 %1016
      %1018 = vrot.lane.b32.xlu0 %v738, 64
      %v1019 = vpop.permute.xlu0 %1018
      %1020 = vrot.lane.b32.xlu0 %v741, 64
      %v1021 = vpop.permute.xlu0 %1020
      %1022 = vrot.lane.b32.xlu0 %v744, 64
      %v1023 = vpop.permute.xlu0 %1022
      %1024 = vrot.lane.b32.xlu0 %v747, 64
      %v1025 = vpop.permute.xlu0 %1024
      %1026 = vrot.lane.b32.xlu0 %v750, 64
      %v1027 = vpop.permute.xlu0 %1026
      %1028 = vrot.lane.b32.xlu0 %v753, 64
      %v1029 = vpop.permute.xlu0 %1028
      %1030 = vrot.lane.b32.xlu0 %v756, 64
      %v1031 = vpop.permute.xlu0 %1030
      %1032 = vrot.lane.b32.xlu0 %v759, 64
      %v1033 = vpop.permute.xlu0 %1032
      %1034 = vrot.lane.b32.xlu0 %v762, 64
      %v1035 = vpop.permute.xlu0 %1034
      %1036 = vrot.lane.b32.xlu0 %v765, 64
      %v1037 = vpop.permute.xlu0 %1036
      %1038 = vrot.lane.b32.xlu0 %v768, 64
      %v1039 = vpop.permute.xlu0 %1038
      %1040 = vrot.lane.b32.xlu0 %v771, 64
      %v1041 = vpop.permute.xlu0 %1040
      %1042 = vrot.lane.b32.xlu0 %v774, 64
      %v1043 = vpop.permute.xlu0 %1042
      %1044 = vrot.lane.b32.xlu0 %v791, 64
      %v1045 = vpop.permute.xlu0 %1044
      %1046 = vrot.lane.b32.xlu0 %v729, 64
      %v1047 = vpop.permute.xlu0 %1046
      %vm1048 = vcmask 64512
      %v1050 = vsel %vm1048, %v467, %v793
      %v1052 = vsel %vm1048, %v468, %v795
      %v1054 = vsel %vm1048, %v469, %v797
      %v1056 = vsel %vm1048, %v470, %v799
      %v1058 = vsel %vm1048, %v471, %v801
      %v1060 = vsel %vm1048, %v472, %v803
      %v1062 = vsel %vm1048, %v473, %v805
      %v1064 = vsel %vm1048, %v474, %v807
      %v1066 = vsel %vm1048, %v475, %v809
      %v1068 = vsel %vm1048, %v476, %v811
      %v1070 = vsel %vm1048, %v477, %v813
      %v1072 = vsel %vm1048, %v478, %v815
      %v1074 = vsel %vm1048, %v479, %v817
      %v1076 = vsel %vm1048, %v480, %v819
      %v1078 = vsel %vm1048, %v481, %v821
      %v1080 = vsel %vm1048, %v482, %v823
      %vm1081 = vcmask 130048
      %v1083 = vsel %vm1081, %v1050, %v825
      %v1085 = vsel %vm1081, %v1052, %v827
      %v1087 = vsel %vm1081, %v1054, %v829
      %v1089 = vsel %vm1081, %v1056, %v831
      %v1091 = vsel %vm1081, %v1058, %v833
      %v1093 = vsel %vm1081, %v1060, %v835
      %v1095 = vsel %vm1081, %v1062, %v837
      %v1097 = vsel %vm1081, %v1064, %v839
      %v1099 = vsel %vm1081, %v1066, %v841
      %v1101 = vsel %vm1081, %v1068, %v843
      %v1103 = vsel %vm1081, %v1070, %v845
      %v1105 = vsel %vm1081, %v1072, %v847
      %v1107 = vsel %vm1081, %v1074, %v849
      %v1109 = vsel %vm1081, %v1076, %v851
      %v1111 = vsel %vm1081, %v1078, %v853
      %v1113 = vsel %vm1081, %v1080, %v855
      %vm1114 = vcmask 195584
      %v1116 = vsel %vm1114, %v1083, %v857
      %v1118 = vsel %vm1114, %v1085, %v859
      %v1120 = vsel %vm1114, %v1087, %v861
      %v1122 = vsel %vm1114, %v1089, %v863
      %v1124 = vsel %vm1114, %v1091, %v865
      %v1126 = vsel %vm1114, %v1093, %v867
      %v1128 = vsel %vm1114, %v1095, %v869
      %v1130 = vsel %vm1114, %v1097, %v871
      %v1132 = vsel %vm1114, %v1099, %v873
      %v1134 = vsel %vm1114, %v1101, %v875
      %v1136 = vsel %vm1114, %v1103, %v877
      %v1138 = vsel %vm1114, %v1105, %v879
      %v1140 = vsel %vm1114, %v1107, %v881
      %v1142 = vsel %vm1114, %v1109, %v883
      %v1144 = vsel %vm1114, %v1111, %v885
      %v1146 = vsel %vm1114, %v1113, %v887
      %vm1147 = vcmask 261120
      %v1149 = vsel %vm1147, %v1116, %v889
      %v1151 = vsel %vm1147, %v1118, %v891
      %v1153 = vsel %vm1147, %v1120, %v893
      %v1155 = vsel %vm1147, %v1122, %v895
      %v1157 = vsel %vm1147, %v1124, %v897
      %v1159 = vsel %vm1147, %v1126, %v899
      %v1161 = vsel %vm1147, %v1128, %v901
      %v1163 = vsel %vm1147, %v1130, %v903
      %v1165 = vsel %vm1147, %v1132, %v905
      %v1167 = vsel %vm1147, %v1134, %v907
      %v1169 = vsel %vm1147, %v1136, %v909
      %v1171 = vsel %vm1147, %v1138, %v911
      %v1173 = vsel %vm1147, %v1140, %v913
      %v1175 = vsel %vm1147, %v1142, %v915
      %v1177 = vsel %vm1147, %v1144, %v917
      %v1179 = vsel %vm1147, %v1146, %v919
      %vm1180 = vcmask 326656
      %v1182 = vsel %vm1180, %v1149, %v921
      %v1184 = vsel %vm1180, %v1151, %v923
      %v1186 = vsel %vm1180, %v1153, %v925
      %v1188 = vsel %vm1180, %v1155, %v927
      %v1190 = vsel %vm1180, %v1157, %v929
      %v1192 = vsel %vm1180, %v1159, %v931
      %v1194 = vsel %vm1180, %v1161, %v933
      %v1196 = vsel %vm1180, %v1163, %v935
      %v1198 = vsel %vm1180, %v1165, %v937
      %v1200 = vsel %vm1180, %v1167, %v939
      %v1202 = vsel %vm1180, %v1169, %v941
      %v1204 = vsel %vm1180, %v1171, %v943
      %v1206 = vsel %vm1180, %v1173, %v945
      %v1208 = vsel %vm1180, %v1175, %v947
      %v1210 = vsel %vm1180, %v1177, %v949
      %v1212 = vsel %vm1180, %v1179, %v951
      %vm1213 = vcmask 392192
      %v1215 = vsel %vm1213, %v1182, %v953
      %v1217 = vsel %vm1213, %v1184, %v955
      %v1219 = vsel %vm1213, %v1186, %v957
      %v1221 = vsel %vm1213, %v1188, %v959
      %v1223 = vsel %vm1213, %v1190, %v961
      %v1225 = vsel %vm1213, %v1192, %v963
      %v1227 = vsel %vm1213, %v1194, %v965
      %v1229 = vsel %vm1213, %v1196, %v967
      %v1231 = vsel %vm1213, %v1198, %v969
      %v1233 = vsel %vm1213, %v1200, %v971
      %v1235 = vsel %vm1213, %v1202, %v973
      %v1237 = vsel %vm1213, %v1204, %v975
      %v1239 = vsel %vm1213, %v1206, %v977
      %v1241 = vsel %vm1213, %v1208, %v979
      %v1243 = vsel %vm1213, %v1210, %v981
      %v1245 = vsel %vm1213, %v1212, %v983
      %vm1246 = vcmask 457728
      %v1248 = vsel %vm1246, %v1215, %v985
      %v1250 = vsel %vm1246, %v1217, %v987
      %v1252 = vsel %vm1246, %v1219, %v989
      %v1254 = vsel %vm1246, %v1221, %v991
      %v1256 = vsel %vm1246, %v1223, %v993
      %v1258 = vsel %vm1246, %v1225, %v995
      %v1260 = vsel %vm1246, %v1227, %v997
      %v1262 = vsel %vm1246, %v1229, %v999
      %v1264 = vsel %vm1246, %v1231, %v1001
      %v1266 = vsel %vm1246, %v1233, %v1003
      %v1268 = vsel %vm1246, %v1235, %v1005
      %v1270 = vsel %vm1246, %v1237, %v1007
      %v1272 = vsel %vm1246, %v1239, %v1009
      %v1274 = vsel %vm1246, %v1241, %v1011
      %v1276 = vsel %vm1246, %v1243, %v1013
      %v1278 = vsel %vm1246, %v1245, %v1015
      %vm1279 = vcmask 523264
      %v1281 = vsel %vm1279, %v1248, %v1017
      %v1283 = vsel %vm1279, %v1250, %v1019
      %v1285 = vsel %vm1279, %v1252, %v1021
      %v1287 = vsel %vm1279, %v1254, %v1023
      %v1289 = vsel %vm1279, %v1256, %v1025
      %v1291 = vsel %vm1279, %v1258, %v1027
      %v1293 = vsel %vm1279, %v1260, %v1029
      %v1295 = vsel %vm1279, %v1262, %v1031
      %v1297 = vsel %vm1279, %v1264, %v1033
      %v1299 = vsel %vm1279, %v1266, %v1035
      %v1301 = vsel %vm1279, %v1268, %v1037
      %v1303 = vsel %vm1279, %v1270, %v1039
      %v1305 = vsel %vm1279, %v1272, %v1041
      %v1307 = vsel %vm1279, %v1274, %v1043
      %v1309 = vsel %vm1279, %v1276, %v1045
      %v1311 = vsel %vm1279, %v1278, %v1047
      %v1312 = vld [vmem:[%s1] sm:$0xf]
      %v1313 = vld [vmem:[%s1 + $0x4] sm:$0xf]
      %v1314 = vld [vmem:[%s1 + $0x8] sm:$0xf]
      %v1315 = vld [vmem:[%s1 + $0xc] sm:$0xf]
      %v1316 = vld [vmem:[%s1 + $0x10] sm:$0xf]
      %v1317 = vld [vmem:[%s1 + $0x14] sm:$0xf]
      %v1318 = vld [vmem:[%s1 + $0x18] sm:$0xf]
      %v1319 = vld [vmem:[%s1 + $0x1c] sm:$0xf]
      %v1320 = vld [vmem:[%s1 + $0x20] sm:$0xf]
      %v1330 = vunpack.c.l.b16 %v1312
      %v1331 = vunpack.c.l.b16 %v1313
      %v1332 = vunpack.c.l.b16 %v1314
      %v1333 = vunpack.c.l.b16 %v1315
      %v1334 = vunpack.c.l.b16 %v1316
      %v1335 = vunpack.c.l.b16 %v1317
      %v1336 = vunpack.c.l.b16 %v1318
      %v1337 = vunpack.c.l.b16 %v1319
      %v1338 = vunpack.c.l.b16 %v1320
      %v1339 = vpack.c.b16 %v1331, %v1330
      %v1340 = vpack.c.b16 %v1333, %v1332
      %v1341 = vpack.c.b16 %v1335, %v1334
      %v1342 = vpack.c.b16 %v1337, %v1336
      %v1343 = vpack.c.b16 %v1338, %v1338
      %vm1348 = vcmask 588800
      %v1349 = vsel %vm1348, %v1281, 0
      %v1351 = vsel %vm1348, %v1283, 0
      %v1353 = vsel %vm1348, %v1285, 0
      %v1355 = vsel %vm1348, %v1287, 0
      %v1357 = vsel %vm1348, %v1289, 0
      %v1359 = vsel %vm1348, %v1291, 0
      %v1361 = vsel %vm1348, %v1293, 0
      %v1363 = vsel %vm1348, %v1295, 0
      %v1365 = vsel %vm1348, %v1297, 0
      %v1367 = vsel %vm1348, %v1299, 0
      %v1369 = vsel %vm1348, %v1301, 0
      %v1371 = vsel %vm1348, %v1303, 0
      %v1373 = vsel %vm1348, %v1305, 0
      %v1375 = vsel %vm1348, %v1307, 0
      %v1377 = vsel %vm1348, %v1309, 0
      %v1379 = vsel %vm1348, %v1311, 0
      %vm1381 = vcmask 1043456
      %v1383 = vsel %vm1381, %v1343, 0
      %1385 = vmatpush.bf16.msra.mxu0 0
      %1386 = vmatpush.bf16.msra.mxu0 0
      %1387 = vmatpush.bf16.msra.mxu0 0
      %1388 = vmatpush.bf16.msra.mxu0 %v1383
      %1389 = vmatpush.bf16.msra.mxu0 %v1342
      %1390 = vmatpush.bf16.msra.mxu0 %v1341
      %1391 = vmatpush.bf16.msra.mxu0 %v1340
      %1392 = vmatpush.bf16.msra.mxu0 %v1339
      %1393 = vmatmul.bf16.gmra.mxu0 %v1349
      %v1394 = vpop.f32.mrf.mxu0
      %v1395 = vadd.f32 0.0, %v1394
      %v1396 = vpop.f32.mrf.mxu0
      %v1397 = vadd.f32 0.0, %v1396
      %1398 = vmatmul.bf16.gmra.mxu0 %v1351
      %v1399 = vpop.f32.mrf.mxu0
      %v1400 = vadd.f32 0.0, %v1399
      %v1401 = vpop.f32.mrf.mxu0
      %v1402 = vadd.f32 0.0, %v1401
      %1403 = vmatmul.bf16.gmra.mxu0 %v1353
      %v1404 = vpop.f32.mrf.mxu0
      %v1405 = vadd.f32 0.0, %v1404
      %v1406 = vpop.f32.mrf.mxu0
      %v1407 = vadd.f32 0.0, %v1406
      %1408 = vmatmul.bf16.gmra.mxu0 %v1355
      %v1409 = vpop.f32.mrf.mxu0
      %v1410 = vadd.f32 0.0, %v1409
      %v1411 = vpop.f32.mrf.mxu0
      %v1412 = vadd.f32 0.0, %v1411
      %1413 = vmatmul.bf16.gmra.mxu0 %v1357
      %v1414 = vpop.f32.mrf.mxu0
      %v1415 = vadd.f32 0.0, %v1414
      %v1416 = vpop.f32.mrf.mxu0
      %v1417 = vadd.f32 0.0, %v1416
      %1418 = vmatmul.bf16.gmra.mxu0 %v1359
      %v1419 = vpop.f32.mrf.mxu0
      %v1420 = vadd.f32 0.0, %v1419
      %v1421 = vpop.f32.mrf.mxu0
      %v1422 = vadd.f32 0.0, %v1421
      %1423 = vmatmul.bf16.gmra.mxu0 %v1361
      %v1424 = vpop.f32.mrf.mxu0
      %v1425 = vadd.f32 0.0, %v1424
      %v1426 = vpop.f32.mrf.mxu0
      %v1427 = vadd.f32 0.0, %v1426
      %1428 = vmatmul.bf16.gmra.mxu0 %v1363
      %v1429 = vpop.f32.mrf.mxu0
      %v1430 = vadd.f32 0.0, %v1429
      %v1431 = vpop.f32.mrf.mxu0
      %v1432 = vadd.f32 0.0, %v1431
      %1433 = vmatmul.bf16.gmra.mxu0 %v1365
      %v1434 = vpop.f32.mrf.mxu0
      %v1435 = vadd.f32 0.0, %v1434
      %v1436 = vpop.f32.mrf.mxu0
      %v1437 = vadd.f32 0.0, %v1436
      %1438 = vmatmul.bf16.gmra.mxu0 %v1367
      %v1439 = vpop.f32.mrf.mxu0
      %v1440 = vadd.f32 0.0, %v1439
      %v1441 = vpop.f32.mrf.mxu0
      %v1442 = vadd.f32 0.0, %v1441
      %1443 = vmatmul.bf16.gmra.mxu0 %v1369
      %v1444 = vpop.f32.mrf.mxu0
      %v1445 = vadd.f32 0.0, %v1444
      %v1446 = vpop.f32.mrf.mxu0
      %v1447 = vadd.f32 0.0, %v1446
      %1448 = vmatmul.bf16.gmra.mxu0 %v1371
      %v1449 = vpop.f32.mrf.mxu0
      %v1450 = vadd.f32 0.0, %v1449
      %v1451 = vpop.f32.mrf.mxu0
      %v1452 = vadd.f32 0.0, %v1451
      %1453 = vmatmul.bf16.gmra.mxu0 %v1373
      %v1454 = vpop.f32.mrf.mxu0
      %v1455 = vadd.f32 0.0, %v1454
      %v1456 = vpop.f32.mrf.mxu0
      %v1457 = vadd.f32 0.0, %v1456
      %1458 = vmatmul.bf16.gmra.mxu0 %v1375
      %v1459 = vpop.f32.mrf.mxu0
      %v1460 = vadd.f32 0.0, %v1459
      %v1461 = vpop.f32.mrf.mxu0
      %v1462 = vadd.f32 0.0, %v1461
      %1463 = vmatmul.bf16.gmra.mxu0 %v1377
      %v1464 = vpop.f32.mrf.mxu0
      %v1465 = vadd.f32 0.0, %v1464
      %v1466 = vpop.f32.mrf.mxu0
      %v1467 = vadd.f32 0.0, %v1466
      %1468 = vmatmul.bf16.gmra.mxu0 %v1379
      %v1469 = vpop.f32.mrf.mxu0
      %v1470 = vadd.f32 0.0, %v1469
      %v1471 = vpop.f32.mrf.mxu0
      %v1472 = vadd.f32 0.0, %v1471
      %1473 = vdwg.mxu0
      %v1474 = vld [vmem:[%s2] sm:$0x1]
      %v1476 = vperm.slane %v1474, 0
      %v1478 = vmul.f32 %v1395, %v1476
      %v1479 = vmul.f32 %v1397, %v1476
      %v1480 = vmul.f32 %v1400, %v1476
      %v1481 = vmul.f32 %v1402, %v1476
      %v1482 = vmul.f32 %v1405, %v1476
      %v1483 = vmul.f32 %v1407, %v1476
      %v1484 = vmul.f32 %v1410, %v1476
      %v1485 = vmul.f32 %v1412, %v1476
      %v1486 = vmul.f32 %v1415, %v1476
      %v1487 = vmul.f32 %v1417, %v1476
      %v1488 = vmul.f32 %v1420, %v1476
      %v1489 = vmul.f32 %v1422, %v1476
      %v1490 = vmul.f32 %v1425, %v1476
      %v1491 = vmul.f32 %v1427, %v1476
      %v1492 = vmul.f32 %v1430, %v1476
      %v1493 = vmul.f32 %v1432, %v1476
      %v1494 = vmul.f32 %v1435, %v1476
      %v1495 = vmul.f32 %v1437, %v1476
      %v1496 = vmul.f32 %v1440, %v1476
      %v1497 = vmul.f32 %v1442, %v1476
      %v1498 = vmul.f32 %v1445, %v1476
      %v1499 = vmul.f32 %v1447, %v1476
      %v1500 = vmul.f32 %v1450, %v1476
      %v1501 = vmul.f32 %v1452, %v1476
      %v1502 = vmul.f32 %v1455, %v1476
      %v1503 = vmul.f32 %v1457, %v1476
      %v1504 = vmul.f32 %v1460, %v1476
      %v1505 = vmul.f32 %v1462, %v1476
      %v1506 = vmul.f32 %v1465, %v1476
      %v1507 = vmul.f32 %v1467, %v1476
      %v1508 = vmul.f32 %v1470, %v1476
      %v1509 = vmul.f32 %v1472, %v1476
      %v1510 = vld [vmem:[%s3] sm:$0x1]
      %v1512 = vperm.slane %v1510, 0
      %v1514 = vadd.f32 %v1478, %v1512
      %v1515 = vadd.f32 %v1479, %v1512
      %v1516 = vadd.f32 %v1480, %v1512
      %v1517 = vadd.f32 %v1481, %v1512
      %v1518 = vadd.f32 %v1482, %v1512
      %v1519 = vadd.f32 %v1483, %v1512
      %v1520 = vadd.f32 %v1484, %v1512
      %v1521 = vadd.f32 %v1485, %v1512
      %v1522 = vadd.f32 %v1486, %v1512
      %v1523 = vadd.f32 %v1487, %v1512
      %v1524 = vadd.f32 %v1488, %v1512
      %v1525 = vadd.f32 %v1489, %v1512
      %v1526 = vadd.f32 %v1490, %v1512
      %v1527 = vadd.f32 %v1491, %v1512
      %v1528 = vadd.f32 %v1492, %v1512
      %v1529 = vadd.f32 %v1493, %v1512
      %v1530 = vadd.f32 %v1494, %v1512
      %v1531 = vadd.f32 %v1495, %v1512
      %v1532 = vadd.f32 %v1496, %v1512
      %v1533 = vadd.f32 %v1497, %v1512
      %v1534 = vadd.f32 %v1498, %v1512
      %v1535 = vadd.f32 %v1499, %v1512
      %v1536 = vadd.f32 %v1500, %v1512
      %v1537 = vadd.f32 %v1501, %v1512
      %v1538 = vadd.f32 %v1502, %v1512
      %v1539 = vadd.f32 %v1503, %v1512
      %v1540 = vadd.f32 %v1504, %v1512
      %v1541 = vadd.f32 %v1505, %v1512
      %v1542 = vadd.f32 %v1506, %v1512
      %v1543 = vadd.f32 %v1507, %v1512
      %v1544 = vadd.f32 %v1508, %v1512
      %v1545 = vadd.f32 %v1509, %v1512
      %v1546 = vmax.f32 %v1514, 0.0
      %v1547 = vmax.f32 %v1515, 0.0
      %v1548 = vmax.f32 %v1516, 0.0
      %v1549 = vmax.f32 %v1517, 0.0
      %v1550 = vmax.f32 %v1518, 0.0
      %v1551 = vmax.f32 %v1519, 0.0
      %v1552 = vmax.f32 %v1520, 0.0
      %v1553 = vmax.f32 %v1521, 0.0
      %v1554 = vmax.f32 %v1522, 0.0
      %v1555 = vmax.f32 %v1523, 0.0
      %v1556 = vmax.f32 %v1524, 0.0
      %v1557 = vmax.f32 %v1525, 0.0
      %v1558 = vmax.f32 %v1526, 0.0
      %v1559 = vmax.f32 %v1527, 0.0
      %v1560 = vmax.f32 %v1528, 0.0
      %v1561 = vmax.f32 %v1529, 0.0
      %v1562 = vmax.f32 %v1530, 0.0
      %v1563 = vmax.f32 %v1531, 0.0
      %v1564 = vmax.f32 %v1532, 0.0
      %v1565 = vmax.f32 %v1533, 0.0
      %v1566 = vmax.f32 %v1534, 0.0
      %v1567 = vmax.f32 %v1535, 0.0
      %v1568 = vmax.f32 %v1536, 0.0
      %v1569 = vmax.f32 %v1537, 0.0
      %v1570 = vmax.f32 %v1538, 0.0
      %v1571 = vmax.f32 %v1539, 0.0
      %v1572 = vmax.f32 %v1540, 0.0
      %v1573 = vmax.f32 %v1541, 0.0
      %v1574 = vmax.f32 %v1542, 0.0
      %v1575 = vmax.f32 %v1543, 0.0
      %v1576 = vmax.f32 %v1544, 0.0
      %v1577 = vmax.f32 %v1545, 0.0
      %v1578 = vmax.f32 %v1546, %v1548
      %v1579 = vmax.f32 %v1547, %v1549
      %v1580 = vmax.f32 %v1550, %v1552
      %v1581 = vmax.f32 %v1551, %v1553
      %v1582 = vmax.f32 %v1554, %v1556
      %v1583 = vmax.f32 %v1555, %v1557
      %v1584 = vmax.f32 %v1558, %v1560
      %v1585 = vmax.f32 %v1559, %v1561
      %v1586 = vmax.f32 %v1562, %v1564
      %v1587 = vmax.f32 %v1563, %v1565
      %v1588 = vmax.f32 %v1566, %v1568
      %v1589 = vmax.f32 %v1567, %v1569
      %v1590 = vmax.f32 %v1570, %v1572
      %v1591 = vmax.f32 %v1571, %v1573
      %v1592 = vmax.f32 %v1574, %v1576
      %v1593 = vmax.f32 %v1575, %v1577
      %v1610 = vrot.slane %v1578, 2
      %v1611 = vrot.slane %v1578, 4
      %v1612 = vrot.slane %v1578, 6
      %v1613 = vrot.slane %v1579, 2
      %v1614 = vrot.slane %v1579, 4
      %v1615 = vrot.slane %v1579, 6
      %v1616 = vrot.slane %v1580, 2
      %v1617 = vrot.slane %v1580, 4
      %v1618 = vrot.slane %v1580, 6
      %v1619 = vrot.slane %v1581, 2
      %v1620 = vrot.slane %v1581, 4
      %v1621 = vrot.slane %v1581, 6
      %v1622 = vrot.slane %v1582, 2
      %v1623 = vrot.slane %v1582, 4
      %v1624 = vrot.slane %v1582, 6
      %v1625 = vrot.slane %v1583, 2
      %v1626 = vrot.slane %v1583, 4
      %v1627 = vrot.slane %v1583, 6
      %v1628 = vrot.slane %v1584, 2
      %v1629 = vrot.slane %v1584, 4
      %v1630 = vrot.slane %v1584, 6
      %v1631 = vrot.slane %v1585, 2
      %v1632 = vrot.slane %v1585, 4
      %v1633 = vrot.slane %v1585, 6
      %v1634 = vrot.slane %v1586, 2
      %v1635 = vrot.slane %v1586, 4
      %v1636 = vrot.slane %v1586, 6
      %v1637 = vrot.slane %v1587, 2
      %v1638 = vrot.slane %v1587, 4
      %v1639 = vrot.slane %v1587, 6
      %v1640 = vrot.slane %v1588, 2
      %v1641 = vrot.slane %v1588, 4
      %v1642 = vrot.slane %v1588, 6
      %v1643 = vrot.slane %v1589, 2
      %v1644 = vrot.slane %v1589, 4
      %v1645 = vrot.slane %v1589, 6
      %v1646 = vrot.slane %v1590, 2
      %v1647 = vrot.slane %v1590, 4
      %v1648 = vrot.slane %v1590, 6
      %v1649 = vrot.slane %v1591, 2
      %v1650 = vrot.slane %v1591, 4
      %v1651 = vrot.slane %v1591, 6
      %v1652 = vrot.slane %v1592, 2
      %v1653 = vrot.slane %v1592, 4
      %v1654 = vrot.slane %v1592, 6
      %v1655 = vrot.slane %v1593, 2
      %v1656 = vrot.slane %v1593, 4
      %v1657 = vrot.slane %v1593, 6
      %v1706 = vrot.slane %v1578, 7
      %v1707 = vrot.slane %v1706, 2
      %v1708 = vrot.slane %v1610, 7
      %v1709 = vrot.slane %v1708, 2
      %v1710 = vrot.slane %v1611, 7
      %v1711 = vrot.slane %v1710, 2
      %v1712 = vrot.slane %v1612, 7
      %v1713 = vrot.slane %v1712, 2
      %v1714 = vrot.slane %v1579, 7
      %v1715 = vrot.slane %v1714, 2
      %v1716 = vrot.slane %v1613, 7
      %v1717 = vrot.slane %v1716, 2
      %v1718 = vrot.slane %v1614, 7
      %v1719 = vrot.slane %v1718, 2
      %v1720 = vrot.slane %v1615, 7
      %v1721 = vrot.slane %v1720, 2
      %v1722 = vrot.slane %v1580, 7
      %v1723 = vrot.slane %v1722, 2
      %v1724 = vrot.slane %v1616, 7
      %v1725 = vrot.slane %v1724, 2
      %v1726 = vrot.slane %v1617, 7
      %v1727 = vrot.slane %v1726, 2
      %v1728 = vrot.slane %v1618, 7
      %v1729 = vrot.slane %v1728, 2
      %v1730 = vrot.slane %v1581, 7
      %v1731 = vrot.slane %v1730, 2
      %v1732 = vrot.slane %v1619, 7
      %v1733 = vrot.slane %v1732, 2
      %v1734 = vrot.slane %v1620, 7
      %v1735 = vrot.slane %v1734, 2
      %v1736 = vrot.slane %v1621, 7
      %v1737 = vrot.slane %v1736, 2
      %v1738 = vrot.slane %v1582, 7
      %v1739 = vrot.slane %v1738, 2
      %v1740 = vrot.slane %v1622, 7
      %v1741 = vrot.slane %v1740, 2
      %v1742 = vrot.slane %v1623, 7
      %v1743 = vrot.slane %v1742, 2
      %v1744 = vrot.slane %v1624, 7
      %v1745 = vrot.slane %v1744, 2
      %v1746 = vrot.slane %v1583, 7
      %v1747 = vrot.slane %v1746, 2
      %v1748 = vrot.slane %v1625, 7
      %v1749 = vrot.slane %v1748, 2
      %v1750 = vrot.slane %v1626, 7
      %v1751 = vrot.slane %v1750, 2
      %v1752 = vrot.slane %v1627, 7
      %v1753 = vrot.slane %v1752, 2
      %v1754 = vrot.slane %v1584, 7
      %v1755 = vrot.slane %v1754, 2
      %v1756 = vrot.slane %v1628, 7
      %v1757 = vrot.slane %v1756, 2
      %v1758 = vrot.slane %v1629, 7
      %v1759 = vrot.slane %v1758, 2
      %v1760 = vrot.slane %v1630, 7
      %v1761 = vrot.slane %v1760, 2
      %v1762 = vrot.slane %v1585, 7
      %v1763 = vrot.slane %v1762, 2
      %v1764 = vrot.slane %v1631, 7
      %v1765 = vrot.slane %v1764, 2
      %v1766 = vrot.slane %v1632, 7
      %v1767 = vrot.slane %v1766, 2
      %v1768 = vrot.slane %v1633, 7
      %v1769 = vrot.slane %v1768, 2
      %v1770 = vrot.slane %v1586, 7
      %v1771 = vrot.slane %v1770, 2
      %v1772 = vrot.slane %v1634, 7
      %v1773 = vrot.slane %v1772, 2
      %v1774 = vrot.slane %v1635, 7
      %v1775 = vrot.slane %v1774, 2
      %v1776 = vrot.slane %v1636, 7
      %v1777 = vrot.slane %v1776, 2
      %v1778 = vrot.slane %v1587, 7
      %v1779 = vrot.slane %v1778, 2
      %v1780 = vrot.slane %v1637, 7
      %v1781 = vrot.slane %v1780, 2
      %v1782 = vrot.slane %v1638, 7
      %v1783 = vrot.slane %v1782, 2
      %v1784 = vrot.slane %v1639, 7
      %v1785 = vrot.slane %v1784, 2
      %v1786 = vrot.slane %v1588, 7
      %v1787 = vrot.slane %v1786, 2
      %v1788 = vrot.slane %v1640, 7
      %v1789 = vrot.slane %v1788, 2
      %v1790 = vrot.slane %v1641, 7
      %v1791 = vrot.slane %v1790, 2
      %v1792 = vrot.slane %v1642, 7
      %v1793 = vrot.slane %v1792, 2
      %v1794 = vrot.slane %v1589, 7
      %v1795 = vrot.slane %v1794, 2
      %v1796 = vrot.slane %v1643, 7
      %v1797 = vrot.slane %v1796, 2
      %v1798 = vrot.slane %v1644, 7
      %v1799 = vrot.slane %v1798, 2
      %v1800 = vrot.slane %v1645, 7
      %v1801 = vrot.slane %v1800, 2
      %v1802 = vrot.slane %v1590, 7
      %v1803 = vrot.slane %v1802, 2
      %v1804 = vrot.slane %v1646, 7
      %v1805 = vrot.slane %v1804, 2
      %v1806 = vrot.slane %v1647, 7
      %v1807 = vrot.slane %v1806, 2
      %v1808 = vrot.slane %v1648, 7
      %v1809 = vrot.slane %v1808, 2
      %v1810 = vrot.slane %v1591, 7
      %v1811 = vrot.slane %v1810, 2
      %v1812 = vrot.slane %v1649, 7
      %v1813 = vrot.slane %v1812, 2
      %v1814 = vrot.slane %v1650, 7
      %v1815 = vrot.slane %v1814, 2
      %v1816 = vrot.slane %v1651, 7
      %v1817 = vrot.slane %v1816, 2
      %v1818 = vrot.slane %v1592, 7
      %v1819 = vrot.slane %v1818, 2
      %v1820 = vrot.slane %v1652, 7
      %v1821 = vrot.slane %v1820, 2
      %v1822 = vrot.slane %v1653, 7
      %v1823 = vrot.slane %v1822, 2
      %v1824 = vrot.slane %v1654, 7
      %v1825 = vrot.slane %v1824, 2
      %v1826 = vrot.slane %v1593, 7
      %v1827 = vrot.slane %v1826, 2
      %v1828 = vrot.slane %v1655, 7
      %v1829 = vrot.slane %v1828, 2
      %v1830 = vrot.slane %v1656, 7
      %v1831 = vrot.slane %v1830, 2
      %v1832 = vrot.slane %v1657, 7
      %v1833 = vrot.slane %v1832, 2
      %v1898 = vmax.f32 %v1578, %v1707
      %v1899 = vmax.f32 %v1610, %v1709
      %v1900 = vmax.f32 %v1611, %v1711
      %v1901 = vmax.f32 %v1612, %v1713
      %v1902 = vmax.f32 %v1579, %v1715
      %v1903 = vmax.f32 %v1613, %v1717
      %v1904 = vmax.f32 %v1614, %v1719
      %v1905 = vmax.f32 %v1615, %v1721
      %v1906 = vmax.f32 %v1580, %v1723
      %v1907 = vmax.f32 %v1616, %v1725
      %v1908 = vmax.f32 %v1617, %v1727
      %v1909 = vmax.f32 %v1618, %v1729
      %v1910 = vmax.f32 %v1581, %v1731
      %v1911 = vmax.f32 %v1619, %v1733
      %v1912 = vmax.f32 %v1620, %v1735
      %v1913 = vmax.f32 %v1621, %v1737
      %v1914 = vmax.f32 %v1582, %v1739
      %v1915 = vmax.f32 %v1622, %v1741
      %v1916 = vmax.f32 %v1623, %v1743
      %v1917 = vmax.f32 %v1624, %v1745
      %v1918 = vmax.f32 %v1583, %v1747
      %v1919 = vmax.f32 %v1625, %v1749
      %v1920 = vmax.f32 %v1626, %v1751
      %v1921 = vmax.f32 %v1627, %v1753
      %v1922 = vmax.f32 %v1584, %v1755
      %v1923 = vmax.f32 %v1628, %v1757
      %v1924 = vmax.f32 %v1629, %v1759
      %v1925 = vmax.f32 %v1630, %v1761
      %v1926 = vmax.f32 %v1585, %v1763
      %v1927 = vmax.f32 %v1631, %v1765
      %v1928 = vmax.f32 %v1632, %v1767
      %v1929 = vmax.f32 %v1633, %v1769
      %v1930 = vmax.f32 %v1586, %v1771
      %v1931 = vmax.f32 %v1634, %v1773
      %v1932 = vmax.f32 %v1635, %v1775
      %v1933 = vmax.f32 %v1636, %v1777
      %v1934 = vmax.f32 %v1587, %v1779
      %v1935 = vmax.f32 %v1637, %v1781
      %v1936 = vmax.f32 %v1638, %v1783
      %v1937 = vmax.f32 %v1639, %v1785
      %v1938 = vmax.f32 %v1588, %v1787
      %v1939 = vmax.f32 %v1640, %v1789
      %v1940 = vmax.f32 %v1641, %v1791
      %v1941 = vmax.f32 %v1642, %v1793
      %v1942 = vmax.f32 %v1589, %v1795
      %v1943 = vmax.f32 %v1643, %v1797
      %v1944 = vmax.f32 %v1644, %v1799
      %v1945 = vmax.f32 %v1645, %v1801
      %v1946 = vmax.f32 %v1590, %v1803
      %v1947 = vmax.f32 %v1646, %v1805
      %v1948 = vmax.f32 %v1647, %v1807
      %v1949 = vmax.f32 %v1648, %v1809
      %v1950 = vmax.f32 %v1591, %v1811
      %v1951 = vmax.f32 %v1649, %v1813
      %v1952 = vmax.f32 %v1650, %v1815
      %v1953 = vmax.f32 %v1651, %v1817
      %v1954 = vmax.f32 %v1592, %v1819
      %v1955 = vmax.f32 %v1652, %v1821
      %v1956 = vmax.f32 %v1653, %v1823
      %v1957 = vmax.f32 %v1654, %v1825
      %v1958 = vmax.f32 %v1593, %v1827
      %v1959 = vmax.f32 %v1655, %v1829
      %v1960 = vmax.f32 %v1656, %v1831
      %v1961 = vmax.f32 %v1657, %v1833
      %v1962 = vpack.c.bf16 %v1898, %v1898
      %v1963 = vpack.c.bf16 %v1899, %v1899
      %v1964 = vpack.c.bf16 %v1900, %v1900
      %v1965 = vpack.c.bf16 %v1901, %v1901
      %v1966 = vpack.c.bf16 %v1902, %v1902
      %v1967 = vpack.c.bf16 %v1903, %v1903
      %v1968 = vpack.c.bf16 %v1904, %v1904
      %v1969 = vpack.c.bf16 %v1905, %v1905
      %v1970 = vpack.c.bf16 %v1906, %v1906
      %v1971 = vpack.c.bf16 %v1907, %v1907
      %v1972 = vpack.c.bf16 %v1908, %v1908
      %v1973 = vpack.c.bf16 %v1909, %v1909
      %v1974 = vpack.c.bf16 %v1910, %v1910
      %v1975 = vpack.c.bf16 %v1911, %v1911
      %v1976 = vpack.c.bf16 %v1912, %v1912
      %v1977 = vpack.c.bf16 %v1913, %v1913
      %v1978 = vpack.c.bf16 %v1914, %v1914
      %v1979 = vpack.c.bf16 %v1915, %v1915
      %v1980 = vpack.c.bf16 %v1916, %v1916
      %v1981 = vpack.c.bf16 %v1917, %v1917
      %v1982 = vpack.c.bf16 %v1918, %v1918
      %v1983 = vpack.c.bf16 %v1919, %v1919
      %v1984 = vpack.c.bf16 %v1920, %v1920
      %v1985 = vpack.c.bf16 %v1921, %v1921
      %v1986 = vpack.c.bf16 %v1922, %v1922
      %v1987 = vpack.c.bf16 %v1923, %v1923
      %v1988 = vpack.c.bf16 %v1924, %v1924
      %v1989 = vpack.c.bf16 %v1925, %v1925
      %v1990 = vpack.c.bf16 %v1926, %v1926
      %v1991 = vpack.c.bf16 %v1927, %v1927
      %v1992 = vpack.c.bf16 %v1928, %v1928
      %v1993 = vpack.c.bf16 %v1929, %v1929
      %v1994 = vpack.c.bf16 %v1930, %v1930
      %v1995 = vpack.c.bf16 %v1931, %v1931
      %v1996 = vpack.c.bf16 %v1932, %v1932
      %v1997 = vpack.c.bf16 %v1933, %v1933
      %v1998 = vpack.c.bf16 %v1934, %v1934
      %v1999 = vpack.c.bf16 %v1935, %v1935
      %v2000 = vpack.c.bf16 %v1936, %v1936
      %v2001 = vpack.c.bf16 %v1937, %v1937
      %v2002 = vpack.c.bf16 %v1938, %v1938
      %v2003 = vpack.c.bf16 %v1939, %v1939
      %v2004 = vpack.c.bf16 %v1940, %v1940
      %v2005 = vpack.c.bf16 %v1941, %v1941
      %v2006 = vpack.c.bf16 %v1942, %v1942
      %v2007 = vpack.c.bf16 %v1943, %v1943
      %v2008 = vpack.c.bf16 %v1944, %v1944
      %v2009 = vpack.c.bf16 %v1945, %v1945
      %v2010 = vpack.c.bf16 %v1946, %v1946
      %v2011 = vpack.c.bf16 %v1947, %v1947
      %v2012 = vpack.c.bf16 %v1948, %v1948
      %v2013 = vpack.c.bf16 %v1949, %v1949
      %v2014 = vpack.c.bf16 %v1950, %v1950
      %v2015 = vpack.c.bf16 %v1951, %v1951
      %v2016 = vpack.c.bf16 %v1952, %v1952
      %v2017 = vpack.c.bf16 %v1953, %v1953
      %v2018 = vpack.c.bf16 %v1954, %v1954
      %v2019 = vpack.c.bf16 %v1955, %v1955
      %v2020 = vpack.c.bf16 %v1956, %v1956
      %v2021 = vpack.c.bf16 %v1957, %v1957
      %v2022 = vpack.c.bf16 %v1958, %v1958
      %v2023 = vpack.c.bf16 %v1959, %v1959
      %v2024 = vpack.c.bf16 %v1960, %v1960
      %v2025 = vpack.c.bf16 %v1961, %v1961
      %v2090 = vunpack.c.l.b16 %v1962
      %v2091 = vunpack.c.l.b16 %v1963
      %v2092 = vunpack.c.l.b16 %v1964
      %v2093 = vunpack.c.l.b16 %v1965
      %v2094 = vunpack.c.l.b16 %v1966
      %v2095 = vunpack.c.l.b16 %v1967
      %v2096 = vunpack.c.l.b16 %v1968
      %v2097 = vunpack.c.l.b16 %v1969
      %v2098 = vunpack.c.l.b16 %v1970
      %v2099 = vunpack.c.l.b16 %v1971
      %v2100 = vunpack.c.l.b16 %v1972
      %v2101 = vunpack.c.l.b16 %v1973
      %v2102 = vunpack.c.l.b16 %v1974
      %v2103 = vunpack.c.l.b16 %v1975
      %v2104 = vunpack.c.l.b16 %v1976
      %v2105 = vunpack.c.l.b16 %v1977
      %v2106 = vunpack.c.l.b16 %v1978
      %v2107 = vunpack.c.l.b16 %v1979
      %v2108 = vunpack.c.l.b16 %v1980
      %v2109 = vunpack.c.l.b16 %v1981
      %v2110 = vunpack.c.l.b16 %v1982
      %v2111 = vunpack.c.l.b16 %v1983
      %v2112 = vunpack.c.l.b16 %v1984
      %v2113 = vunpack.c.l.b16 %v1985
      %v2114 = vunpack.c.l.b16 %v1986
      %v2115 = vunpack.c.l.b16 %v1987
      %v2116 = vunpack.c.l.b16 %v1988
      %v2117 = vunpack.c.l.b16 %v1989
      %v2118 = vunpack.c.l.b16 %v1990
      %v2119 = vunpack.c.l.b16 %v1991
      %v2120 = vunpack.c.l.b16 %v1992
      %v2121 = vunpack.c.l.b16 %v1993
      %v2122 = vunpack.c.l.b16 %v1994
      %v2123 = vunpack.c.l.b16 %v1995
      %v2124 = vunpack.c.l.b16 %v1996
      %v2125 = vunpack.c.l.b16 %v1997
      %v2126 = vunpack.c.l.b16 %v1998
      %v2127 = vunpack.c.l.b16 %v1999
      %v2128 = vunpack.c.l.b16 %v2000
      %v2129 = vunpack.c.l.b16 %v2001
      %v2130 = vunpack.c.l.b16 %v2002
      %v2131 = vunpack.c.l.b16 %v2003
      %v2132 = vunpack.c.l.b16 %v2004
      %v2133 = vunpack.c.l.b16 %v2005
      %v2134 = vunpack.c.l.b16 %v2006
      %v2135 = vunpack.c.l.b16 %v2007
      %v2136 = vunpack.c.l.b16 %v2008
      %v2137 = vunpack.c.l.b16 %v2009
      %v2138 = vunpack.c.l.b16 %v2010
      %v2139 = vunpack.c.l.b16 %v2011
      %v2140 = vunpack.c.l.b16 %v2012
      %v2141 = vunpack.c.l.b16 %v2013
      %v2142 = vunpack.c.l.b16 %v2014
      %v2143 = vunpack.c.l.b16 %v2015
      %v2144 = vunpack.c.l.b16 %v2016
      %v2145 = vunpack.c.l.b16 %v2017
      %v2146 = vunpack.c.l.b16 %v2018
      %v2147 = vunpack.c.l.b16 %v2019
      %v2148 = vunpack.c.l.b16 %v2020
      %v2149 = vunpack.c.l.b16 %v2021
      %v2150 = vunpack.c.l.b16 %v2022
      %v2151 = vunpack.c.l.b16 %v2023
      %v2152 = vunpack.c.l.b16 %v2024
      %v2153 = vunpack.c.l.b16 %v2025
      %v2154 = vrot.slane %v2091, 7
      %vm2155 = vcmask 1041409
      %v2156 = vsel %vm2155, %v2154, %v2090
      %v2157 = vrot.slane %v2092, 6
      %vm2158 = vcmask 1042434
      %v2159 = vsel %vm2158, %v2157, %v2156
      %v2160 = vrot.slane %v2093, 5
      %vm2161 = vcmask 1043459
      %v2162 = vsel %vm2161, %v2160, %v2159
      %v2163 = vrot.slane %v2094, 4
      %vm2164 = vcmask 1044484
      %v2165 = vsel %vm2164, %v2163, %v2162
      %v2166 = vrot.slane %v2095, 3
      %vm2167 = vcmask 1045509
      %v2168 = vsel %vm2167, %v2166, %v2165
      %v2169 = vrot.slane %v2096, 2
      %vm2170 = vcmask 1046534
      %v2171 = vsel %vm2170, %v2169, %v2168
      %v2172 = vrot.slane %v2097, 1
      %vm2173 = vcmask 1047559
      %v2174 = vsel %vm2173, %v2172, %v2171
      %v2175 = vrot.slane %v2099, 7
      %v2176 = vsel %vm2155, %v2175, %v2098
      %v2177 = vrot.slane %v2100, 6
      %v2178 = vsel %vm2158, %v2177, %v2176
      %v2179 = vrot.slane %v2101, 5
      %v2180 = vsel %vm2161, %v2179, %v2178
      %v2181 = vrot.slane %v2102, 4
      %v2182 = vsel %vm2164, %v2181, %v2180
      %v2183 = vrot.slane %v2103, 3
      %v2184 = vsel %vm2167, %v2183, %v2182
      %v2185 = vrot.slane %v2104, 2
      %v2186 = vsel %vm2170, %v2185, %v2184
      %v2187 = vrot.slane %v2105, 1
      %v2188 = vsel %vm2173, %v2187, %v2186
      %v2189 = vrot.slane %v2107, 7
      %v2190 = vsel %vm2155, %v2189, %v2106
      %v2191 = vrot.slane %v2108, 6
      %v2192 = vsel %vm2158, %v2191, %v2190
      %v2193 = vrot.slane %v2109, 5
      %v2194 = vsel %vm2161, %v2193, %v2192
      %v2195 = vrot.slane %v2110, 4
      %v2196 = vsel %vm2164, %v2195, %v2194
      %v2197 = vrot.slane %v2111, 3
      %v2198 = vsel %vm2167, %v2197, %v2196
      %v2199 = vrot.slane %v2112, 2
      %v2200 = vsel %vm2170, %v2199, %v2198
      %v2201 = vrot.slane %v2113, 1
      %v2202 = vsel %vm2173, %v2201, %v2200
      %v2203 = vrot.slane %v2115, 7
      %v2204 = vsel %vm2155, %v2203, %v2114
      %v2205 = vrot.slane %v2116, 6
      %v2206 = vsel %vm2158, %v2205, %v2204
      %v2207 = vrot.slane %v2117, 5
      %v2208 = vsel %vm2161, %v2207, %v2206
      %v2209 = vrot.slane %v2118, 4
      %v2210 = vsel %vm2164, %v2209, %v2208
      %v2211 = vrot.slane %v2119, 3
      %v2212 = vsel %vm2167, %v2211, %v2210
      %v2213 = vrot.slane %v2120, 2
      %v2214 = vsel %vm2170, %v2213, %v2212
      %v2215 = vrot.slane %v2121, 1
      %v2216 = vsel %vm2173, %v2215, %v2214
      %v2217 = vrot.slane %v2123, 7
      %v2218 = vsel %vm2155, %v2217, %v2122
      %v2219 = vrot.slane %v2124, 6
      %v2220 = vsel %vm2158, %v2219, %v2218
      %v2221 = vrot.slane %v2125, 5
      %v2222 = vsel %vm2161, %v2221, %v2220
      %v2223 = vrot.slane %v2126, 4
      %v2224 = vsel %vm2164, %v2223, %v2222
      %v2225 = vrot.slane %v2127, 3
      %v2226 = vsel %vm2167, %v2225, %v2224
      %v2227 = vrot.slane %v2128, 2
      %v2228 = vsel %vm2170, %v2227, %v2226
      %v2229 = vrot.slane %v2129, 1
      %v2230 = vsel %vm2173, %v2229, %v2228
      %v2231 = vrot.slane %v2131, 7
      %v2232 = vsel %vm2155, %v2231, %v2130
      %v2233 = vrot.slane %v2132, 6
      %v2234 = vsel %vm2158, %v2233, %v2232
      %v2235 = vrot.slane %v2133, 5
      %v2236 = vsel %vm2161, %v2235, %v2234
      %v2237 = vrot.slane %v2134, 4
      %v2238 = vsel %vm2164, %v2237, %v2236
      %v2239 = vrot.slane %v2135, 3
      %v2240 = vsel %vm2167, %v2239, %v2238
      %v2241 = vrot.slane %v2136, 2
      %v2242 = vsel %vm2170, %v2241, %v2240
      %v2243 = vrot.slane %v2137, 1
      %v2244 = vsel %vm2173, %v2243, %v2242
      %v2245 = vrot.slane %v2139, 7
      %v2246 = vsel %vm2155, %v2245, %v2138
      %v2247 = vrot.slane %v2140, 6
      %v2248 = vsel %vm2158, %v2247, %v2246
      %v2249 = vrot.slane %v2141, 5
      %v2250 = vsel %vm2161, %v2249, %v2248
      %v2251 = vrot.slane %v2142, 4
      %v2252 = vsel %vm2164, %v2251, %v2250
      %v2253 = vrot.slane %v2143, 3
      %v2254 = vsel %vm2167, %v2253, %v2252
      %v2255 = vrot.slane %v2144, 2
      %v2256 = vsel %vm2170, %v2255, %v2254
      %v2257 = vrot.slane %v2145, 1
      %v2258 = vsel %vm2173, %v2257, %v2256
      %v2259 = vrot.slane %v2147, 7
      %v2260 = vsel %vm2155, %v2259, %v2146
      %v2261 = vrot.slane %v2148, 6
      %v2262 = vsel %vm2158, %v2261, %v2260
      %v2263 = vrot.slane %v2149, 5
      %v2264 = vsel %vm2161, %v2263, %v2262
      %v2265 = vrot.slane %v2150, 4
      %v2266 = vsel %vm2164, %v2265, %v2264
      %v2267 = vrot.slane %v2151, 3
      %v2268 = vsel %vm2167, %v2267, %v2266
      %v2269 = vrot.slane %v2152, 2
      %v2270 = vsel %vm2170, %v2269, %v2268
      %v2271 = vrot.slane %v2153, 1
      %v2272 = vsel %vm2173, %v2271, %v2270
      %v2273 = vpack.c.b16 %v2174, %v2174
      %v2274 = vpack.c.b16 %v2188, %v2188
      %v2275 = vpack.c.b16 %v2202, %v2202
      %v2276 = vpack.c.b16 %v2216, %v2216
      %v2277 = vpack.c.b16 %v2230, %v2230
      %v2278 = vpack.c.b16 %v2244, %v2244
      %v2279 = vpack.c.b16 %v2258, %v2258
      %v2280 = vpack.c.b16 %v2272, %v2272
      %vm2289 = vcmask 60416
      %2290 = vst.msk [vmem:[%s197] sm:$0xf] %vm2289, %v2273
      %2291 = vst.msk [vmem:[%s197 + $0x4] sm:$0xf] %vm2289, %v2274
      %2292 = vst.msk [vmem:[%s197 + $0x8] sm:$0xf] %vm2289, %v2275
      %2293 = vst.msk [vmem:[%s197 + $0xc] sm:$0xf] %vm2289, %v2276
      %2294 = vst.msk [vmem:[%s197 + $0x10] sm:$0xf] %vm2289, %v2277
      %2295 = vst.msk [vmem:[%s197 + $0x14] sm:$0xf] %vm2289, %v2278
      %2296 = vst.msk [vmem:[%s197 + $0x18] sm:$0xf] %vm2289, %v2279
      %2297 = vst.msk [vmem:[%s197 + $0x1c] sm:$0xf] %vm2289, %v2280
      %p2298 = scmp.lt.s32.totalorder %s15, 1
      %s2299 = scalar_select %p2298, %s15, 1
      %s2300 = smul.addr %s2299, 8
      %s2301 = smul.addr %s2300, 4
      %s2302 = scalar_lea.vmem %s4, %s2301
      // Predicated region
      $region37: #{_lambda_.5} parent=35 // pred_check
        %p2303 = pneg %p122
      $region38: #{_lambda_.5} parent=35 // pred_check_branch
        %2305 = sbr.rel (%p2303) target = $region40
      $region39: #{_lambda_.5} parent=35 // pred_region
        _
      $region40: #{_lambda_.5} parent=35 // pred_fallthru
        _
    $region36: #{_lambda_.5} parent=5 // pred_fallthru
      _
    %p2306 = scmp.le.s32.totalorder 2, %s10
    // Predicated region
    $region41: #{_lambda_.5} parent=5 // pred_check
      %p2307 = pneg %p2306
    $region42: #{_lambda_.5} parent=5 // pred_check_branch
      %2309 = sbr.rel (%p2307) target = $region44
    $region43: #{_lambda_.5} parent=5 // pred_region
      %s2310 = ssub.s32 %s10, 2
      // Predicated region
      $region45: #{_lambda_.5} parent=43 // pred_check
        %p2311 = pneg %p128
      $region46: #{_lambda_.5} parent=43 // pred_check_branch
        %2313 = sbr.rel (%p2311) target = $region48
      $region47: #{_lambda_.5} parent=43 // pred_region
        %p2314 = scmp.lt.s32.totalorder %s16, 1
        %s2315 = scalar_select %p2314, %s16, 1
        %s2316 = smul.addr %s2315, 8
        %s2317 = smul.addr %s2316, 4
        %s2318 = scalar_lea.vmem %s4, %s2317
      $region48: #{_lambda_.5} parent=43 // pred_fallthru
        _
    $region44: #{_lambda_.5} parent=5 // pred_fallthru
      _
  $region6: #{_lambda_.5} parent=0 // loop_footer
    %s14 = sadd.s32 1, %s10
  $region7: #{_lambda_.5} parent=0 // loop_footer_branch
    %9 = sbr.rel target = $region3
  $region8: #{_lambda_.5} parent=0 // loop_exit
    _

// kernel: _lambda_.9
$region0: #{_lambda_.9}
  #allocation0 [shape = 'u32[]', space=smem, size = 0x4, offset = 0x4, fixed_abs, tag = 'smem constant byte address 0x4 - core index']
  #allocation1 [shape = 'u32[72,128]{1,0:T(1,128)}', space=vmem, size = 0x9000, scoped, tag = 'internal scratch']
  %s0 = inlined_call_operand.vmem [shape: bf16[2,32], index: 0, kind: input, shape index: {}]
  %s1 = inlined_call_operand.vmem [shape: bf16[32,128], index: 1, kind: input, shape index: {}]
  %s2 = inlined_call_operand.vmem [shape: f32[1,128], index: 2, kind: input, shape index: {}]
  %s3 = inlined_call_operand.hbm [shape: f32[2,128], index: 3, kind: output, shape index: {}]
  %s4 = sld [smem:[#allocation0]]
  $region22: #{_lambda_.9} parent=0
    _
  %s6 = ssub.s32 1, %s4
  %s7 = scalar_select 0, %s6, %s4
  $region1: #{_lambda_.9} parent=0
    #allocation2 [shape = 'u8[1024]{0}', space=vmem, size = 0x400, scoped, tag = 'output window, operand 0, single buffered']
    #allocation3 [shape = 's32[1]{0}', space=sflag, size = 0x4, scoped, tag = 'scoped memory for _lambda_.9']
    %8 = vsyncpa [#allocation3], 0
    // Predicated region
    $region2: #{_lambda_.9} parent=1 // pred_check
      _
    $region3: #{_lambda_.9} parent=1 // pred_check_branch
      %10 = sbr.rel (0) target = $region5
    $region4: #{_lambda_.9} parent=1 // pred_region
      _
    $region5: #{_lambda_.9} parent=1 // pred_fallthru
      _
    // Predicated region
    $region6: #{_lambda_.9} parent=1 // pred_check
      _
    $region7: #{_lambda_.9} parent=1 // pred_check_branch
      %12 = sbr.rel (0) target = $region9
    $region8: #{_lambda_.9} parent=1 // pred_region
      _
    $region9: #{_lambda_.9} parent=1 // pred_fallthru
      _
    // Predicated region
    $region10: #{_lambda_.9} parent=1 // pred_check
      _
    $region11: #{_lambda_.9} parent=1 // pred_check_branch
      %14 = sbr.rel (0) target = $region13
    $region12: #{_lambda_.9} parent=1 // pred_region
      _
    $region13: #{_lambda_.9} parent=1 // pred_fallthru
      _
    %v16 = vld [vmem:[%s0] sm:$0x1]
    %v17 = vld [vmem:[%s1] sm:$0xf]
    %v18 = vld [vmem:[%s1 + $0x4] sm:$0xf]
    %v19 = vld [vmem:[%s1 + $0x8] sm:$0xf]
    %v20 = vld [vmem:[%s1 + $0xc] sm:$0xf]
    %v21 = vld [vmem:[%s2] sm:$0x1]
    %v23 = vperm.slane %v21, 0
    %v29 = vunpack.c.l.b16 %v17
    %v30 = vunpack.c.l.b16 %v18
    %v31 = vunpack.c.l.b16 %v19
    %v32 = vunpack.c.l.b16 %v20
    %v33 = vpack.c.b16 %v30, %v29
    %v34 = vpack.c.b16 %v32, %v31
    %vm37 = vcmask 261120
    %v39 = vsel %vm37, %v16, 0
    %41 = vmatpush.bf16.msra.mxu0 0
    %42 = vmatpush.bf16.msra.mxu0 0
    %43 = vmatpush.bf16.msra.mxu0 0
    %44 = vmatpush.bf16.msra.mxu0 0
    %45 = vmatpush.bf16.msra.mxu0 0
    %46 = vmatpush.bf16.msra.mxu0 0
    %47 = vmatpush.bf16.msra.mxu0 %v34
    %48 = vmatpush.bf16.msra.mxu0 %v33
    %49 = vmatmul.bf16.gmra.mxu0 %v39
    %v50 = vpop.f32.mrf.mxu0
    %v51 = vadd.f32 %v23, %v50
    %v52 = vpop.f32.mrf.mxu0
    %53 = vdwg.mxu0
    %vm54 = vcmask 1041408
    %v55 = vsel %vm54, %v51, -inf
    %56 = vmax.xlane.f32.xlu0 %v55
    %v57 = vpop.xlane.xlu0 %56
    %v58 = vsub.f32 %v51, %v57
    %v59 = vmul.f32 %v58, 1.442695
    %v60 = vpow.pop %v59
    %v61 = vsel %vm54, %v60, 0.0
    %62 = vadd.xlane.f32.xlu0 %v61
    %v63 = vpop.xlane.xlu0 %62
    %v64 = vlog2.pop %v63
    %v65 = vmul.f32 %v64, 0.6931472
    %v66 = vsub.f32 %v58, %v65
    %67 = vst [vmem:[#allocation2] sm:$0x3] %v66
    // Predicated region
    $region14: #{_lambda_.9} parent=1 // pred_check
      _
    $region15: #{_lambda_.9} parent=1 // pred_check_branch
      %69 = sbr.rel (0) target = $region17
    $region16: #{_lambda_.9} parent=1 // pred_region
      %71 = vsyncadd [#allocation3], 0
      %s73 = sshll.u32 [#allocation2], 4
      %s74 = int_to_ptr.vmem [resolvable:$true] %s73
      %s75 = sshll.u32 %s3, 4
      %s76 = int_to_ptr.hbm [resolvable:$true] %s75
      %78 = dma.vmem_to_hbm [thread:$0]  %s74, 32, %s76, [#allocation3]
    $region17: #{_lambda_.9} parent=1 // pred_fallthru
      _
    // Predicated region
    $region18: #{_lambda_.9} parent=1 // pred_check
      _
    $region19: #{_lambda_.9} parent=1 // pred_check_branch
      %80 = sbr.rel (0) target = $region21
    $region20: #{_lambda_.9} parent=1 // pred_region
      %82 = dma.done [#allocation3], 32
    $region21: #{_lambda_.9} parent=1 // pred_fallthru
      _
    %83 = vsyncpa [#allocation3], 1

</llo_original>
